<compile_context>
chip_gen: v7x
topology: tpu7x:2x2x1
jax: 0.10.0
libtpu: 0.0.40
codegen_flags: <defaults>
</compile_context>

<pallas_src>
import functools

import jax
import jax.numpy as jnp
from jax import lax
from jax.experimental import pallas as pl
from jax.experimental.pallas import tpu as pltpu

NEG = -1e9

# Pack order of the d_model-row projection weights inside the lane-packed slab.
_W_ORDER = ("enc_wqkv", "enc_wo", "enc_wi",
            "dec_wqkv", "dec_wo", "dec_cq", "dec_ckv", "dec_co", "dec_wi")


def _w_widths(D, DFF):
  return {"enc_wqkv": 3 * D, "enc_wo": D, "enc_wi": DFF,
          "dec_wqkv": 3 * D, "dec_wo": D, "dec_cq": D,
          "dec_ckv": 2 * D, "dec_co": D, "dec_wi": DFF}


# ----------------------------- fused kernel -----------------------------

def _fused_forward_kernel(
    ids_ref,      # [S+2T, 1] i32 : [src | dec_in | labels] column (this batch)
    mask_ref,     # [1, S]    f32 : 1.0 keep / 0.0 pad (source keys)
    emb_ref,      # [Vp, D]   f32 : vocab-padded embedding (rows >= V are 0)
    ln_ref,       # [8, D]    f32 : stacked T5 RMSNorm gains (rows 0..6 used)
    w_ref,        # [D, 12D+2DFF] f32 : lane-packed projection slab
    wf_ref,       # [DFF, 2D] f32 : lane-packed FFN down-projection slab
    logits_ref,   # [T, Vp]   f32 out (columns >= V hold NEG)
    nll_ref,      # [T, 1]    f32 out (per-position cross-entropy)
    pred_ref,     # [T, 1]    i32 out (argmax over vocab)
    *, S, T, D, H, V, Vp, DFF):
  """One grid step == one batch element: full encoder + decoder + LM head."""
  Dh = D // H
  f32 = jnp.float32

  widths = _w_widths(D, DFF)
  offs, o = {}, 0
  for name in _W_ORDER:
    offs[name] = o
    o += widths[name]

  def W(name):                       # static lane-slice view of the slab
    a = offs[name]
    return w_ref[:, a:a + widths[name]]

  def mm(a, b):                      # f32 operands, f32 accumulation (MXU)
    return jnp.dot(a, b, preferred_element_type=f32)

  def rmsnorm(x, idx):               # T5 LayerNorm: RMS only, no mean, no bias
    g = ln_ref[idx:idx + 1, :]       # [1, D]
    var = jnp.mean(x * x, axis=-1, keepdims=True)
    return x * lax.rsqrt(var + 1e-6) * g

  emb = emb_ref[...]                 # hoisted: reused by embeds + tied LM head

  def embed(ids_col):                # [M,1] i32 -> [M,D] via one-hot matmul
    # TODO(synk): use precision=HIGHEST or a DMA gather if bit-exact parity
    # with a PyTorch embedding lookup is required.
    M = ids_col.shape[0]
    onehot = (lax.broadcasted_iota(jnp.int32, (M, Vp), 1) == ids_col).astype(f32)
    return mm(onehot, emb)

  def softmax(s):
    m = jnp.max(s, axis=-1, keepdims=True)
    p = jnp.exp(s - m)
    return p / jnp.sum(p, axis=-1, keepdims=True)

  def attention(q, k, v, bias, wo):
    # q: [Mq, D], k/v: [Mk, D]. Per-head scores / softmax / PV (K = Dh), then
    # heads reassembled with ONE concat and a single K=D output projection.
    # No 1/sqrt(Dh) scaling: HF T5 folds it into the initialization.
    outs = []
    for h in range(H):
      sl = slice(h * Dh, (h + 1) * Dh)
      s = lax.dot_general(q[:, sl], k[:, sl], (((1,), (1,)), ((), ())),
                          preferred_element_type=f32)            # [Mq, Mk]
      p = softmax(s + bias)
      outs.append(mm(p, v[:, sl]))                               # [Mq, Dh]
    return mm(jnp.concatenate(outs, axis=-1), wo)                # [Mq, D]

  # Per-batch attention biases (built in-registers, no HBM bias tensors).
  key_pad = (1.0 - mask_ref[...]) * NEG                          # [1, S]
  rT = lax.broadcasted_iota(jnp.int32, (T, T), 0)
  cT = lax.broadcasted_iota(jnp.int32, (T, T), 1)
  causal = jnp.where(cT <= rT, 0.0, NEG)                         # [T, T]

  src_ids = ids_ref[0:S, :]
  dec_ids = ids_ref[S:S + T, :]
  labels = ids_ref[S + T:S + 2 * T, :]

  # ---------------- encoder (1 block) ----------------
  x = embed(src_ids)                                             # [S, D]
  h_ = rmsnorm(x, 0)
  qkv = mm(h_, W("enc_wqkv"))                                    # fused QKV
  x = x + attention(qkv[:, :D], qkv[:, D:2 * D], qkv[:, 2 * D:],
                    key_pad, W("enc_wo"))
  h_ = rmsnorm(x, 1)
  x = x + mm(jnp.maximum(mm(h_, W("enc_wi")), 0.0), wf_ref[:, 0:D])
  enc = rmsnorm(x, 2)

  # ---------------- decoder (1 block) ----------------
  y = embed(dec_ids)                                             # [T, D]
  h_ = rmsnorm(y, 3)
  qkv = mm(h_, W("dec_wqkv"))                                    # fused QKV
  y = y + attention(qkv[:, :D], qkv[:, D:2 * D], qkv[:, 2 * D:],
                    causal, W("dec_wo"))
  h_ = rmsnorm(y, 4)
  cq = mm(h_, W("dec_cq"))
  ckv = mm(enc, W("dec_ckv"))                                    # fused K|V
  y = y + attention(cq, ckv[:, :D], ckv[:, D:], key_pad, W("dec_co"))
  h_ = rmsnorm(y, 5)
  y = y + mm(jnp.maximum(mm(h_, W("dec_wi")), 0.0), wf_ref[:, D:2 * D])
  dec = rmsnorm(y, 6)                                            # [T, D]

  # -------- tied LM head (HF T5 rescale), lane-dense logits --------
  dec = dec * (D ** -0.5)                  # tie_word_embeddings rescale
  logits = lax.dot_general(dec, emb, (((1,), (1,)), ((), ())),
                           preferred_element_type=f32)           # [T, Vp]
  viota = lax.broadcasted_iota(jnp.int32, (T, Vp), 1)
  logits = jnp.where(viota < V, logits, NEG)                     # mask vocab pad
  logits_ref[...] = logits

  # Per-position CE (mean over all B*T positions, PAD included, taken outside;
  # HF T5 uses ignore_index=-100 and labels contain no -100).
  m = jnp.max(logits, axis=-1, keepdims=True)
  lse = jnp.log(jnp.sum(jnp.exp(logits - m), axis=-1, keepdims=True)) + m
  label_logit = jnp.sum(jnp.where(viota == labels, logits, 0.0),
                        axis=-1, keepdims=True)
  nll_ref[...] = lse - label_logit                               # [T, 1]
  # argmax over vocab: first index attaining the row max.
  pred_ref[...] = jnp.min(jnp.where(logits == m, viota, Vp),
                          axis=-1, keepdims=True)


# ----------------------------- params & wrapper -----------------------------

def init_params(key, vocab, d_model, d_ff):
  shapes = {
      'emb': (vocab, d_model),
      'enc_wqkv': (d_model, 3 * d_model), 'enc_wo': (d_model, d_model),
      'enc_wi': (d_model, d_ff), 'enc_wf': (d_ff, d_model),
      'dec_wqkv': (d_model, 3 * d_model), 'dec_wo': (d_model, d_model),
      'dec_cq': (d_model, d_model), 'dec_ckv': (d_model, 2 * d_model),
      'dec_co': (d_model, d_model),
      'dec_wi': (d_model, d_ff), 'dec_wf': (d_ff, d_model),
  }
  keys = jax.random.split(key, len(shapes))
  p = {n: 0.02 * jax.random.normal(k, s, jnp.float32)
       for (n, s), k in zip(shapes.items(), keys)}
  # Stacked T5-LayerNorm gains: enc ln1/ln2/lnf, dec ln1/ln2/ln3/lnf.
  p['ln'] = jnp.ones((7, d_model), jnp.float32)
  return p


def transformer_forward(params, src, src_pad_mask, tgt,
                        start_token, d_model, n_heads):
  B, S = src.shape
  T = tgt.shape[1]
  V, D = params['emb'].shape
  DFF = params['enc_wi'].shape[1]
  Vp = ((V + 127) // 128) * 128          # lane-dense padded vocab
  L = S + 2 * T
  assert D == d_model

  # T5 builds decoder_input_ids by right-shifting the labels (glue on ids).
  dec_in = jnp.concatenate(
      [jnp.full((B, 1), start_token, tgt.dtype), tgt[:, :-1]], axis=1)

  # One int32 column per batch: [src | dec_in | labels].
  ids = jnp.concatenate([src, dec_in, tgt], axis=1).astype(jnp.int32)[:, :, None]
  mask = src_pad_mask.astype(jnp.float32)[:, None, :]            # (B, 1, S)

  # Lane-packed weight slabs: a few big DMAs instead of many tiny ones.
  emb_pad = jnp.zeros((Vp, D), jnp.float32).at[:V, :].set(params['emb'])
  ln_pad = jnp.zeros((8, D), jnp.float32).at[:7, :].set(params['ln'])
  w_slab = jnp.concatenate([params[n] for n in _W_ORDER], axis=1)
  wf_slab = jnp.concatenate([params['enc_wf'], params['dec_wf']], axis=1)

  kernel = functools.partial(_fused_forward_kernel, S=S, T=T, D=D,
                             H=n_heads, V=V, Vp=Vp, DFF=DFF)

  logits_pad, nll, pred = pl.pallas_call(
      kernel,
      grid=(B,),                                                 # one batch / step
      in_specs=[
          pl.BlockSpec((None, L, 1), lambda b: (b, 0, 0)),       # ids column
          pl.BlockSpec((None, 1, S), lambda b: (b, 0, 0)),       # pad mask row
          pl.BlockSpec((Vp, D), lambda b: (0, 0)),               # embedding
          pl.BlockSpec((8, D), lambda b: (0, 0)),                # LN gains
          pl.BlockSpec((D, w_slab.shape[1]), lambda b: (0, 0)),  # proj slab
          pl.BlockSpec((DFF, 2 * D), lambda b: (0, 0)),          # FFN-down slab
      ],
      out_specs=(
          pl.BlockSpec((None, T, Vp), lambda b: (b, 0, 0)),
          pl.BlockSpec((None, T, 1), lambda b: (b, 0, 0)),
          pl.BlockSpec((None, T, 1), lambda b: (b, 0, 0)),
      ),
      out_shape=(
          jax.ShapeDtypeStruct((B, T, Vp), jnp.float32),
          jax.ShapeDtypeStruct((B, T, 1), jnp.float32),
          jax.ShapeDtypeStruct((B, T, 1), jnp.int32),
      ),
      compiler_params=pltpu.CompilerParams(
          dimension_semantics=("parallel",)),      # v7x: batches across 2 TCs
  )(ids, mask, emb_pad, ln_pad, w_slab, wf_slab)

  logits = logits_pad[:, :, :V]                    # drop vocab lane-padding
  loss = jnp.mean(nll)                             # CE over all B*T positions
  pred_argmax = pred[:, :, 0]
  return logits, loss, pred_argmax


# ----------------------------- main -----------------------------

if __name__ == "__main__":
  # Module config: ntoken + 1 vocab entries, special tokens PAD/START/END.
  NTOKEN = 31
  VOCAB = NTOKEN + 1          # 32
  PAD, START, END = 0, 1, 2
  B, S, T = 2, 8, 8
  D_MODEL, N_HEADS, D_FF = 32, 4, 64

  key = jax.random.PRNGKey(0)
  kp, ks, kt = jax.random.split(key, 3)

  params = init_params(kp, VOCAB, D_MODEL, D_FF)

  # src: ... + <PAD>
  src = jax.random.randint(ks, (B, S), 3, VOCAB, dtype=jnp.int32)
  src = src.at[:, -2:].set(PAD)
  src_pad_mask = (src != PAD).astype(jnp.float32)

  # tgt: <START> + ... + <END> + <PAD>
  body = jax.random.randint(kt, (B, T - 3), 3, VOCAB, dtype=jnp.int32)
  tgt = jnp.concatenate(
      [jnp.full((B, 1), START, jnp.int32), body,
       jnp.full((B, 1), END, jnp.int32), jnp.full((B, 1), PAD, jnp.int32)],
      axis=1)

  fwd = jax.jit(functools.partial(transformer_forward,
                                  start_token=START, d_model=D_MODEL,
                                  n_heads=N_HEADS))
  logits, loss, pred_argmax = fwd(params, src, src_pad_mask, tgt)
  jax.block_until_ready((logits, loss, pred_argmax))

  assert logits.shape == (B, T, VOCAB)
  assert pred_argmax.shape == (B, T)
  assert loss.shape == ()
  assert bool(jnp.isfinite(loss))

  # TODO(synk): HF T5Config/pretrained-weight loading, dropout, relative
  # position bias and .generate() have no in-kernel equivalent here.
  print("KERNEL_OK")
</pallas_src>

<mosaic_0001>
module attributes {stable_mosaic.version = 11 : i64} {
  func.func @_fused_forward_kernel(%arg0: i32, %arg1: memref<1x24x1xi32, #tpu.memory_space<vmem>>, %arg2: memref<1x1x8xf32, #tpu.memory_space<vmem>>, %arg3: memref<128x32xf32, #tpu.memory_space<vmem>>, %arg4: memref<8x32xf32, #tpu.memory_space<vmem>>, %arg5: memref<32x512xf32, #tpu.memory_space<vmem>>, %arg6: memref<64x64xf32, #tpu.memory_space<vmem>>, %arg7: memref<1x8x128xf32, #tpu.memory_space<vmem>>, %arg8: memref<1x8x1xf32, #tpu.memory_space<vmem>>, %arg9: memref<1x8x1xi32, #tpu.memory_space<vmem>>) attributes {dimension_semantics = [#tpu.dimension_semantics<parallel>], iteration_bounds = array<i64: 2>, scalar_prefetch = 0 : i64, scratch_operands = 0 : i64, tpu.core_type = #tpu.core_type<tc>, window_params = [{transform_indices = @transform_0, window_bounds = array<i64: 1, 24, 1>}, {transform_indices = @transform_1, window_bounds = array<i64: 1, 1, 8>}, {pipeline_mode = #tpu.pipeline_mode<synchronous>, transform_indices = @transform_2, window_bounds = array<i64: 128, 32>}, {pipeline_mode = #tpu.pipeline_mode<synchronous>, transform_indices = @transform_3, window_bounds = array<i64: 8, 32>}, {pipeline_mode = #tpu.pipeline_mode<synchronous>, transform_indices = @transform_4, window_bounds = array<i64: 32, 512>}, {pipeline_mode = #tpu.pipeline_mode<synchronous>, transform_indices = @transform_5, window_bounds = array<i64: 64, 64>}, {transform_indices = @transform_6, window_bounds = array<i64: 1, 8, 128>}, {transform_indices = @transform_7, window_bounds = array<i64: 1, 8, 1>}, {transform_indices = @transform_8, window_bounds = array<i64: 1, 8, 1>}]} {
    %c0 = arith.constant 0 : index
    %c0_0 = arith.constant 0 : index
    %0 = vector.load %arg3[%c0, %c0_0] : memref<128x32xf32, #tpu.memory_space<vmem>>, vector<128x32xf32>
    %c0_1 = arith.constant 0 : index
    %c0_2 = arith.constant 0 : index
    %c0_3 = arith.constant 0 : index
    %1 = vector.load %arg2[%c0_1, %c0_2, %c0_3] : memref<1x1x8xf32, #tpu.memory_space<vmem>>, vector<1x1x8xf32>
    %2 = vector.shape_cast %1 : vector<1x1x8xf32> to vector<1x8xf32>
    %cst = arith.constant 1.000000e+00 : f32
    %3 = vector.broadcast %cst : f32 to vector<1x8xf32>
    %4 = arith.subf %3, %2 : vector<1x8xf32>
    %cst_4 = arith.constant -1.000000e+09 : f32
    %5 = vector.broadcast %cst_4 : f32 to vector<1x8xf32>
    %6 = arith.mulf %4, %5 : vector<1x8xf32>
    %7 = tpu.iota {dimensions = array<i32: 0>} : vector<8x8xi32>
    %8 = tpu.iota {dimensions = array<i32: 1>} : vector<8x8xi32>
    %9 = arith.cmpi sle, %8, %7 : vector<8x8xi32>
    %cst_5 = arith.constant 0.000000e+00 : f32
    %cst_6 = arith.constant -1.000000e+09 : f32
    %10 = vector.broadcast %cst_5 : f32 to vector<8x8xf32>
    %11 = vector.broadcast %cst_6 : f32 to vector<8x8xf32>
    %12 = arith.select %9, %10, %11 : vector<8x8xi1>, vector<8x8xf32>
    %c0_7 = arith.constant 0 : index
    %c0_8 = arith.constant 0 : index
    %c0_9 = arith.constant 0 : index
    %13 = vector.load %arg1[%c0_7, %c0_8, %c0_9] : memref<1x24x1xi32, #tpu.memory_space<vmem>>, vector<1x8x1xi32>
    %14 = vector.shape_cast %13 : vector<1x8x1xi32> to vector<8x1xi32>
    %c0_10 = arith.constant 0 : index
    %c8 = arith.constant 8 : index
    %c0_11 = arith.constant 0 : index
    %15 = vector.load %arg1[%c0_10, %c8, %c0_11] : memref<1x24x1xi32, #tpu.memory_space<vmem>>, vector<1x8x1xi32>
    %16 = vector.shape_cast %15 : vector<1x8x1xi32> to vector<8x1xi32>
    %c0_12 = arith.constant 0 : index
    %c16 = arith.constant 16 : index
    %c0_13 = arith.constant 0 : index
    %17 = vector.load %arg1[%c0_12, %c16, %c0_13] : memref<1x24x1xi32, #tpu.memory_space<vmem>>, vector<1x8x1xi32>
    %18 = vector.shape_cast %17 : vector<1x8x1xi32> to vector<8x1xi32>
    %19 = tpu.iota {dimensions = array<i32: 1>} : vector<8x128xi32>
    %20 = vector.broadcast %14 : vector<8x1xi32> to vector<8x128xi32>
    %21 = arith.cmpi eq, %19, %20 : vector<8x128xi32>
    %22 = arith.extui %21 : vector<8x128xi1> to vector<8x128xi32>
    %23 = arith.sitofp %22 : vector<8x128xi32> to vector<8x128xf32>
    %cst_14 = arith.constant dense<0.000000e+00> : vector<8x32xf32>
    %24 = tpu.matmul %23, %0, %cst_14 {dimension_numbers = #tpu.dot_dimension_numbers<[1], [0], [0], [1], [0, 0, 1, 1], [], []>} : vector<8x128xf32>, vector<128x32xf32>, vector<8x32xf32> -> vector<8x32xf32>
    %c0_15 = arith.constant 0 : index
    %c0_16 = arith.constant 0 : index
    %25 = vector.load %arg4[%c0_15, %c0_16] : memref<8x32xf32, #tpu.memory_space<vmem>>, vector<1x32xf32>
    %26 = arith.mulf %24, %24 : vector<8x32xf32>
    %cst_17 = arith.constant dense<0.000000e+00> : vector<8xf32>
    %27 = vector.multi_reduction <add>, %26, %cst_17 [1] : vector<8x32xf32> to vector<8xf32>
    %28 = vector.shape_cast %27 : vector<8xf32> to vector<8x1xf32>
    %cst_18 = arith.constant 3.200000e+01 : f32
    %29 = vector.broadcast %cst_18 : f32 to vector<8x1xf32>
    %30 = arith.divf %28, %29 : vector<8x1xf32>
    %cst_19 = arith.constant 9.99999997E-7 : f32
    %31 = vector.broadcast %cst_19 : f32 to vector<8x1xf32>
    %32 = arith.addf %30, %31 : vector<8x1xf32>
    %33 = math.rsqrt %32 : vector<8x1xf32>
    %34 = vector.broadcast %33 : vector<8x1xf32> to vector<8x32xf32>
    %35 = arith.mulf %24, %34 : vector<8x32xf32>
    %36 = vector.broadcast %25 : vector<1x32xf32> to vector<8x32xf32>
    %37 = arith.mulf %35, %36 : vector<8x32xf32>
    %c0_20 = arith.constant 0 : index
    %c0_21 = arith.constant 0 : index
    %38 = vector.load %arg5[%c0_20, %c0_21] : memref<32x512xf32, #tpu.memory_space<vmem>>, vector<32x96xf32>
    %cst_22 = arith.constant dense<0.000000e+00> : vector<8x96xf32>
    %39 = tpu.matmul %37, %38, %cst_22 {dimension_numbers = #tpu.dot_dimension_numbers<[1], [0], [0], [1], [0, 0, 1, 1], [], []>} : vector<8x32xf32>, vector<32x96xf32>, vector<8x96xf32> -> vector<8x96xf32>
    %40 = vector.extract_strided_slice %39 {offsets = [0, 0], sizes = [8, 32], strides = [1, 1]} : vector<8x96xf32> to vector<8x32xf32>
    %41 = vector.extract_strided_slice %39 {offsets = [0, 32], sizes = [8, 32], strides = [1, 1]} : vector<8x96xf32> to vector<8x32xf32>
    %42 = vector.extract_strided_slice %39 {offsets = [0, 64], sizes = [8, 32], strides = [1, 1]} : vector<8x96xf32> to vector<8x32xf32>
    %c0_23 = arith.constant 0 : index
    %c96 = arith.constant 96 : index
    %43 = vector.load %arg5[%c0_23, %c96] : memref<32x512xf32, #tpu.memory_space<vmem>>, vector<32x32xf32>
    %44 = vector.extract_strided_slice %40 {offsets = [0, 0], sizes = [8, 8], strides = [1, 1]} : vector<8x32xf32> to vector<8x8xf32>
    %45 = vector.extract_strided_slice %41 {offsets = [0, 0], sizes = [8, 8], strides = [1, 1]} : vector<8x32xf32> to vector<8x8xf32>
    %cst_24 = arith.constant dense<0.000000e+00> : vector<8x8xf32>
    %46 = tpu.matmul %44, %45, %cst_24 {dimension_numbers = #tpu.dot_dimension_numbers<[1], [1], [0], [0], [0, 0, 1, 0], [], []>} : vector<8x8xf32>, vector<8x8xf32>, vector<8x8xf32> -> vector<8x8xf32>
    %47 = vector.broadcast %6 : vector<1x8xf32> to vector<8x8xf32>
    %48 = arith.addf %46, %47 : vector<8x8xf32>
    %cst_25 = arith.constant dense<0xFF800000> : vector<8xf32>
    %49 = vector.multi_reduction <maximumf>, %48, %cst_25 [1] : vector<8x8xf32> to vector<8xf32>
    %50 = vector.shape_cast %49 : vector<8xf32> to vector<8x1xf32>
    %51 = vector.broadcast %50 : vector<8x1xf32> to vector<8x8xf32>
    %52 = arith.subf %48, %51 : vector<8x8xf32>
    %53 = math.exp %52 : vector<8x8xf32>
    %cst_26 = arith.constant dense<0.000000e+00> : vector<8xf32>
    %54 = vector.multi_reduction <add>, %53, %cst_26 [1] : vector<8x8xf32> to vector<8xf32>
    %55 = vector.shape_cast %54 : vector<8xf32> to vector<8x1xf32>
    %56 = vector.broadcast %55 : vector<8x1xf32> to vector<8x8xf32>
    %57 = arith.divf %53, %56 : vector<8x8xf32>
    %58 = vector.extract_strided_slice %42 {offsets = [0, 0], sizes = [8, 8], strides = [1, 1]} : vector<8x32xf32> to vector<8x8xf32>
    %cst_27 = arith.constant dense<0.000000e+00> : vector<8x8xf32>
    %59 = tpu.matmul %57, %58, %cst_27 {dimension_numbers = #tpu.dot_dimension_numbers<[1], [0], [0], [1], [0, 0, 1, 1], [], []>} : vector<8x8xf32>, vector<8x8xf32>, vector<8x8xf32> -> vector<8x8xf32>
    %60 = vector.extract_strided_slice %40 {offsets = [0, 8], sizes = [8, 8], strides = [1, 1]} : vector<8x32xf32> to vector<8x8xf32>
    %61 = vector.extract_strided_slice %41 {offsets = [0, 8], sizes = [8, 8], strides = [1, 1]} : vector<8x32xf32> to vector<8x8xf32>
    %cst_28 = arith.constant dense<0.000000e+00> : vector<8x8xf32>
    %62 = tpu.matmul %60, %61, %cst_28 {dimension_numbers = #tpu.dot_dimension_numbers<[1], [1], [0], [0], [0, 0, 1, 0], [], []>} : vector<8x8xf32>, vector<8x8xf32>, vector<8x8xf32> -> vector<8x8xf32>
    %63 = vector.broadcast %6 : vector<1x8xf32> to vector<8x8xf32>
    %64 = arith.addf %62, %63 : vector<8x8xf32>
    %cst_29 = arith.constant dense<0xFF800000> : vector<8xf32>
    %65 = vector.multi_reduction <maximumf>, %64, %cst_29 [1] : vector<8x8xf32> to vector<8xf32>
    %66 = vector.shape_cast %65 : vector<8xf32> to vector<8x1xf32>
    %67 = vector.broadcast %66 : vector<8x1xf32> to vector<8x8xf32>
    %68 = arith.subf %64, %67 : vector<8x8xf32>
    %69 = math.exp %68 : vector<8x8xf32>
    %cst_30 = arith.constant dense<0.000000e+00> : vector<8xf32>
    %70 = vector.multi_reduction <add>, %69, %cst_30 [1] : vector<8x8xf32> to vector<8xf32>
    %71 = vector.shape_cast %70 : vector<8xf32> to vector<8x1xf32>
    %72 = vector.broadcast %71 : vector<8x1xf32> to vector<8x8xf32>
    %73 = arith.divf %69, %72 : vector<8x8xf32>
    %74 = vector.extract_strided_slice %42 {offsets = [0, 8], sizes = [8, 8], strides = [1, 1]} : vector<8x32xf32> to vector<8x8xf32>
    %cst_31 = arith.constant dense<0.000000e+00> : vector<8x8xf32>
    %75 = tpu.matmul %73, %74, %cst_31 {dimension_numbers = #tpu.dot_dimension_numbers<[1], [0], [0], [1], [0, 0, 1, 1], [], []>} : vector<8x8xf32>, vector<8x8xf32>, vector<8x8xf32> -> vector<8x8xf32>
    %76 = vector.extract_strided_slice %40 {offsets = [0, 16], sizes = [8, 8], strides = [1, 1]} : vector<8x32xf32> to vector<8x8xf32>
    %77 = vector.extract_strided_slice %41 {offsets = [0, 16], sizes = [8, 8], strides = [1, 1]} : vector<8x32xf32> to vector<8x8xf32>
    %cst_32 = arith.constant dense<0.000000e+00> : vector<8x8xf32>
    %78 = tpu.matmul %76, %77, %cst_32 {dimension_numbers = #tpu.dot_dimension_numbers<[1], [1], [0], [0], [0, 0, 1, 0], [], []>} : vector<8x8xf32>, vector<8x8xf32>, vector<8x8xf32> -> vector<8x8xf32>
    %79 = vector.broadcast %6 : vector<1x8xf32> to vector<8x8xf32>
    %80 = arith.addf %78, %79 : vector<8x8xf32>
    %cst_33 = arith.constant dense<0xFF800000> : vector<8xf32>
    %81 = vector.multi_reduction <maximumf>, %80, %cst_33 [1] : vector<8x8xf32> to vector<8xf32>
    %82 = vector.shape_cast %81 : vector<8xf32> to vector<8x1xf32>
    %83 = vector.broadcast %82 : vector<8x1xf32> to vector<8x8xf32>
    %84 = arith.subf %80, %83 : vector<8x8xf32>
    %85 = math.exp %84 : vector<8x8xf32>
    %cst_34 = arith.constant dense<0.000000e+00> : vector<8xf32>
    %86 = vector.multi_reduction <add>, %85, %cst_34 [1] : vector<8x8xf32> to vector<8xf32>
    %87 = vector.shape_cast %86 : vector<8xf32> to vector<8x1xf32>
    %88 = vector.broadcast %87 : vector<8x1xf32> to vector<8x8xf32>
    %89 = arith.divf %85, %88 : vector<8x8xf32>
    %90 = vector.extract_strided_slice %42 {offsets = [0, 16], sizes = [8, 8], strides = [1, 1]} : vector<8x32xf32> to vector<8x8xf32>
    %cst_35 = arith.constant dense<0.000000e+00> : vector<8x8xf32>
    %91 = tpu.matmul %89, %90, %cst_35 {dimension_numbers = #tpu.dot_dimension_numbers<[1], [0], [0], [1], [0, 0, 1, 1], [], []>} : vector<8x8xf32>, vector<8x8xf32>, vector<8x8xf32> -> vector<8x8xf32>
    %92 = vector.extract_strided_slice %40 {offsets = [0, 24], sizes = [8, 8], strides = [1, 1]} : vector<8x32xf32> to vector<8x8xf32>
    %93 = vector.extract_strided_slice %41 {offsets = [0, 24], sizes = [8, 8], strides = [1, 1]} : vector<8x32xf32> to vector<8x8xf32>
    %cst_36 = arith.constant dense<0.000000e+00> : vector<8x8xf32>
    %94 = tpu.matmul %92, %93, %cst_36 {dimension_numbers = #tpu.dot_dimension_numbers<[1], [1], [0], [0], [0, 0, 1, 0], [], []>} : vector<8x8xf32>, vector<8x8xf32>, vector<8x8xf32> -> vector<8x8xf32>
    %95 = vector.broadcast %6 : vector<1x8xf32> to vector<8x8xf32>
    %96 = arith.addf %94, %95 : vector<8x8xf32>
    %cst_37 = arith.constant dense<0xFF800000> : vector<8xf32>
    %97 = vector.multi_reduction <maximumf>, %96, %cst_37 [1] : vector<8x8xf32> to vector<8xf32>
    %98 = vector.shape_cast %97 : vector<8xf32> to vector<8x1xf32>
    %99 = vector.broadcast %98 : vector<8x1xf32> to vector<8x8xf32>
    %100 = arith.subf %96, %99 : vector<8x8xf32>
    %101 = math.exp %100 : vector<8x8xf32>
    %cst_38 = arith.constant dense<0.000000e+00> : vector<8xf32>
    %102 = vector.multi_reduction <add>, %101, %cst_38 [1] : vector<8x8xf32> to vector<8xf32>
    %103 = vector.shape_cast %102 : vector<8xf32> to vector<8x1xf32>
    %104 = vector.broadcast %103 : vector<8x1xf32> to vector<8x8xf32>
    %105 = arith.divf %101, %104 : vector<8x8xf32>
    %106 = vector.extract_strided_slice %42 {offsets = [0, 24], sizes = [8, 8], strides = [1, 1]} : vector<8x32xf32> to vector<8x8xf32>
    %cst_39 = arith.constant dense<0.000000e+00> : vector<8x8xf32>
    %107 = tpu.matmul %105, %106, %cst_39 {dimension_numbers = #tpu.dot_dimension_numbers<[1], [0], [0], [1], [0, 0, 1, 1], [], []>} : vector<8x8xf32>, vector<8x8xf32>, vector<8x8xf32> -> vector<8x8xf32>
    %108 = tpu.concatenate %59, %75, %91, %107 in 1 : vector<8x8xf32>, vector<8x8xf32>, vector<8x8xf32>, vector<8x8xf32> -> vector<8x32xf32>
    %cst_40 = arith.constant dense<0.000000e+00> : vector<8x32xf32>
    %109 = tpu.matmul %108, %43, %cst_40 {dimension_numbers = #tpu.dot_dimension_numbers<[1], [0], [0], [1], [0, 0, 1, 1], [], []>} : vector<8x32xf32>, vector<32x32xf32>, vector<8x32xf32> -> vector<8x32xf32>
    %110 = arith.addf %24, %109 : vector<8x32xf32>
    %c1 = arith.constant 1 : index
    %c0_41 = arith.constant 0 : index
    %111 = vector.load %arg4[%c1, %c0_41] : memref<8x32xf32, #tpu.memory_space<vmem>>, vector<1x32xf32>
    %112 = arith.mulf %110, %110 : vector<8x32xf32>
    %cst_42 = arith.constant dense<0.000000e+00> : vector<8xf32>
    %113 = vector.multi_reduction <add>, %112, %cst_42 [1] : vector<8x32xf32> to vector<8xf32>
    %114 = vector.shape_cast %113 : vector<8xf32> to vector<8x1xf32>
    %cst_43 = arith.constant 3.200000e+01 : f32
    %115 = vector.broadcast %cst_43 : f32 to vector<8x1xf32>
    %116 = arith.divf %114, %115 : vector<8x1xf32>
    %cst_44 = arith.constant 9.99999997E-7 : f32
    %117 = vector.broadcast %cst_44 : f32 to vector<8x1xf32>
    %118 = arith.addf %116, %117 : vector<8x1xf32>
    %119 = math.rsqrt %118 : vector<8x1xf32>
    %120 = vector.broadcast %119 : vector<8x1xf32> to vector<8x32xf32>
    %121 = arith.mulf %110, %120 : vector<8x32xf32>
    %122 = vector.broadcast %111 : vector<1x32xf32> to vector<8x32xf32>
    %123 = arith.mulf %121, %122 : vector<8x32xf32>
    %c0_45 = arith.constant 0 : index
    %c128 = arith.constant 128 : index
    %124 = vector.load %arg5[%c0_45, %c128] : memref<32x512xf32, #tpu.memory_space<vmem>>, vector<32x64xf32>
    %cst_46 = arith.constant dense<0.000000e+00> : vector<8x64xf32>
    %125 = tpu.matmul %123, %124, %cst_46 {dimension_numbers = #tpu.dot_dimension_numbers<[1], [0], [0], [1], [0, 0, 1, 1], [], []>} : vector<8x32xf32>, vector<32x64xf32>, vector<8x64xf32> -> vector<8x64xf32>
    %cst_47 = arith.constant 0.000000e+00 : f32
    %126 = vector.broadcast %cst_47 : f32 to vector<8x64xf32>
    %127 = arith.maximumf %125, %126 : vector<8x64xf32>
    %c0_48 = arith.constant 0 : index
    %c0_49 = arith.constant 0 : index
    %128 = vector.load %arg6[%c0_48, %c0_49] : memref<64x64xf32, #tpu.memory_space<vmem>>, vector<64x32xf32>
    %cst_50 = arith.constant dense<0.000000e+00> : vector<8x32xf32>
    %129 = tpu.matmul %127, %128, %cst_50 {dimension_numbers = #tpu.dot_dimension_numbers<[1], [0], [0], [1], [0, 0, 1, 1], [], []>} : vector<8x64xf32>, vector<64x32xf32>, vector<8x32xf32> -> vector<8x32xf32>
    %130 = arith.addf %110, %129 : vector<8x32xf32>
    %c2 = arith.constant 2 : index
    %c0_51 = arith.constant 0 : index
    %131 = vector.load %arg4[%c2, %c0_51] : memref<8x32xf32, #tpu.memory_space<vmem>>, vector<1x32xf32>
    %132 = arith.mulf %130, %130 : vector<8x32xf32>
    %cst_52 = arith.constant dense<0.000000e+00> : vector<8xf32>
    %133 = vector.multi_reduction <add>, %132, %cst_52 [1] : vector<8x32xf32> to vector<8xf32>
    %134 = vector.shape_cast %133 : vector<8xf32> to vector<8x1xf32>
    %cst_53 = arith.constant 3.200000e+01 : f32
    %135 = vector.broadcast %cst_53 : f32 to vector<8x1xf32>
    %136 = arith.divf %134, %135 : vector<8x1xf32>
    %cst_54 = arith.constant 9.99999997E-7 : f32
    %137 = vector.broadcast %cst_54 : f32 to vector<8x1xf32>
    %138 = arith.addf %136, %137 : vector<8x1xf32>
    %139 = math.rsqrt %138 : vector<8x1xf32>
    %140 = vector.broadcast %139 : vector<8x1xf32> to vector<8x32xf32>
    %141 = arith.mulf %130, %140 : vector<8x32xf32>
    %142 = vector.broadcast %131 : vector<1x32xf32> to vector<8x32xf32>
    %143 = arith.mulf %141, %142 : vector<8x32xf32>
    %144 = tpu.iota {dimensions = array<i32: 1>} : vector<8x128xi32>
    %145 = vector.broadcast %16 : vector<8x1xi32> to vector<8x128xi32>
    %146 = arith.cmpi eq, %144, %145 : vector<8x128xi32>
    %147 = arith.extui %146 : vector<8x128xi1> to vector<8x128xi32>
    %148 = arith.sitofp %147 : vector<8x128xi32> to vector<8x128xf32>
    %cst_55 = arith.constant dense<0.000000e+00> : vector<8x32xf32>
    %149 = tpu.matmul %148, %0, %cst_55 {dimension_numbers = #tpu.dot_dimension_numbers<[1], [0], [0], [1], [0, 0, 1, 1], [], []>} : vector<8x128xf32>, vector<128x32xf32>, vector<8x32xf32> -> vector<8x32xf32>
    %c3 = arith.constant 3 : index
    %c0_56 = arith.constant 0 : index
    %150 = vector.load %arg4[%c3, %c0_56] : memref<8x32xf32, #tpu.memory_space<vmem>>, vector<1x32xf32>
    %151 = arith.mulf %149, %149 : vector<8x32xf32>
    %cst_57 = arith.constant dense<0.000000e+00> : vector<8xf32>
    %152 = vector.multi_reduction <add>, %151, %cst_57 [1] : vector<8x32xf32> to vector<8xf32>
    %153 = vector.shape_cast %152 : vector<8xf32> to vector<8x1xf32>
    %cst_58 = arith.constant 3.200000e+01 : f32
    %154 = vector.broadcast %cst_58 : f32 to vector<8x1xf32>
    %155 = arith.divf %153, %154 : vector<8x1xf32>
    %cst_59 = arith.constant 9.99999997E-7 : f32
    %156 = vector.broadcast %cst_59 : f32 to vector<8x1xf32>
    %157 = arith.addf %155, %156 : vector<8x1xf32>
    %158 = math.rsqrt %157 : vector<8x1xf32>
    %159 = vector.broadcast %158 : vector<8x1xf32> to vector<8x32xf32>
    %160 = arith.mulf %149, %159 : vector<8x32xf32>
    %161 = vector.broadcast %150 : vector<1x32xf32> to vector<8x32xf32>
    %162 = arith.mulf %160, %161 : vector<8x32xf32>
    %c0_60 = arith.constant 0 : index
    %c192 = arith.constant 192 : index
    %163 = vector.load %arg5[%c0_60, %c192] : memref<32x512xf32, #tpu.memory_space<vmem>>, vector<32x96xf32>
    %cst_61 = arith.constant dense<0.000000e+00> : vector<8x96xf32>
    %164 = tpu.matmul %162, %163, %cst_61 {dimension_numbers = #tpu.dot_dimension_numbers<[1], [0], [0], [1], [0, 0, 1, 1], [], []>} : vector<8x32xf32>, vector<32x96xf32>, vector<8x96xf32> -> vector<8x96xf32>
    %165 = vector.extract_strided_slice %164 {offsets = [0, 0], sizes = [8, 32], strides = [1, 1]} : vector<8x96xf32> to vector<8x32xf32>
    %166 = vector.extract_strided_slice %164 {offsets = [0, 32], sizes = [8, 32], strides = [1, 1]} : vector<8x96xf32> to vector<8x32xf32>
    %167 = vector.extract_strided_slice %164 {offsets = [0, 64], sizes = [8, 32], strides = [1, 1]} : vector<8x96xf32> to vector<8x32xf32>
    %c0_62 = arith.constant 0 : index
    %c288 = arith.constant 288 : index
    %168 = vector.load %arg5[%c0_62, %c288] : memref<32x512xf32, #tpu.memory_space<vmem>>, vector<32x32xf32>
    %169 = vector.extract_strided_slice %165 {offsets = [0, 0], sizes = [8, 8], strides = [1, 1]} : vector<8x32xf32> to vector<8x8xf32>
    %170 = vector.extract_strided_slice %166 {offsets = [0, 0], sizes = [8, 8], strides = [1, 1]} : vector<8x32xf32> to vector<8x8xf32>
    %cst_63 = arith.constant dense<0.000000e+00> : vector<8x8xf32>
    %171 = tpu.matmul %169, %170, %cst_63 {dimension_numbers = #tpu.dot_dimension_numbers<[1], [1], [0], [0], [0, 0, 1, 0], [], []>} : vector<8x8xf32>, vector<8x8xf32>, vector<8x8xf32> -> vector<8x8xf32>
    %172 = arith.addf %171, %12 : vector<8x8xf32>
    %cst_64 = arith.constant dense<0xFF800000> : vector<8xf32>
    %173 = vector.multi_reduction <maximumf>, %172, %cst_64 [1] : vector<8x8xf32> to vector<8xf32>
    %174 = vector.shape_cast %173 : vector<8xf32> to vector<8x1xf32>
    %175 = vector.broadcast %174 : vector<8x1xf32> to vector<8x8xf32>
    %176 = arith.subf %172, %175 : vector<8x8xf32>
    %177 = math.exp %176 : vector<8x8xf32>
    %cst_65 = arith.constant dense<0.000000e+00> : vector<8xf32>
    %178 = vector.multi_reduction <add>, %177, %cst_65 [1] : vector<8x8xf32> to vector<8xf32>
    %179 = vector.shape_cast %178 : vector<8xf32> to vector<8x1xf32>
    %180 = vector.broadcast %179 : vector<8x1xf32> to vector<8x8xf32>
    %181 = arith.divf %177, %180 : vector<8x8xf32>
    %182 = vector.extract_strided_slice %167 {offsets = [0, 0], sizes = [8, 8], strides = [1, 1]} : vector<8x32xf32> to vector<8x8xf32>
    %cst_66 = arith.constant dense<0.000000e+00> : vector<8x8xf32>
    %183 = tpu.matmul %181, %182, %cst_66 {dimension_numbers = #tpu.dot_dimension_numbers<[1], [0], [0], [1], [0, 0, 1, 1], [], []>} : vector<8x8xf32>, vector<8x8xf32>, vector<8x8xf32> -> vector<8x8xf32>
    %184 = vector.extract_strided_slice %165 {offsets = [0, 8], sizes = [8, 8], strides = [1, 1]} : vector<8x32xf32> to vector<8x8xf32>
    %185 = vector.extract_strided_slice %166 {offsets = [0, 8], sizes = [8, 8], strides = [1, 1]} : vector<8x32xf32> to vector<8x8xf32>
    %cst_67 = arith.constant dense<0.000000e+00> : vector<8x8xf32>
    %186 = tpu.matmul %184, %185, %cst_67 {dimension_numbers = #tpu.dot_dimension_numbers<[1], [1], [0], [0], [0, 0, 1, 0], [], []>} : vector<8x8xf32>, vector<8x8xf32>, vector<8x8xf32> -> vector<8x8xf32>
    %187 = arith.addf %186, %12 : vector<8x8xf32>
    %cst_68 = arith.constant dense<0xFF800000> : vector<8xf32>
    %188 = vector.multi_reduction <maximumf>, %187, %cst_68 [1] : vector<8x8xf32> to vector<8xf32>
    %189 = vector.shape_cast %188 : vector<8xf32> to vector<8x1xf32>
    %190 = vector.broadcast %189 : vector<8x1xf32> to vector<8x8xf32>
    %191 = arith.subf %187, %190 : vector<8x8xf32>
    %192 = math.exp %191 : vector<8x8xf32>
    %cst_69 = arith.constant dense<0.000000e+00> : vector<8xf32>
    %193 = vector.multi_reduction <add>, %192, %cst_69 [1] : vector<8x8xf32> to vector<8xf32>
    %194 = vector.shape_cast %193 : vector<8xf32> to vector<8x1xf32>
    %195 = vector.broadcast %194 : vector<8x1xf32> to vector<8x8xf32>
    %196 = arith.divf %192, %195 : vector<8x8xf32>
    %197 = vector.extract_strided_slice %167 {offsets = [0, 8], sizes = [8, 8], strides = [1, 1]} : vector<8x32xf32> to vector<8x8xf32>
    %cst_70 = arith.constant dense<0.000000e+00> : vector<8x8xf32>
    %198 = tpu.matmul %196, %197, %cst_70 {dimension_numbers = #tpu.dot_dimension_numbers<[1], [0], [0], [1], [0, 0, 1, 1], [], []>} : vector<8x8xf32>, vector<8x8xf32>, vector<8x8xf32> -> vector<8x8xf32>
    %199 = vector.extract_strided_slice %165 {offsets = [0, 16], sizes = [8, 8], strides = [1, 1]} : vector<8x32xf32> to vector<8x8xf32>
    %200 = vector.extract_strided_slice %166 {offsets = [0, 16], sizes = [8, 8], strides = [1, 1]} : vector<8x32xf32> to vector<8x8xf32>
    %cst_71 = arith.constant dense<0.000000e+00> : vector<8x8xf32>
    %201 = tpu.matmul %199, %200, %cst_71 {dimension_numbers = #tpu.dot_dimension_numbers<[1], [1], [0], [0], [0, 0, 1, 0], [], []>} : vector<8x8xf32>, vector<8x8xf32>, vector<8x8xf32> -> vector<8x8xf32>
    %202 = arith.addf %201, %12 : vector<8x8xf32>
    %cst_72 = arith.constant dense<0xFF800000> : vector<8xf32>
    %203 = vector.multi_reduction <maximumf>, %202, %cst_72 [1] : vector<8x8xf32> to vector<8xf32>
    %204 = vector.shape_cast %203 : vector<8xf32> to vector<8x1xf32>
    %205 = vector.broadcast %204 : vector<8x1xf32> to vector<8x8xf32>
    %206 = arith.subf %202, %205 : vector<8x8xf32>
    %207 = math.exp %206 : vector<8x8xf32>
    %cst_73 = arith.constant dense<0.000000e+00> : vector<8xf32>
    %208 = vector.multi_reduction <add>, %207, %cst_73 [1] : vector<8x8xf32> to vector<8xf32>
    %209 = vector.shape_cast %208 : vector<8xf32> to vector<8x1xf32>
    %210 = vector.broadcast %209 : vector<8x1xf32> to vector<8x8xf32>
    %211 = arith.divf %207, %210 : vector<8x8xf32>
    %212 = vector.extract_strided_slice %167 {offsets = [0, 16], sizes = [8, 8], strides = [1, 1]} : vector<8x32xf32> to vector<8x8xf32>
    %cst_74 = arith.constant dense<0.000000e+00> : vector<8x8xf32>
    %213 = tpu.matmul %211, %212, %cst_74 {dimension_numbers = #tpu.dot_dimension_numbers<[1], [0], [0], [1], [0, 0, 1, 1], [], []>} : vector<8x8xf32>, vector<8x8xf32>, vector<8x8xf32> -> vector<8x8xf32>
    %214 = vector.extract_strided_slice %165 {offsets = [0, 24], sizes = [8, 8], strides = [1, 1]} : vector<8x32xf32> to vector<8x8xf32>
    %215 = vector.extract_strided_slice %166 {offsets = [0, 24], sizes = [8, 8], strides = [1, 1]} : vector<8x32xf32> to vector<8x8xf32>
    %cst_75 = arith.constant dense<0.000000e+00> : vector<8x8xf32>
    %216 = tpu.matmul %214, %215, %cst_75 {dimension_numbers = #tpu.dot_dimension_numbers<[1], [1], [0], [0], [0, 0, 1, 0], [], []>} : vector<8x8xf32>, vector<8x8xf32>, vector<8x8xf32> -> vector<8x8xf32>
    %217 = arith.addf %216, %12 : vector<8x8xf32>
    %cst_76 = arith.constant dense<0xFF800000> : vector<8xf32>
    %218 = vector.multi_reduction <maximumf>, %217, %cst_76 [1] : vector<8x8xf32> to vector<8xf32>
    %219 = vector.shape_cast %218 : vector<8xf32> to vector<8x1xf32>
    %220 = vector.broadcast %219 : vector<8x1xf32> to vector<8x8xf32>
    %221 = arith.subf %217, %220 : vector<8x8xf32>
    %222 = math.exp %221 : vector<8x8xf32>
    %cst_77 = arith.constant dense<0.000000e+00> : vector<8xf32>
    %223 = vector.multi_reduction <add>, %222, %cst_77 [1] : vector<8x8xf32> to vector<8xf32>
    %224 = vector.shape_cast %223 : vector<8xf32> to vector<8x1xf32>
    %225 = vector.broadcast %224 : vector<8x1xf32> to vector<8x8xf32>
    %226 = arith.divf %222, %225 : vector<8x8xf32>
    %227 = vector.extract_strided_slice %167 {offsets = [0, 24], sizes = [8, 8], strides = [1, 1]} : vector<8x32xf32> to vector<8x8xf32>
    %cst_78 = arith.constant dense<0.000000e+00> : vector<8x8xf32>
    %228 = tpu.matmul %226, %227, %cst_78 {dimension_numbers = #tpu.dot_dimension_numbers<[1], [0], [0], [1], [0, 0, 1, 1], [], []>} : vector<8x8xf32>, vector<8x8xf32>, vector<8x8xf32> -> vector<8x8xf32>
    %229 = tpu.concatenate %183, %198, %213, %228 in 1 : vector<8x8xf32>, vector<8x8xf32>, vector<8x8xf32>, vector<8x8xf32> -> vector<8x32xf32>
    %cst_79 = arith.constant dense<0.000000e+00> : vector<8x32xf32>
    %230 = tpu.matmul %229, %168, %cst_79 {dimension_numbers = #tpu.dot_dimension_numbers<[1], [0], [0], [1], [0, 0, 1, 1], [], []>} : vector<8x32xf32>, vector<32x32xf32>, vector<8x32xf32> -> vector<8x32xf32>
    %231 = arith.addf %149, %230 : vector<8x32xf32>
    %c4 = arith.constant 4 : index
    %c0_80 = arith.constant 0 : index
    %232 = vector.load %arg4[%c4, %c0_80] : memref<8x32xf32, #tpu.memory_space<vmem>>, vector<1x32xf32>
    %233 = arith.mulf %231, %231 : vector<8x32xf32>
    %cst_81 = arith.constant dense<0.000000e+00> : vector<8xf32>
    %234 = vector.multi_reduction <add>, %233, %cst_81 [1] : vector<8x32xf32> to vector<8xf32>
    %235 = vector.shape_cast %234 : vector<8xf32> to vector<8x1xf32>
    %cst_82 = arith.constant 3.200000e+01 : f32
    %236 = vector.broadcast %cst_82 : f32 to vector<8x1xf32>
    %237 = arith.divf %235, %236 : vector<8x1xf32>
    %cst_83 = arith.constant 9.99999997E-7 : f32
    %238 = vector.broadcast %cst_83 : f32 to vector<8x1xf32>
    %239 = arith.addf %237, %238 : vector<8x1xf32>
    %240 = math.rsqrt %239 : vector<8x1xf32>
    %241 = vector.broadcast %240 : vector<8x1xf32> to vector<8x32xf32>
    %242 = arith.mulf %231, %241 : vector<8x32xf32>
    %243 = vector.broadcast %232 : vector<1x32xf32> to vector<8x32xf32>
    %244 = arith.mulf %242, %243 : vector<8x32xf32>
    %c0_84 = arith.constant 0 : index
    %c320 = arith.constant 320 : index
    %245 = vector.load %arg5[%c0_84, %c320] : memref<32x512xf32, #tpu.memory_space<vmem>>, vector<32x32xf32>
    %cst_85 = arith.constant dense<0.000000e+00> : vector<8x32xf32>
    %246 = tpu.matmul %244, %245, %cst_85 {dimension_numbers = #tpu.dot_dimension_numbers<[1], [0], [0], [1], [0, 0, 1, 1], [], []>} : vector<8x32xf32>, vector<32x32xf32>, vector<8x32xf32> -> vector<8x32xf32>
    %c0_86 = arith.constant 0 : index
    %c352 = arith.constant 352 : index
    %247 = vector.load %arg5[%c0_86, %c352] : memref<32x512xf32, #tpu.memory_space<vmem>>, vector<32x64xf32>
    %cst_87 = arith.constant dense<0.000000e+00> : vector<8x64xf32>
    %248 = tpu.matmul %143, %247, %cst_87 {dimension_numbers = #tpu.dot_dimension_numbers<[1], [0], [0], [1], [0, 0, 1, 1], [], []>} : vector<8x32xf32>, vector<32x64xf32>, vector<8x64xf32> -> vector<8x64xf32>
    %249 = vector.extract_strided_slice %248 {offsets = [0, 0], sizes = [8, 32], strides = [1, 1]} : vector<8x64xf32> to vector<8x32xf32>
    %250 = vector.extract_strided_slice %248 {offsets = [0, 32], sizes = [8, 32], strides = [1, 1]} : vector<8x64xf32> to vector<8x32xf32>
    %c0_88 = arith.constant 0 : index
    %c416 = arith.constant 416 : index
    %251 = vector.load %arg5[%c0_88, %c416] : memref<32x512xf32, #tpu.memory_space<vmem>>, vector<32x32xf32>
    %252 = vector.extract_strided_slice %246 {offsets = [0, 0], sizes = [8, 8], strides = [1, 1]} : vector<8x32xf32> to vector<8x8xf32>
    %253 = vector.extract_strided_slice %249 {offsets = [0, 0], sizes = [8, 8], strides = [1, 1]} : vector<8x32xf32> to vector<8x8xf32>
    %cst_89 = arith.constant dense<0.000000e+00> : vector<8x8xf32>
    %254 = tpu.matmul %252, %253, %cst_89 {dimension_numbers = #tpu.dot_dimension_numbers<[1], [1], [0], [0], [0, 0, 1, 0], [], []>} : vector<8x8xf32>, vector<8x8xf32>, vector<8x8xf32> -> vector<8x8xf32>
    %255 = vector.broadcast %6 : vector<1x8xf32> to vector<8x8xf32>
    %256 = arith.addf %254, %255 : vector<8x8xf32>
    %cst_90 = arith.constant dense<0xFF800000> : vector<8xf32>
    %257 = vector.multi_reduction <maximumf>, %256, %cst_90 [1] : vector<8x8xf32> to vector<8xf32>
    %258 = vector.shape_cast %257 : vector<8xf32> to vector<8x1xf32>
    %259 = vector.broadcast %258 : vector<8x1xf32> to vector<8x8xf32>
    %260 = arith.subf %256, %259 : vector<8x8xf32>
    %261 = math.exp %260 : vector<8x8xf32>
    %cst_91 = arith.constant dense<0.000000e+00> : vector<8xf32>
    %262 = vector.multi_reduction <add>, %261, %cst_91 [1] : vector<8x8xf32> to vector<8xf32>
    %263 = vector.shape_cast %262 : vector<8xf32> to vector<8x1xf32>
    %264 = vector.broadcast %263 : vector<8x1xf32> to vector<8x8xf32>
    %265 = arith.divf %261, %264 : vector<8x8xf32>
    %266 = vector.extract_strided_slice %250 {offsets = [0, 0], sizes = [8, 8], strides = [1, 1]} : vector<8x32xf32> to vector<8x8xf32>
    %cst_92 = arith.constant dense<0.000000e+00> : vector<8x8xf32>
    %267 = tpu.matmul %265, %266, %cst_92 {dimension_numbers = #tpu.dot_dimension_numbers<[1], [0], [0], [1], [0, 0, 1, 1], [], []>} : vector<8x8xf32>, vector<8x8xf32>, vector<8x8xf32> -> vector<8x8xf32>
    %268 = vector.extract_strided_slice %246 {offsets = [0, 8], sizes = [8, 8], strides = [1, 1]} : vector<8x32xf32> to vector<8x8xf32>
    %269 = vector.extract_strided_slice %249 {offsets = [0, 8], sizes = [8, 8], strides = [1, 1]} : vector<8x32xf32> to vector<8x8xf32>
    %cst_93 = arith.constant dense<0.000000e+00> : vector<8x8xf32>
    %270 = tpu.matmul %268, %269, %cst_93 {dimension_numbers = #tpu.dot_dimension_numbers<[1], [1], [0], [0], [0, 0, 1, 0], [], []>} : vector<8x8xf32>, vector<8x8xf32>, vector<8x8xf32> -> vector<8x8xf32>
    %271 = vector.broadcast %6 : vector<1x8xf32> to vector<8x8xf32>
    %272 = arith.addf %270, %271 : vector<8x8xf32>
    %cst_94 = arith.constant dense<0xFF800000> : vector<8xf32>
    %273 = vector.multi_reduction <maximumf>, %272, %cst_94 [1] : vector<8x8xf32> to vector<8xf32>
    %274 = vector.shape_cast %273 : vector<8xf32> to vector<8x1xf32>
    %275 = vector.broadcast %274 : vector<8x1xf32> to vector<8x8xf32>
    %276 = arith.subf %272, %275 : vector<8x8xf32>
    %277 = math.exp %276 : vector<8x8xf32>
    %cst_95 = arith.constant dense<0.000000e+00> : vector<8xf32>
    %278 = vector.multi_reduction <add>, %277, %cst_95 [1] : vector<8x8xf32> to vector<8xf32>
    %279 = vector.shape_cast %278 : vector<8xf32> to vector<8x1xf32>
    %280 = vector.broadcast %279 : vector<8x1xf32> to vector<8x8xf32>
    %281 = arith.divf %277, %280 : vector<8x8xf32>
    %282 = vector.extract_strided_slice %250 {offsets = [0, 8], sizes = [8, 8], strides = [1, 1]} : vector<8x32xf32> to vector<8x8xf32>
    %cst_96 = arith.constant dense<0.000000e+00> : vector<8x8xf32>
    %283 = tpu.matmul %281, %282, %cst_96 {dimension_numbers = #tpu.dot_dimension_numbers<[1], [0], [0], [1], [0, 0, 1, 1], [], []>} : vector<8x8xf32>, vector<8x8xf32>, vector<8x8xf32> -> vector<8x8xf32>
    %284 = vector.extract_strided_slice %246 {offsets = [0, 16], sizes = [8, 8], strides = [1, 1]} : vector<8x32xf32> to vector<8x8xf32>
    %285 = vector.extract_strided_slice %249 {offsets = [0, 16], sizes = [8, 8], strides = [1, 1]} : vector<8x32xf32> to vector<8x8xf32>
    %cst_97 = arith.constant dense<0.000000e+00> : vector<8x8xf32>
    %286 = tpu.matmul %284, %285, %cst_97 {dimension_numbers = #tpu.dot_dimension_numbers<[1], [1], [0], [0], [0, 0, 1, 0], [], []>} : vector<8x8xf32>, vector<8x8xf32>, vector<8x8xf32> -> vector<8x8xf32>
    %287 = vector.broadcast %6 : vector<1x8xf32> to vector<8x8xf32>
    %288 = arith.addf %286, %287 : vector<8x8xf32>
    %cst_98 = arith.constant dense<0xFF800000> : vector<8xf32>
    %289 = vector.multi_reduction <maximumf>, %288, %cst_98 [1] : vector<8x8xf32> to vector<8xf32>
    %290 = vector.shape_cast %289 : vector<8xf32> to vector<8x1xf32>
    %291 = vector.broadcast %290 : vector<8x1xf32> to vector<8x8xf32>
    %292 = arith.subf %288, %291 : vector<8x8xf32>
    %293 = math.exp %292 : vector<8x8xf32>
    %cst_99 = arith.constant dense<0.000000e+00> : vector<8xf32>
    %294 = vector.multi_reduction <add>, %293, %cst_99 [1] : vector<8x8xf32> to vector<8xf32>
    %295 = vector.shape_cast %294 : vector<8xf32> to vector<8x1xf32>
    %296 = vector.broadcast %295 : vector<8x1xf32> to vector<8x8xf32>
    %297 = arith.divf %293, %296 : vector<8x8xf32>
    %298 = vector.extract_strided_slice %250 {offsets = [0, 16], sizes = [8, 8], strides = [1, 1]} : vector<8x32xf32> to vector<8x8xf32>
    %cst_100 = arith.constant dense<0.000000e+00> : vector<8x8xf32>
    %299 = tpu.matmul %297, %298, %cst_100 {dimension_numbers = #tpu.dot_dimension_numbers<[1], [0], [0], [1], [0, 0, 1, 1], [], []>} : vector<8x8xf32>, vector<8x8xf32>, vector<8x8xf32> -> vector<8x8xf32>
    %300 = vector.extract_strided_slice %246 {offsets = [0, 24], sizes = [8, 8], strides = [1, 1]} : vector<8x32xf32> to vector<8x8xf32>
    %301 = vector.extract_strided_slice %249 {offsets = [0, 24], sizes = [8, 8], strides = [1, 1]} : vector<8x32xf32> to vector<8x8xf32>
    %cst_101 = arith.constant dense<0.000000e+00> : vector<8x8xf32>
    %302 = tpu.matmul %300, %301, %cst_101 {dimension_numbers = #tpu.dot_dimension_numbers<[1], [1], [0], [0], [0, 0, 1, 0], [], []>} : vector<8x8xf32>, vector<8x8xf32>, vector<8x8xf32> -> vector<8x8xf32>
    %303 = vector.broadcast %6 : vector<1x8xf32> to vector<8x8xf32>
    %304 = arith.addf %302, %303 : vector<8x8xf32>
    %cst_102 = arith.constant dense<0xFF800000> : vector<8xf32>
    %305 = vector.multi_reduction <maximumf>, %304, %cst_102 [1] : vector<8x8xf32> to vector<8xf32>
    %306 = vector.shape_cast %305 : vector<8xf32> to vector<8x1xf32>
    %307 = vector.broadcast %306 : vector<8x1xf32> to vector<8x8xf32>
    %308 = arith.subf %304, %307 : vector<8x8xf32>
    %309 = math.exp %308 : vector<8x8xf32>
    %cst_103 = arith.constant dense<0.000000e+00> : vector<8xf32>
    %310 = vector.multi_reduction <add>, %309, %cst_103 [1] : vector<8x8xf32> to vector<8xf32>
    %311 = vector.shape_cast %310 : vector<8xf32> to vector<8x1xf32>
    %312 = vector.broadcast %311 : vector<8x1xf32> to vector<8x8xf32>
    %313 = arith.divf %309, %312 : vector<8x8xf32>
    %314 = vector.extract_strided_slice %250 {offsets = [0, 24], sizes = [8, 8], strides = [1, 1]} : vector<8x32xf32> to vector<8x8xf32>
    %cst_104 = arith.constant dense<0.000000e+00> : vector<8x8xf32>
    %315 = tpu.matmul %313, %314, %cst_104 {dimension_numbers = #tpu.dot_dimension_numbers<[1], [0], [0], [1], [0, 0, 1, 1], [], []>} : vector<8x8xf32>, vector<8x8xf32>, vector<8x8xf32> -> vector<8x8xf32>
    %316 = tpu.concatenate %267, %283, %299, %315 in 1 : vector<8x8xf32>, vector<8x8xf32>, vector<8x8xf32>, vector<8x8xf32> -> vector<8x32xf32>
    %cst_105 = arith.constant dense<0.000000e+00> : vector<8x32xf32>
    %317 = tpu.matmul %316, %251, %cst_105 {dimension_numbers = #tpu.dot_dimension_numbers<[1], [0], [0], [1], [0, 0, 1, 1], [], []>} : vector<8x32xf32>, vector<32x32xf32>, vector<8x32xf32> -> vector<8x32xf32>
    %318 = arith.addf %231, %317 : vector<8x32xf32>
    %c5 = arith.constant 5 : index
    %c0_106 = arith.constant 0 : index
    %319 = vector.load %arg4[%c5, %c0_106] : memref<8x32xf32, #tpu.memory_space<vmem>>, vector<1x32xf32>
    %320 = arith.mulf %318, %318 : vector<8x32xf32>
    %cst_107 = arith.constant dense<0.000000e+00> : vector<8xf32>
    %321 = vector.multi_reduction <add>, %320, %cst_107 [1] : vector<8x32xf32> to vector<8xf32>
    %322 = vector.shape_cast %321 : vector<8xf32> to vector<8x1xf32>
    %cst_108 = arith.constant 3.200000e+01 : f32
    %323 = vector.broadcast %cst_108 : f32 to vector<8x1xf32>
    %324 = arith.divf %322, %323 : vector<8x1xf32>
    %cst_109 = arith.constant 9.99999997E-7 : f32
    %325 = vector.broadcast %cst_109 : f32 to vector<8x1xf32>
    %326 = arith.addf %324, %325 : vector<8x1xf32>
    %327 = math.rsqrt %326 : vector<8x1xf32>
    %328 = vector.broadcast %327 : vector<8x1xf32> to vector<8x32xf32>
    %329 = arith.mulf %318, %328 : vector<8x32xf32>
    %330 = vector.broadcast %319 : vector<1x32xf32> to vector<8x32xf32>
    %331 = arith.mulf %329, %330 : vector<8x32xf32>
    %c0_110 = arith.constant 0 : index
    %c448 = arith.constant 448 : index
    %332 = vector.load %arg5[%c0_110, %c448] : memref<32x512xf32, #tpu.memory_space<vmem>>, vector<32x64xf32>
    %cst_111 = arith.constant dense<0.000000e+00> : vector<8x64xf32>
    %333 = tpu.matmul %331, %332, %cst_111 {dimension_numbers = #tpu.dot_dimension_numbers<[1], [0], [0], [1], [0, 0, 1, 1], [], []>} : vector<8x32xf32>, vector<32x64xf32>, vector<8x64xf32> -> vector<8x64xf32>
    %cst_112 = arith.constant 0.000000e+00 : f32
    %334 = vector.broadcast %cst_112 : f32 to vector<8x64xf32>
    %335 = arith.maximumf %333, %334 : vector<8x64xf32>
    %c0_113 = arith.constant 0 : index
    %c32 = arith.constant 32 : index
    %336 = vector.load %arg6[%c0_113, %c32] : memref<64x64xf32, #tpu.memory_space<vmem>>, vector<64x32xf32>
    %cst_114 = arith.constant dense<0.000000e+00> : vector<8x32xf32>
    %337 = tpu.matmul %335, %336, %cst_114 {dimension_numbers = #tpu.dot_dimension_numbers<[1], [0], [0], [1], [0, 0, 1, 1], [], []>} : vector<8x64xf32>, vector<64x32xf32>, vector<8x32xf32> -> vector<8x32xf32>
    %338 = arith.addf %318, %337 : vector<8x32xf32>
    %c6 = arith.constant 6 : index
    %c0_115 = arith.constant 0 : index
    %339 = vector.load %arg4[%c6, %c0_115] : memref<8x32xf32, #tpu.memory_space<vmem>>, vector<1x32xf32>
    %340 = arith.mulf %338, %338 : vector<8x32xf32>
    %cst_116 = arith.constant dense<0.000000e+00> : vector<8xf32>
    %341 = vector.multi_reduction <add>, %340, %cst_116 [1] : vector<8x32xf32> to vector<8xf32>
    %342 = vector.shape_cast %341 : vector<8xf32> to vector<8x1xf32>
    %cst_117 = arith.constant 3.200000e+01 : f32
    %343 = vector.broadcast %cst_117 : f32 to vector<8x1xf32>
    %344 = arith.divf %342, %343 : vector<8x1xf32>
    %cst_118 = arith.constant 9.99999997E-7 : f32
    %345 = vector.broadcast %cst_118 : f32 to vector<8x1xf32>
    %346 = arith.addf %344, %345 : vector<8x1xf32>
    %347 = math.rsqrt %346 : vector<8x1xf32>
    %348 = vector.broadcast %347 : vector<8x1xf32> to vector<8x32xf32>
    %349 = arith.mulf %338, %348 : vector<8x32xf32>
    %350 = vector.broadcast %339 : vector<1x32xf32> to vector<8x32xf32>
    %351 = arith.mulf %349, %350 : vector<8x32xf32>
    %cst_119 = arith.constant 0.176776692 : f32
    %352 = vector.broadcast %cst_119 : f32 to vector<8x32xf32>
    %353 = arith.mulf %351, %352 : vector<8x32xf32>
    %cst_120 = arith.constant dense<0.000000e+00> : vector<8x128xf32>
    %354 = tpu.matmul %353, %0, %cst_120 {dimension_numbers = #tpu.dot_dimension_numbers<[1], [1], [0], [0], [0, 0, 1, 0], [], []>} : vector<8x32xf32>, vector<128x32xf32>, vector<8x128xf32> -> vector<8x128xf32>
    %355 = tpu.iota {dimensions = array<i32: 1>} : vector<8x128xi32>
    %c32_i32 = arith.constant 32 : i32
    %356 = vector.broadcast %c32_i32 : i32 to vector<8x128xi32>
    %357 = arith.cmpi slt, %355, %356 : vector<8x128xi32>
    %cst_121 = arith.constant -1.000000e+09 : f32
    %358 = vector.broadcast %cst_121 : f32 to vector<8x128xf32>
    %359 = arith.select %357, %354, %358 : vector<8x128xi1>, vector<8x128xf32>
    %c0_122 = arith.constant 0 : index
    %c0_123 = arith.constant 0 : index
    %c0_124 = arith.constant 0 : index
    %360 = vector.load %arg7[%c0_122, %c0_123, %c0_124] : memref<1x8x128xf32, #tpu.memory_space<vmem>>, vector<1x8x128xf32>
    %361 = vector.shape_cast %360 : vector<1x8x128xf32> to vector<8x128xf32>
    %362 = vector.shape_cast %359 : vector<8x128xf32> to vector<1x8x128xf32>
    tpu.vector_store %arg7[%c0_122, %c0_123, %c0_124], %362 {strides = array<i32>} : memref<1x8x128xf32, #tpu.memory_space<vmem>>, vector<1x8x128xf32>,
    %cst_125 = arith.constant dense<0xFF800000> : vector<8xf32>
    %363 = vector.multi_reduction <maximumf>, %359, %cst_125 [1] : vector<8x128xf32> to vector<8xf32>
    %364 = vector.shape_cast %363 : vector<8xf32> to vector<8x1xf32>
    %365 = vector.broadcast %364 : vector<8x1xf32> to vector<8x128xf32>
    %366 = arith.subf %359, %365 : vector<8x128xf32>
    %367 = math.exp %366 : vector<8x128xf32>
    %cst_126 = arith.constant dense<0.000000e+00> : vector<8xf32>
    %368 = vector.multi_reduction <add>, %367, %cst_126 [1] : vector<8x128xf32> to vector<8xf32>
    %369 = vector.shape_cast %368 : vector<8xf32> to vector<8x1xf32>
    %370 = math.log %369 : vector<8x1xf32>
    %371 = arith.addf %370, %364 : vector<8x1xf32>
    %372 = vector.broadcast %18 : vector<8x1xi32> to vector<8x128xi32>
    %373 = arith.cmpi eq, %355, %372 : vector<8x128xi32>
    %cst_127 = arith.constant 0.000000e+00 : f32
    %374 = vector.broadcast %cst_127 : f32 to vector<8x128xf32>
    %375 = arith.select %373, %359, %374 : vector<8x128xi1>, vector<8x128xf32>
    %cst_128 = arith.constant dense<0.000000e+00> : vector<8xf32>
    %376 = vector.multi_reduction <add>, %375, %cst_128 [1] : vector<8x128xf32> to vector<8xf32>
    %377 = vector.shape_cast %376 : vector<8xf32> to vector<8x1xf32>
    %378 = arith.subf %371, %377 : vector<8x1xf32>
    %c0_129 = arith.constant 0 : index
    %c0_130 = arith.constant 0 : index
    %c0_131 = arith.constant 0 : index
    %379 = vector.load %arg8[%c0_129, %c0_130, %c0_131] : memref<1x8x1xf32, #tpu.memory_space<vmem>>, vector<1x8x1xf32>
    %380 = vector.shape_cast %379 : vector<1x8x1xf32> to vector<8x1xf32>
    %381 = vector.shape_cast %378 : vector<8x1xf32> to vector<1x8x1xf32>
    tpu.vector_store %arg8[%c0_129, %c0_130, %c0_131], %381 {strides = array<i32>} : memref<1x8x1xf32, #tpu.memory_space<vmem>>, vector<1x8x1xf32>,
    %382 = vector.broadcast %364 : vector<8x1xf32> to vector<8x128xf32>
    %383 = arith.cmpf oeq, %359, %382 : vector<8x128xf32>
    %c128_i32 = arith.constant 128 : i32
    %384 = vector.broadcast %c128_i32 : i32 to vector<8x128xi32>
    %385 = arith.select %383, %355, %384 : vector<8x128xi1>, vector<8x128xi32>
    %cst_132 = arith.constant dense<2147483647> : vector<8xi32>
    %386 = vector.multi_reduction <minsi>, %385, %cst_132 [1] : vector<8x128xi32> to vector<8xi32>
    %387 = vector.shape_cast %386 : vector<8xi32> to vector<8x1xi32>
    %c0_133 = arith.constant 0 : index
    %c0_134 = arith.constant 0 : index
    %c0_135 = arith.constant 0 : index
    %388 = vector.load %arg9[%c0_133, %c0_134, %c0_135] : memref<1x8x1xi32, #tpu.memory_space<vmem>>, vector<1x8x1xi32>
    %389 = vector.shape_cast %388 : vector<1x8x1xi32> to vector<8x1xi32>
    %390 = vector.shape_cast %387 : vector<8x1xi32> to vector<1x8x1xi32>
    tpu.vector_store %arg9[%c0_133, %c0_134, %c0_135], %390 {strides = array<i32>} : memref<1x8x1xi32, #tpu.memory_space<vmem>>, vector<1x8x1xi32>,
    return
  }
  func.func @transform_0(%arg0: i32) -> (i32, i32, i32) {
    %c0_i32 = arith.constant 0 : i32
    %c0_i32_0 = arith.constant 0 : i32
    %c0_i32_1 = arith.constant 0 : i32
    return %arg0, %c0_i32, %c0_i32_0 : i32, i32, i32
  }
  func.func @transform_1(%arg0: i32) -> (i32, i32, i32) {
    %c0_i32 = arith.constant 0 : i32
    %c0_i32_0 = arith.constant 0 : i32
    %c0_i32_1 = arith.constant 0 : i32
    return %arg0, %c0_i32, %c0_i32_0 : i32, i32, i32
  }
  func.func @transform_2(%arg0: i32) -> (i32, i32) {
    %c0_i32 = arith.constant 0 : i32
    %c0_i32_0 = arith.constant 0 : i32
    %c0_i32_1 = arith.constant 0 : i32
    return %c0_i32, %c0_i32_0 : i32, i32
  }
  func.func @transform_3(%arg0: i32) -> (i32, i32) {
    %c0_i32 = arith.constant 0 : i32
    %c0_i32_0 = arith.constant 0 : i32
    %c0_i32_1 = arith.constant 0 : i32
    return %c0_i32, %c0_i32_0 : i32, i32
  }
  func.func @transform_4(%arg0: i32) -> (i32, i32) {
    %c0_i32 = arith.constant 0 : i32
    %c0_i32_0 = arith.constant 0 : i32
    %c0_i32_1 = arith.constant 0 : i32
    return %c0_i32, %c0_i32_0 : i32, i32
  }
  func.func @transform_5(%arg0: i32) -> (i32, i32) {
    %c0_i32 = arith.constant 0 : i32
    %c0_i32_0 = arith.constant 0 : i32
    %c0_i32_1 = arith.constant 0 : i32
    return %c0_i32, %c0_i32_0 : i32, i32
  }
  func.func @transform_6(%arg0: i32) -> (i32, i32, i32) {
    %c0_i32 = arith.constant 0 : i32
    %c0_i32_0 = arith.constant 0 : i32
    %c0_i32_1 = arith.constant 0 : i32
    return %arg0, %c0_i32, %c0_i32_0 : i32, i32, i32
  }
  func.func @transform_7(%arg0: i32) -> (i32, i32, i32) {
    %c0_i32 = arith.constant 0 : i32
    %c0_i32_0 = arith.constant 0 : i32
    %c0_i32_1 = arith.constant 0 : i32
    return %arg0, %c0_i32, %c0_i32_0 : i32, i32, i32
  }
  func.func @transform_8(%arg0: i32) -> (i32, i32, i32) {
    %c0_i32 = arith.constant 0 : i32
    %c0_i32_0 = arith.constant 0 : i32
    %c0_i32_1 = arith.constant 0 : i32
    return %arg0, %c0_i32, %c0_i32_0 : i32, i32, i32
  }
}

</mosaic_0001>

<llo_original>
// kernel: transformer_forward.1
$region0: #{transformer_forward.1}
  #allocation0 [shape = 'u32[]', space=smem, size = 0x4, offset = 0x4, fixed_abs, tag = 'smem constant byte address 0x4 - core index']
  #allocation1 [shape = 'u32[144,128]{1,0:T(1,128)}', space=vmem, size = 0x12000, scoped, tag = 'internal scratch']
  %s0 = inlined_call_operand.vmem [shape: s32[2,24,1], index: 0, kind: input, shape index: {}]
  %s1 = inlined_call_operand.vmem [shape: f32[2,1,8], index: 1, kind: input, shape index: {}]
  %s2 = inlined_call_operand.vmem [shape: f32[128,32], index: 2, kind: input, shape index: {}]
  %s3 = inlined_call_operand.vmem [shape: f32[8,32], index: 3, kind: input, shape index: {}]
  %s4 = inlined_call_operand.vmem [shape: f32[32,512], index: 4, kind: input, shape index: {}]
  %s5 = inlined_call_operand.vmem [shape: f32[64,64], index: 5, kind: input, shape index: {}]
  %s6 = inlined_call_operand.hbm [shape: f32[2,8,128], index: 6, kind: output, shape index: {0}]
  %s7 = inlined_call_operand.vmem [shape: f32[2,8,1], index: 7, kind: output, shape index: {1}]
  %s8 = inlined_call_operand.vmem [shape: s32[2,8,1], index: 8, kind: output, shape index: {2}]
  %9 = xla_tuple %s6, %s7, %s8
  %s10 = sld [smem:[#allocation0]]
  $region73: #{transformer_forward.1} parent=0
    _
  %s12 = ssub.s32 1, %s10
  %s13 = scalar_select 0, %s12, %s10
  $region1: #{transformer_forward.1} parent=0
    #allocation2 [shape = 'u8[8192]{0}', space=vmem, size = 0x2000, scoped, tag = 'output window, operand 0']
    #allocation3 [shape = 's32[2]{0}', space=sflag, size = 0x8, scoped, tag = 'scoped memory for transformer_forward.1']
    %14 = vsyncpa [#allocation3], 0
    %s15 = scalar_lea.sflag [#allocation3], 1
    %16 = vsyncpa %s15, 0
    loop: start=0, step=1, limit=4
    $region2: #{transformer_forward.1} parent=1 // loop_pre_header
      _
    $region3: #{transformer_forward.1} parent=1 // loop_header
      %s18 = sphi 0, %s22
      %p19 = scmp.ge.s32.totalorder %s18, 4
      %s28 = sphi 0, %s30
      %s31 = sphi 0, %s28
      %s32 = sphi 0, %s31
      %s48 = sphi 0, %s32
      %s54 = sphi 0, %s56
      %s57 = sphi 0, %s54
      %s58 = sphi 0, %s57
      %s74 = sphi 0, %s58
      %s78 = sphi 0, %s78
      %s80 = sphi 0, %s78
      %s81 = sphi 0, %s80
      %s95 = sphi 0, %s81
      %s99 = sphi 0, %s99
      %s101 = sphi 0, %s99
      %s102 = sphi 0, %s101
      %s116 = sphi 0, %s102
      %s120 = sphi 0, %s120
      %s122 = sphi 0, %s120
      %s123 = sphi 0, %s122
      %s137 = sphi 0, %s123
      %s141 = sphi 0, %s141
      %s143 = sphi 0, %s141
      %s144 = sphi 0, %s143
      %s158 = sphi 0, %s144
      %s164 = sphi 0, %s166
      %s167 = sphi 0, %s164
      %s168 = sphi 0, %s167
      %s184 = sphi 0, %s168
      %s190 = sphi 0, %s192
      %s193 = sphi 0, %s190
      %s194 = sphi 0, %s193
      %s210 = sphi 0, %s194
      %s216 = sphi 0, %s218
      %s219 = sphi 0, %s216
      %s220 = sphi 0, %s219
      %s236 = sphi 0, %s220
    $region4: #{transformer_forward.1} parent=1 // loop_header_branch
      %21 = sbr.rel (%p19) target = $region8
    $region5: #{transformer_forward.1} parent=1 // loop_body
      %s23 = ssub.s32 %s18, 1
      %s24 = ssub.s32 %s18, 2
      %s25 = sadd.s32 %s18, 1
      %s26 = ssub.s32 %s18, %s25
      %p27 = scmp.eq.s32.totalorder %s26, 0
      %s29 = sadd.s32 %s28, 1
      %s30 = scalar_select %p27, %s28, %s29
      %p33 = pneg %p27
      %p34 = scmp.eq.s32.totalorder %s18, 1
      %p35 = por %p33, %p34
      %p36 = scmp.ne.s32.totalorder %s28, %s31
      %p37 = scmp.eq.s32.totalorder %s18, 0
      %p38 = por %p36, %p37
      %p39 = scmp.ne.s32.totalorder %s28, %s31
      %p40 = scmp.eq.s32.totalorder %s23, 1
      %p41 = por %p39, %p40
      %p42 = scmp.ne.s32.totalorder %s31, %s32
      %p43 = scmp.eq.s32.totalorder %s23, 0
      %p44 = por %p42, %p43
      %p45 = scmp.ne.s32.totalorder %s31, %s32
      %p46 = scmp.eq.s32.totalorder %s24, 1
      %p47 = por %p45, %p46
      %p49 = scmp.ne.s32.totalorder %s32, %s48
      %p50 = scmp.eq.s32.totalorder %s24, 0
      %p51 = por %p49, %p50
      %s52 = ssub.s32 %s18, %s25
      %p53 = scmp.eq.s32.totalorder %s52, 0
      %s55 = sadd.s32 %s54, 1
      %s56 = scalar_select %p53, %s54, %s55
      %p59 = pneg %p53
      %p60 = scmp.eq.s32.totalorder %s18, 1
      %p61 = por %p59, %p60
      %p62 = scmp.ne.s32.totalorder %s54, %s57
      %p63 = scmp.eq.s32.totalorder %s18, 0
      %p64 = por %p62, %p63
      %p65 = scmp.ne.s32.totalorder %s54, %s57
      %p66 = scmp.eq.s32.totalorder %s23, 1
      %p67 = por %p65, %p66
      %p68 = scmp.ne.s32.totalorder %s57, %s58
      %p69 = scmp.eq.s32.totalorder %s23, 0
      %p70 = por %p68, %p69
      %p71 = scmp.ne.s32.totalorder %s57, %s58
      %p72 = scmp.eq.s32.totalorder %s24, 1
      %p73 = por %p71, %p72
      %p75 = scmp.ne.s32.totalorder %s58, %s74
      %p76 = scmp.eq.s32.totalorder %s24, 0
      %p77 = por %p75, %p76
      %s79 = sadd.s32 %s78, 1
      %p82 = scmp.eq.s32.totalorder %s18, 1
      %p83 = scmp.ne.s32.totalorder %s78, %s80
      %p84 = scmp.eq.s32.totalorder %s18, 0
      %p85 = por %p83, %p84
      %p86 = scmp.ne.s32.totalorder %s78, %s80
      %p87 = scmp.eq.s32.totalorder %s23, 1
      %p88 = por %p86, %p87
      %p89 = scmp.ne.s32.totalorder %s80, %s81
      %p90 = scmp.eq.s32.totalorder %s23, 0
      %p91 = por %p89, %p90
      %p92 = scmp.ne.s32.totalorder %s80, %s81
      %p93 = scmp.eq.s32.totalorder %s24, 1
      %p94 = por %p92, %p93
      %p96 = scmp.ne.s32.totalorder %s81, %s95
      %p97 = scmp.eq.s32.totalorder %s24, 0
      %p98 = por %p96, %p97
      %s100 = sadd.s32 %s99, 1
      %p103 = scmp.eq.s32.totalorder %s18, 1
      %p104 = scmp.ne.s32.totalorder %s99, %s101
      %p105 = scmp.eq.s32.totalorder %s18, 0
      %p106 = por %p104, %p105
      %p107 = scmp.ne.s32.totalorder %s99, %s101
      %p108 = scmp.eq.s32.totalorder %s23, 1
      %p109 = por %p107, %p108
      %p110 = scmp.ne.s32.totalorder %s101, %s102
      %p111 = scmp.eq.s32.totalorder %s23, 0
      %p112 = por %p110, %p111
      %p113 = scmp.ne.s32.totalorder %s101, %s102
      %p114 = scmp.eq.s32.totalorder %s24, 1
      %p115 = por %p113, %p114
      %p117 = scmp.ne.s32.totalorder %s102, %s116
      %p118 = scmp.eq.s32.totalorder %s24, 0
      %p119 = por %p117, %p118
      %s121 = sadd.s32 %s120, 1
      %p124 = scmp.eq.s32.totalorder %s18, 1
      %p125 = scmp.ne.s32.totalorder %s120, %s122
      %p126 = scmp.eq.s32.totalorder %s18, 0
      %p127 = por %p125, %p126
      %p128 = scmp.ne.s32.totalorder %s120, %s122
      %p129 = scmp.eq.s32.totalorder %s23, 1
      %p130 = por %p128, %p129
      %p131 = scmp.ne.s32.totalorder %s122, %s123
      %p132 = scmp.eq.s32.totalorder %s23, 0
      %p133 = por %p131, %p132
      %p134 = scmp.ne.s32.totalorder %s122, %s123
      %p135 = scmp.eq.s32.totalorder %s24, 1
      %p136 = por %p134, %p135
      %p138 = scmp.ne.s32.totalorder %s123, %s137
      %p139 = scmp.eq.s32.totalorder %s24, 0
      %p140 = por %p138, %p139
      %s142 = sadd.s32 %s141, 1
      %p145 = scmp.eq.s32.totalorder %s18, 1
      %p146 = scmp.ne.s32.totalorder %s141, %s143
      %p147 = scmp.eq.s32.totalorder %s18, 0
      %p148 = por %p146, %p147
      %p149 = scmp.ne.s32.totalorder %s141, %s143
      %p150 = scmp.eq.s32.totalorder %s23, 1
      %p151 = por %p149, %p150
      %p152 = scmp.ne.s32.totalorder %s143, %s144
      %p153 = scmp.eq.s32.totalorder %s23, 0
      %p154 = por %p152, %p153
      %p155 = scmp.ne.s32.totalorder %s143, %s144
      %p156 = scmp.eq.s32.totalorder %s24, 1
      %p157 = por %p155, %p156
      %p159 = scmp.ne.s32.totalorder %s144, %s158
      %p160 = scmp.eq.s32.totalorder %s24, 0
      %p161 = por %p159, %p160
      %s162 = ssub.s32 %s18, %s25
      %p163 = scmp.eq.s32.totalorder %s162, 0
      %s165 = sadd.s32 %s164, 1
      %s166 = scalar_select %p163, %s164, %s165
      %p169 = pneg %p163
      %p170 = scmp.eq.s32.totalorder %s18, 1
      %p171 = por %p169, %p170
      %p172 = scmp.ne.s32.totalorder %s164, %s167
      %p173 = scmp.eq.s32.totalorder %s18, 0
      %p174 = por %p172, %p173
      %p175 = scmp.ne.s32.totalorder %s164, %s167
      %p176 = scmp.eq.s32.totalorder %s23, 1
      %p177 = por %p175, %p176
      %p178 = scmp.ne.s32.totalorder %s167, %s168
      %p179 = scmp.eq.s32.totalorder %s23, 0
      %p180 = por %p178, %p179
      %p181 = scmp.ne.s32.totalorder %s167, %s168
      %p182 = scmp.eq.s32.totalorder %s24, 1
      %p183 = por %p181, %p182
      %p185 = scmp.ne.s32.totalorder %s168, %s184
      %p186 = scmp.eq.s32.totalorder %s24, 0
      %p187 = por %p185, %p186
      %s188 = ssub.s32 %s18, %s25
      %p189 = scmp.eq.s32.totalorder %s188, 0
      %s191 = sadd.s32 %s190, 1
      %s192 = scalar_select %p189, %s190, %s191
      %p195 = pneg %p189
      %p196 = scmp.eq.s32.totalorder %s18, 1
      %p197 = por %p195, %p196
      %p198 = scmp.ne.s32.totalorder %s190, %s193
      %p199 = scmp.eq.s32.totalorder %s18, 0
      %p200 = por %p198, %p199
      %p201 = scmp.ne.s32.totalorder %s190, %s193
      %p202 = scmp.eq.s32.totalorder %s23, 1
      %p203 = por %p201, %p202
      %p204 = scmp.ne.s32.totalorder %s193, %s194
      %p205 = scmp.eq.s32.totalorder %s23, 0
      %p206 = por %p204, %p205
      %p207 = scmp.ne.s32.totalorder %s193, %s194
      %p208 = scmp.eq.s32.totalorder %s24, 1
      %p209 = por %p207, %p208
      %p211 = scmp.ne.s32.totalorder %s194, %s210
      %p212 = scmp.eq.s32.totalorder %s24, 0
      %p213 = por %p211, %p212
      %s214 = ssub.s32 %s18, %s25
      %p215 = scmp.eq.s32.totalorder %s214, 0
      %s217 = sadd.s32 %s216, 1
      %s218 = scalar_select %p215, %s216, %s217
      %p221 = pneg %p215
      %p222 = scmp.eq.s32.totalorder %s18, 1
      %p223 = por %p221, %p222
      %p224 = scmp.ne.s32.totalorder %s216, %s219
      %p225 = scmp.eq.s32.totalorder %s18, 0
      %p226 = por %p224, %p225
      %p227 = scmp.ne.s32.totalorder %s216, %s219
      %p228 = scmp.eq.s32.totalorder %s23, 1
      %p229 = por %p227, %p228
      %p230 = scmp.ne.s32.totalorder %s219, %s220
      %p231 = scmp.eq.s32.totalorder %s23, 0
      %p232 = por %p230, %p231
      %p233 = scmp.ne.s32.totalorder %s219, %s220
      %p234 = scmp.eq.s32.totalorder %s24, 1
      %p235 = por %p233, %p234
      %p237 = scmp.ne.s32.totalorder %s220, %s236
      %p238 = scmp.eq.s32.totalorder %s24, 0
      %p239 = por %p237, %p238
      %p240 = scmp.le.s32.totalorder 1, %s18
      %p241 = scmp.lt.s32.totalorder %s18, 3
      %p242 = pnand %p240, %p241
      %p243 = pneg %p242
      // Predicated region
      $region9: #{transformer_forward.1} parent=5 // pred_check
        _
      $region10: #{transformer_forward.1} parent=5 // pred_check_branch
        %245 = sbr.rel (%p242) target = $region12
      $region11: #{transformer_forward.1} parent=5 // pred_region
        %s246 = ssub.s32 %s18, 1
        // Predicated region
        $region13: #{transformer_forward.1} parent=11 // pred_check
          %p247 = pneg %p91
        $region14: #{transformer_forward.1} parent=11 // pred_check_branch
          %249 = sbr.rel (%p247) target = $region16
        $region15: #{transformer_forward.1} parent=11 // pred_region
          _
        $region16: #{transformer_forward.1} parent=11 // pred_fallthru
          _
        // Predicated region
        $region17: #{transformer_forward.1} parent=11 // pred_check
          %p250 = pneg %p112
        $region18: #{transformer_forward.1} parent=11 // pred_check_branch
          %252 = sbr.rel (%p250) target = $region20
        $region19: #{transformer_forward.1} parent=11 // pred_region
          _
        $region20: #{transformer_forward.1} parent=11 // pred_fallthru
          _
        // Predicated region
        $region21: #{transformer_forward.1} parent=11 // pred_check
          %p253 = pneg %p133
        $region22: #{transformer_forward.1} parent=11 // pred_check_branch
          %255 = sbr.rel (%p253) target = $region24
        $region23: #{transformer_forward.1} parent=11 // pred_region
          _
        $region24: #{transformer_forward.1} parent=11 // pred_fallthru
          _
        // Predicated region
        $region25: #{transformer_forward.1} parent=11 // pred_check
          %p256 = pneg %p154
        $region26: #{transformer_forward.1} parent=11 // pred_check_branch
          %258 = sbr.rel (%p256) target = $region28
        $region27: #{transformer_forward.1} parent=11 // pred_region
          _
        $region28: #{transformer_forward.1} parent=11 // pred_fallthru
          _
      $region12: #{transformer_forward.1} parent=5 // pred_fallthru
        _
      %p259 = scmp.lt.s32.totalorder %s18, 2
      // Predicated region
      $region29: #{transformer_forward.1} parent=5 // pred_check
        %p260 = pneg %p259
      $region30: #{transformer_forward.1} parent=5 // pred_check_branch
        %262 = sbr.rel (%p260) target = $region32
      $region31: #{transformer_forward.1} parent=5 // pred_region
        // Predicated region
        $region33: #{transformer_forward.1} parent=31 // pred_check
          %p263 = pneg %p38
        $region34: #{transformer_forward.1} parent=31 // pred_check_branch
          %265 = sbr.rel (%p263) target = $region36
        $region35: #{transformer_forward.1} parent=31 // pred_region
          %p266 = scmp.lt.s32.totalorder %s18, 1
          %s267 = scalar_select %p266, %s18, 1
          %s268 = smul.addr %s267, 3
          %s269 = smul.addr %s268, 8
          %s270 = scalar_lea.vmem %s0, %s269
        $region36: #{transformer_forward.1} parent=31 // pred_fallthru
          _
        // Predicated region
        $region37: #{transformer_forward.1} parent=31 // pred_check
          %p271 = pneg %p64
        $region38: #{transformer_forward.1} parent=31 // pred_check_branch
          %273 = sbr.rel (%p271) target = $region40
        $region39: #{transformer_forward.1} parent=31 // pred_region
          %p274 = scmp.lt.s32.totalorder %s18, 1
          %s275 = scalar_select %p274, %s18, 1
          %s276 = scalar_lea.vmem %s1, %s275
        $region40: #{transformer_forward.1} parent=31 // pred_fallthru
          _
      $region32: #{transformer_forward.1} parent=5 // pred_fallthru
        _
      %p277 = scmp.le.s32.totalorder 1, %s18
      %p278 = scmp.lt.s32.totalorder %s18, 3
      %p279 = pnand %p277, %p278
      %p280 = pneg %p279
      // Predicated region
      $region41: #{transformer_forward.1} parent=5 // pred_check
        _
      $region42: #{transformer_forward.1} parent=5 // pred_check_branch
        %282 = sbr.rel (%p279) target = $region44
      $region43: #{transformer_forward.1} parent=5 // pred_region
        %s283 = ssub.s32 %s18, 1
        %p284 = scmp.lt.s32.totalorder %s23, 1
        %s285 = scalar_select %p284, %s23, 1
        %s286 = smul.addr %s285, 3
        %s287 = smul.addr %s286, 8
        %s288 = scalar_lea.vmem %s0, %s287
        %p289 = pneg %p44
        %p290 = pneg %p41
        %p291 = scmp.lt.s32.totalorder %s23, 1
        %s292 = scalar_select %p291, %s23, 1
        %s293 = scalar_lea.vmem %s1, %s292
        %p294 = pneg %p70
        %p295 = pneg %p67
        %p296 = pneg %p91
        %p297 = pneg %p88
        %p298 = pneg %p112
        %p299 = pneg %p109
        %p300 = pneg %p133
        %p301 = pneg %p130
        %p302 = pneg %p154
        %p303 = pneg %p151
        %p304 = pneg %p180
        %p305 = pneg %p177
        %s306 = sand.u32 %s167, 1
        %s307 = scalar_lea.sflag [#allocation3], %s306
        %s308 = sand.u32 %s167, 1
        %s309 = smul.addr %s308, 8
        %s310 = scalar_lea.vmem [#allocation2], %s309
        %p311 = pneg %p206
        %p312 = pneg %p203
        %p313 = scmp.lt.s32.totalorder %s23, 1
        %s314 = scalar_select %p313, %s23, 1
        %s315 = smul.addr %s314, 8
        %s316 = scalar_lea.vmem %s7, %s315
        %p317 = pneg %p232
        %p318 = pneg %p229
        %p319 = scmp.lt.s32.totalorder %s23, 1
        %s320 = scalar_select %p319, %s23, 1
        %s321 = smul.addr %s320, 8
        %s322 = scalar_lea.vmem %s8, %s321
        %p323 = scmp.lt.s32.totalorder %s23, 1
        %s324 = scalar_select %p323, %s23, 1
        %s325 = smul.addr %s324, 3
        %s326 = smul.addr %s325, 8
        %s327 = scalar_lea.vmem %s0, %s326
        %p328 = scmp.lt.s32.totalorder %s23, 1
        %s329 = scalar_select %p328, %s23, 1
        %s330 = scalar_lea.vmem %s1, %s329
        %p331 = scmp.lt.s32.totalorder %s23, 1
        %s332 = scalar_select %p331, %s23, 1
        %s333 = smul.addr %s332, 8
        %s334 = scalar_lea.vmem %s7, %s333
        %p335 = scmp.lt.s32.totalorder %s23, 1
        %s336 = scalar_select %p335, %s23, 1
        %s337 = smul.addr %s336, 8
        %s338 = scalar_lea.vmem %s8, %s337
        %v339 = vld [vmem:[%s2] sm:$0xff]
        %v340 = vld [vmem:[%s2 + $0x8] sm:$0xff]
        %v341 = vld [vmem:[%s2 + $0x10] sm:$0xff]
        %v342 = vld [vmem:[%s2 + $0x18] sm:$0xff]
        %v343 = vld [vmem:[%s2 + $0x20] sm:$0xff]
        %v344 = vld [vmem:[%s2 + $0x28] sm:$0xff]
        %v345 = vld [vmem:[%s2 + $0x30] sm:$0xff]
        %v346 = vld [vmem:[%s2 + $0x38] sm:$0xff]
        %v347 = vld [vmem:[%s2 + $0x40] sm:$0xff]
        %v348 = vld [vmem:[%s2 + $0x48] sm:$0xff]
        %v349 = vld [vmem:[%s2 + $0x50] sm:$0xff]
        %v350 = vld [vmem:[%s2 + $0x58] sm:$0xff]
        %v351 = vld [vmem:[%s2 + $0x60] sm:$0xff]
        %v352 = vld [vmem:[%s2 + $0x68] sm:$0xff]
        %v353 = vld [vmem:[%s2 + $0x70] sm:$0xff]
        %v354 = vld [vmem:[%s2 + $0x78] sm:$0xff]
        %v355 = vld [vmem:[%s330] sm:$0x1]
        %v356 = vsub.f32 1.0, %v355
        %v357 = vmul.f32 %v356, -1e+09
        %v358 = vlaneseq
        %v359 = vshrl.u32 %v358, 7
        %v360 = vlaneseq
        %v361 = vand.u32 %v360, 127
        %vm362 = vcmp.le.s32.totalorder %v361, %v359
        %v363 = vsel %vm362, 0.0, -1e+09
        %v364 = vld [vmem:[%s327] sm:$0xff]
        %v365 = vld [vmem:[%s327 + $0x8] sm:$0xff]
        %v366 = vld [vmem:[%s327 + $0x10] sm:$0xff]
        %367 = vset.pattern.permute.xlu0 0
        %368 = vperm.xlu0 %367, %v364
        %v369 = vpop.permute.xlu0 %368
        %vm370 = vcmp.eq.s32.totalorder %v361, %v369
        %v371 = vsel %vm370, 1, 0
        %v372 = vcvt.s32.f32 %v371
        %373 = vmatprep.subr.mxu0 0.0
        %374 = vmatpush1.msra.mxu0 %v339
        %375 = vmatprep.subr.mxu0 0.0
        %376 = vmatpush1.msra.mxu0 %v340
        %377 = vmatprep.subr.mxu0 0.0
        %378 = vmatpush1.msra.mxu0 %v341
        %379 = vmatprep.subr.mxu0 0.0
        %380 = vmatpush1.msra.mxu0 %v342
        %381 = vmatprep.subr.mxu0 0.0
        %382 = vmatpush1.msra.mxu0 %v343
        %383 = vmatprep.subr.mxu0 0.0
        %384 = vmatpush1.msra.mxu0 %v344
        %385 = vmatprep.subr.mxu0 0.0
        %386 = vmatpush1.msra.mxu0 %v345
        %387 = vmatprep.subr.mxu0 0.0
        %388 = vmatpush1.msra.mxu0 %v346
        %389 = vmatprep.subr.mxu0 0.0
        %390 = vmatpush1.msra.mxu0 %v347
        %391 = vmatprep.subr.mxu0 0.0
        %392 = vmatpush1.msra.mxu0 %v348
        %393 = vmatprep.subr.mxu0 0.0
        %394 = vmatpush1.msra.mxu0 %v349
        %395 = vmatprep.subr.mxu0 0.0
        %396 = vmatpush1.msra.mxu0 %v350
        %397 = vmatprep.subr.mxu0 0.0
        %398 = vmatpush1.msra.mxu0 %v351
        %399 = vmatprep.subr.mxu0 0.0
        %400 = vmatpush1.msra.mxu0 %v352
        %401 = vmatprep.subr.mxu0 0.0
        %402 = vmatpush1.msra.mxu0 %v353
        %403 = vmatprep.subr.mxu0 0.0
        %404 = vmatpush1.msra.mxu0 %v354
        %405 = vmatprep.subr.mxu0 0.0
        %406 = vmatpush1.msra.mxu0 0.0
        %407 = vmatprep.subr.mxu0 0.0
        %408 = vmatpush1.msra.mxu0 0.0
        %409 = vmatprep.subr.mxu0 0.0
        %410 = vmatpush1.msra.mxu0 0.0
        %411 = vmatprep.subr.mxu0 0.0
        %412 = vmatpush1.msra.mxu0 0.0
        %413 = vmatprep.subr.mxu0 0.0
        %414 = vmatpush1.msra.mxu0 0.0
        %415 = vmatprep.subr.mxu0 0.0
        %416 = vmatpush1.msra.mxu0 0.0
        %417 = vmatprep.subr.mxu0 0.0
        %418 = vmatpush1.msra.mxu0 0.0
        %419 = vmatprep.subr.mxu0 0.0
        %420 = vmatpush1.msra.mxu0 0.0
        %421 = vmatprep.subr.mxu0 0.0
        %422 = vmatpush1.msra.mxu0 0.0
        %423 = vmatprep.subr.mxu0 0.0
        %424 = vmatpush1.msra.mxu0 0.0
        %425 = vmatprep.subr.mxu0 0.0
        %426 = vmatpush1.msra.mxu0 0.0
        %427 = vmatprep.subr.mxu0 0.0
        %428 = vmatpush1.msra.mxu0 0.0
        %429 = vmatprep.subr.mxu0 0.0
        %430 = vmatpush1.msra.mxu0 0.0
        %431 = vmatprep.subr.mxu0 0.0
        %432 = vmatpush1.msra.mxu0 0.0
        %433 = vmatprep.subr.mxu0 0.0
        %434 = vmatpush1.msra.mxu0 0.0
        %435 = vmatprep.subr.mxu0 0.0
        %436 = vmatpush1.msra.mxu0 0.0
        %437 = vmatprep.mubr.f32.mxu0 0.0
        %438 = vmatmul.mubr.f32.gmra.mrb[0].mxu0 %v372
        %v439 = vpop.f32.mrb[0].mxu0
        %v440 = vadd.f32 0.0, %v439
        %v441 = vpop.f32.mrb[0].mxu0
        %442 = vdwg.mxu0
        %v443 = vld [vmem:[%s3] sm:$0x1]
        %v444 = vmul.f32 %v440, %v440
        %vm445 = vcmask 261120
        %v446 = vsel %vm445, %v444, 0.0
        %447 = vadd.xlane.f32.xlu0 %v446
        %v448 = vpop.xlane.xlu0 %447
        %v449 = vrcp.pop 32.0
        %v450 = vmul.f32 %v448, %v449
        %v451 = vadd.f32 %v450, 1e-06
        %v452 = vrsqrt.pop %v451
        %v453 = vmul.f32 %v440, %v452
        %v454 = vlaneseq
        %v455 = vshrl.u32 %v454, 7
        %v456 = vsub.s32 0, %v455
        %v457 = vrot.slane %v443, %v456
        %v458 = vmul.f32 %v453, %v457
        %v459 = vld [vmem:[%s4] sm:$0xff]
        %v460 = vld [vmem:[%s4 + $0x20] sm:$0xff]
        %v461 = vld [vmem:[%s4 + $0x40] sm:$0xff]
        %v462 = vld [vmem:[%s4 + $0x60] sm:$0xff]
        %v464 = vsel %vm445, %v458, 0
        %466 = vmatprep.subr.mxu0 0.0
        %467 = vmatpush1.msra.mxu0 %v459
        %468 = vmatprep.subr.mxu0 0.0
        %469 = vmatpush1.msra.mxu0 %v460
        %470 = vmatprep.subr.mxu0 0.0
        %471 = vmatpush1.msra.mxu0 %v461
        %472 = vmatprep.subr.mxu0 0.0
        %473 = vmatpush1.msra.mxu0 %v462
        %474 = vmatprep.subr.mxu0 0.0
        %475 = vmatpush1.msra.mxu0 0.0
        %476 = vmatprep.subr.mxu0 0.0
        %477 = vmatpush1.msra.mxu0 0.0
        %478 = vmatprep.subr.mxu0 0.0
        %479 = vmatpush1.msra.mxu0 0.0
        %480 = vmatprep.subr.mxu0 0.0
        %481 = vmatpush1.msra.mxu0 0.0
        %482 = vmatprep.subr.mxu0 0.0
        %483 = vmatpush1.msra.mxu0 0.0
        %484 = vmatprep.subr.mxu0 0.0
        %485 = vmatpush1.msra.mxu0 0.0
        %486 = vmatprep.subr.mxu0 0.0
        %487 = vmatpush1.msra.mxu0 0.0
        %488 = vmatprep.subr.mxu0 0.0
        %489 = vmatpush1.msra.mxu0 0.0
        %490 = vmatprep.subr.mxu0 0.0
        %491 = vmatpush1.msra.mxu0 0.0
        %492 = vmatprep.subr.mxu0 0.0
        %493 = vmatpush1.msra.mxu0 0.0
        %494 = vmatprep.subr.mxu0 0.0
        %495 = vmatpush1.msra.mxu0 0.0
        %496 = vmatprep.subr.mxu0 0.0
        %497 = vmatpush1.msra.mxu0 0.0
        %498 = vmatprep.subr.mxu0 0.0
        %499 = vmatpush1.msra.mxu0 0.0
        %500 = vmatprep.subr.mxu0 0.0
        %501 = vmatpush1.msra.mxu0 0.0
        %502 = vmatprep.subr.mxu0 0.0
        %503 = vmatpush1.msra.mxu0 0.0
        %504 = vmatprep.subr.mxu0 0.0
        %505 = vmatpush1.msra.mxu0 0.0
        %506 = vmatprep.subr.mxu0 0.0
        %507 = vmatpush1.msra.mxu0 0.0
        %508 = vmatprep.subr.mxu0 0.0
        %509 = vmatpush1.msra.mxu0 0.0
        %510 = vmatprep.subr.mxu0 0.0
        %511 = vmatpush1.msra.mxu0 0.0
        %512 = vmatprep.subr.mxu0 0.0
        %513 = vmatpush1.msra.mxu0 0.0
        %514 = vmatprep.subr.mxu0 0.0
        %515 = vmatpush1.msra.mxu0 0.0
        %516 = vmatprep.subr.mxu0 0.0
        %517 = vmatpush1.msra.mxu0 0.0
        %518 = vmatprep.subr.mxu0 0.0
        %519 = vmatpush1.msra.mxu0 0.0
        %520 = vmatprep.subr.mxu0 0.0
        %521 = vmatpush1.msra.mxu0 0.0
        %522 = vmatprep.subr.mxu0 0.0
        %523 = vmatpush1.msra.mxu0 0.0
        %524 = vmatprep.subr.mxu0 0.0
        %525 = vmatpush1.msra.mxu0 0.0
        %526 = vmatprep.subr.mxu0 0.0
        %527 = vmatpush1.msra.mxu0 0.0
        %528 = vmatprep.subr.mxu0 0.0
        %529 = vmatpush1.msra.mxu0 0.0
        %530 = vmatprep.mubr.f32.mxu0 0.0
        %531 = vmatmul.mubr.f32.gmra.mrb[0].mxu0 %v464
        %v532 = vpop.f32.mrb[0].mxu0
        %v533 = vadd.f32 0.0, %v532
        %v534 = vpop.f32.mrb[0].mxu0
        %535 = vdwg.mxu0
        %v537 = vlaneseq
        %v538 = vshrl.u32 %v537, 7
        %v539 = vsub.s32 0, %v538
        %v540 = vrot.slane %v357, %v539
        %543 = vrot.lane.b32.xlu0 %v533, 96
        %v544 = vpop.permute.xlu0 %543
        %vm545 = vcmask 64512
        %v546 = vsel %vm545, %v533, 0
        %v548 = vsel %vm545, %v544, 0
        %550 = vmatprep.subr.mxu0 0.0
        %551 = vmatpush1.xpose.msra.mxu0 %v548
        %552 = vmatprep.subr.mxu0 0.0
        %553 = vmatpush1.xpose.msra.mxu0 0.0
        %554 = vmatprep.subr.mxu0 0.0
        %555 = vmatpush1.xpose.msra.mxu0 0.0
        %556 = vmatprep.subr.mxu0 0.0
        %557 = vmatpush1.xpose.msra.mxu0 0.0
        %558 = vmatprep.subr.mxu0 0.0
        %559 = vmatpush1.xpose.msra.mxu0 0.0
        %560 = vmatprep.subr.mxu0 0.0
        %561 = vmatpush1.xpose.msra.mxu0 0.0
        %562 = vmatprep.subr.mxu0 0.0
        %563 = vmatpush1.xpose.msra.mxu0 0.0
        %564 = vmatprep.subr.mxu0 0.0
        %565 = vmatpush1.xpose.msra.mxu0 0.0
        %566 = vmatprep.subr.mxu0 0.0
        %567 = vmatpush1.xpose.msra.mxu0 0.0
        %568 = vmatprep.subr.mxu0 0.0
        %569 = vmatpush1.xpose.msra.mxu0 0.0
        %570 = vmatprep.subr.mxu0 0.0
        %571 = vmatpush1.xpose.msra.mxu0 0.0
        %572 = vmatprep.subr.mxu0 0.0
        %573 = vmatpush1.xpose.msra.mxu0 0.0
        %574 = vmatprep.subr.mxu0 0.0
        %575 = vmatpush1.xpose.msra.mxu0 0.0
        %576 = vmatprep.subr.mxu0 0.0
        %577 = vmatpush1.xpose.msra.mxu0 0.0
        %578 = vmatprep.subr.mxu0 0.0
        %579 = vmatpush1.xpose.msra.mxu0 0.0
        %580 = vmatprep.subr.mxu0 0.0
        %581 = vmatpush1.xpose.msra.mxu0 0.0
        %582 = vmatprep.subr.mxu0 0.0
        %583 = vmatpush1.xpose.msra.mxu0 0.0
        %584 = vmatprep.subr.mxu0 0.0
        %585 = vmatpush1.xpose.msra.mxu0 0.0
        %586 = vmatprep.subr.mxu0 0.0
        %587 = vmatpush1.xpose.msra.mxu0 0.0
        %588 = vmatprep.subr.mxu0 0.0
        %589 = vmatpush1.xpose.msra.mxu0 0.0
        %590 = vmatprep.subr.mxu0 0.0
        %591 = vmatpush1.xpose.msra.mxu0 0.0
        %592 = vmatprep.subr.mxu0 0.0
        %593 = vmatpush1.xpose.msra.mxu0 0.0
        %594 = vmatprep.subr.mxu0 0.0
        %595 = vmatpush1.xpose.msra.mxu0 0.0
        %596 = vmatprep.subr.mxu0 0.0
        %597 = vmatpush1.xpose.msra.mxu0 0.0
        %598 = vmatprep.subr.mxu0 0.0
        %599 = vmatpush1.xpose.msra.mxu0 0.0
        %600 = vmatprep.subr.mxu0 0.0
        %601 = vmatpush1.xpose.msra.mxu0 0.0
        %602 = vmatprep.subr.mxu0 0.0
        %603 = vmatpush1.xpose.msra.mxu0 0.0
        %604 = vmatprep.subr.mxu0 0.0
        %605 = vmatpush1.xpose.msra.mxu0 0.0
        %606 = vmatprep.subr.mxu0 0.0
        %607 = vmatpush1.xpose.msra.mxu0 0.0
        %608 = vmatprep.subr.mxu0 0.0
        %609 = vmatpush1.xpose.msra.mxu0 0.0
        %610 = vmatprep.subr.mxu0 0.0
        %611 = vmatpush1.xpose.msra.mxu0 0.0
        %612 = vmatprep.subr.mxu0 0.0
        %613 = vmatpush1.xpose.msra.mxu0 0.0
        %614 = vmatprep.mubr.f32.mxu0 0.0
        %615 = vmatmul.mubr.f32.gmra.mrb[0].mxu0 %v546
        %v616 = vpop.f32.mrb[0].mxu0
        %v617 = vadd.f32 %v540, %v616
        %v618 = vpop.f32.mrb[0].mxu0
        %619 = vdwg.mxu0
        %v620 = vsel %vm545, %v617, -inf
        %621 = vmax.xlane.f32.xlu0 %v620
        %v622 = vpop.xlane.xlu0 %621
        %v623 = vsub.f32 %v617, %v622
        %v624 = vmul.f32 %v623, 1.442695
        %v625 = vpow.pop %v624
        %v626 = vsel %vm545, %v625, 0.0
        %627 = vadd.xlane.f32.xlu0 %v626
        %v628 = vpop.xlane.xlu0 %627
        %v629 = vrcp.pop %v628
        %v630 = vmul.f32 %v625, %v629
        %631 = vrot.lane.b32.xlu0 %v533, 64
        %v632 = vpop.permute.xlu0 %631
        %v635 = vsel %vm545, %v630, 0
        %637 = vmatprep.subr.mxu0 0.0
        %638 = vmatpush1.msra.mxu0 %v632
        %639 = vmatprep.subr.mxu0 0.0
        %640 = vmatpush1.msra.mxu0 0.0
        %641 = vmatprep.subr.mxu0 0.0
        %642 = vmatpush1.msra.mxu0 0.0
        %643 = vmatprep.subr.mxu0 0.0
        %644 = vmatpush1.msra.mxu0 0.0
        %645 = vmatprep.subr.mxu0 0.0
        %646 = vmatpush1.msra.mxu0 0.0
        %647 = vmatprep.subr.mxu0 0.0
        %648 = vmatpush1.msra.mxu0 0.0
        %649 = vmatprep.subr.mxu0 0.0
        %650 = vmatpush1.msra.mxu0 0.0
        %651 = vmatprep.subr.mxu0 0.0
        %652 = vmatpush1.msra.mxu0 0.0
        %653 = vmatprep.subr.mxu0 0.0
        %654 = vmatpush1.msra.mxu0 0.0
        %655 = vmatprep.subr.mxu0 0.0
        %656 = vmatpush1.msra.mxu0 0.0
        %657 = vmatprep.subr.mxu0 0.0
        %658 = vmatpush1.msra.mxu0 0.0
        %659 = vmatprep.subr.mxu0 0.0
        %660 = vmatpush1.msra.mxu0 0.0
        %661 = vmatprep.subr.mxu0 0.0
        %662 = vmatpush1.msra.mxu0 0.0
        %663 = vmatprep.subr.mxu0 0.0
        %664 = vmatpush1.msra.mxu0 0.0
        %665 = vmatprep.subr.mxu0 0.0
        %666 = vmatpush1.msra.mxu0 0.0
        %667 = vmatprep.subr.mxu0 0.0
        %668 = vmatpush1.msra.mxu0 0.0
        %669 = vmatprep.subr.mxu0 0.0
        %670 = vmatpush1.msra.mxu0 0.0
        %671 = vmatprep.subr.mxu0 0.0
        %672 = vmatpush1.msra.mxu0 0.0
        %673 = vmatprep.subr.mxu0 0.0
        %674 = vmatpush1.msra.mxu0 0.0
        %675 = vmatprep.subr.mxu0 0.0
        %676 = vmatpush1.msra.mxu0 0.0
        %677 = vmatprep.subr.mxu0 0.0
        %678 = vmatpush1.msra.mxu0 0.0
        %679 = vmatprep.subr.mxu0 0.0
        %680 = vmatpush1.msra.mxu0 0.0
        %681 = vmatprep.subr.mxu0 0.0
        %682 = vmatpush1.msra.mxu0 0.0
        %683 = vmatprep.subr.mxu0 0.0
        %684 = vmatpush1.msra.mxu0 0.0
        %685 = vmatprep.subr.mxu0 0.0
        %686 = vmatpush1.msra.mxu0 0.0
        %687 = vmatprep.subr.mxu0 0.0
        %688 = vmatpush1.msra.mxu0 0.0
        %689 = vmatprep.subr.mxu0 0.0
        %690 = vmatpush1.msra.mxu0 0.0
        %691 = vmatprep.subr.mxu0 0.0
        %692 = vmatpush1.msra.mxu0 0.0
        %693 = vmatprep.subr.mxu0 0.0
        %694 = vmatpush1.msra.mxu0 0.0
        %695 = vmatprep.subr.mxu0 0.0
        %696 = vmatpush1.msra.mxu0 0.0
        %697 = vmatprep.subr.mxu0 0.0
        %698 = vmatpush1.msra.mxu0 0.0
        %699 = vmatprep.subr.mxu0 0.0
        %700 = vmatpush1.msra.mxu0 0.0
        %701 = vmatprep.mubr.f32.mxu0 0.0
        %702 = vmatmul.mubr.f32.gmra.mrb[0].mxu0 %v635
        %v703 = vpop.f32.mrb[0].mxu0
        %v704 = vadd.f32 0.0, %v703
        %v705 = vpop.f32.mrb[0].mxu0
        %706 = vdwg.mxu0
        %707 = vrot.lane.b32.xlu0 %v533, 120
        %v708 = vpop.permute.xlu0 %707
        %709 = vrot.lane.b32.xlu0 %v533, 88
        %v710 = vpop.permute.xlu0 %709
        %v711 = vsel %vm545, %v708, 0
        %v713 = vsel %vm545, %v710, 0
        %715 = vmatprep.subr.mxu0 0.0
        %716 = vmatpush1.xpose.msra.mxu0 %v713
        %717 = vmatprep.subr.mxu0 0.0
        %718 = vmatpush1.xpose.msra.mxu0 0.0
        %719 = vmatprep.subr.mxu0 0.0
        %720 = vmatpush1.xpose.msra.mxu0 0.0
        %721 = vmatprep.subr.mxu0 0.0
        %722 = vmatpush1.xpose.msra.mxu0 0.0
        %723 = vmatprep.subr.mxu0 0.0
        %724 = vmatpush1.xpose.msra.mxu0 0.0
        %725 = vmatprep.subr.mxu0 0.0
        %726 = vmatpush1.xpose.msra.mxu0 0.0
        %727 = vmatprep.subr.mxu0 0.0
        %728 = vmatpush1.xpose.msra.mxu0 0.0
        %729 = vmatprep.subr.mxu0 0.0
        %730 = vmatpush1.xpose.msra.mxu0 0.0
        %731 = vmatprep.subr.mxu0 0.0
        %732 = vmatpush1.xpose.msra.mxu0 0.0
        %733 = vmatprep.subr.mxu0 0.0
        %734 = vmatpush1.xpose.msra.mxu0 0.0
        %735 = vmatprep.subr.mxu0 0.0
        %736 = vmatpush1.xpose.msra.mxu0 0.0
        %737 = vmatprep.subr.mxu0 0.0
        %738 = vmatpush1.xpose.msra.mxu0 0.0
        %739 = vmatprep.subr.mxu0 0.0
        %740 = vmatpush1.xpose.msra.mxu0 0.0
        %741 = vmatprep.subr.mxu0 0.0
        %742 = vmatpush1.xpose.msra.mxu0 0.0
        %743 = vmatprep.subr.mxu0 0.0
        %744 = vmatpush1.xpose.msra.mxu0 0.0
        %745 = vmatprep.subr.mxu0 0.0
        %746 = vmatpush1.xpose.msra.mxu0 0.0
        %747 = vmatprep.subr.mxu0 0.0
        %748 = vmatpush1.xpose.msra.mxu0 0.0
        %749 = vmatprep.subr.mxu0 0.0
        %750 = vmatpush1.xpose.msra.mxu0 0.0
        %751 = vmatprep.subr.mxu0 0.0
        %752 = vmatpush1.xpose.msra.mxu0 0.0
        %753 = vmatprep.subr.mxu0 0.0
        %754 = vmatpush1.xpose.msra.mxu0 0.0
        %755 = vmatprep.subr.mxu0 0.0
        %756 = vmatpush1.xpose.msra.mxu0 0.0
        %757 = vmatprep.subr.mxu0 0.0
        %758 = vmatpush1.xpose.msra.mxu0 0.0
        %759 = vmatprep.subr.mxu0 0.0
        %760 = vmatpush1.xpose.msra.mxu0 0.0
        %761 = vmatprep.subr.mxu0 0.0
        %762 = vmatpush1.xpose.msra.mxu0 0.0
        %763 = vmatprep.subr.mxu0 0.0
        %764 = vmatpush1.xpose.msra.mxu0 0.0
        %765 = vmatprep.subr.mxu0 0.0
        %766 = vmatpush1.xpose.msra.mxu0 0.0
        %767 = vmatprep.subr.mxu0 0.0
        %768 = vmatpush1.xpose.msra.mxu0 0.0
        %769 = vmatprep.subr.mxu0 0.0
        %770 = vmatpush1.xpose.msra.mxu0 0.0
        %771 = vmatprep.subr.mxu0 0.0
        %772 = vmatpush1.xpose.msra.mxu0 0.0
        %773 = vmatprep.subr.mxu0 0.0
        %774 = vmatpush1.xpose.msra.mxu0 0.0
        %775 = vmatprep.subr.mxu0 0.0
        %776 = vmatpush1.xpose.msra.mxu0 0.0
        %777 = vmatprep.subr.mxu0 0.0
        %778 = vmatpush1.xpose.msra.mxu0 0.0
        %779 = vmatprep.mubr.f32.mxu0 0.0
        %780 = vmatmul.mubr.f32.gmra.mrb[0].mxu0 %v711
        %v781 = vpop.f32.mrb[0].mxu0
        %v782 = vadd.f32 %v540, %v781
        %v783 = vpop.f32.mrb[0].mxu0
        %784 = vdwg.mxu0
        %v785 = vsel %vm545, %v782, -inf
        %786 = vmax.xlane.f32.xlu0 %v785
        %v787 = vpop.xlane.xlu0 %786
        %v788 = vsub.f32 %v782, %v787
        %v789 = vmul.f32 %v788, 1.442695
        %v790 = vpow.pop %v789
        %v791 = vsel %vm545, %v790, 0.0
        %792 = vadd.xlane.f32.xlu0 %v791
        %v793 = vpop.xlane.xlu0 %792
        %v794 = vrcp.pop %v793
        %v795 = vmul.f32 %v790, %v794
        %796 = vrot.lane.b32.xlu0 %v533, 56
        %v797 = vpop.permute.xlu0 %796
        %v800 = vsel %vm545, %v795, 0
        %802 = vmatprep.subr.mxu0 0.0
        %803 = vmatpush1.msra.mxu0 %v797
        %804 = vmatprep.subr.mxu0 0.0
        %805 = vmatpush1.msra.mxu0 0.0
        %806 = vmatprep.subr.mxu0 0.0
        %807 = vmatpush1.msra.mxu0 0.0
        %808 = vmatprep.subr.mxu0 0.0
        %809 = vmatpush1.msra.mxu0 0.0
        %810 = vmatprep.subr.mxu0 0.0
        %811 = vmatpush1.msra.mxu0 0.0
        %812 = vmatprep.subr.mxu0 0.0
        %813 = vmatpush1.msra.mxu0 0.0
        %814 = vmatprep.subr.mxu0 0.0
        %815 = vmatpush1.msra.mxu0 0.0
        %816 = vmatprep.subr.mxu0 0.0
        %817 = vmatpush1.msra.mxu0 0.0
        %818 = vmatprep.subr.mxu0 0.0
        %819 = vmatpush1.msra.mxu0 0.0
        %820 = vmatprep.subr.mxu0 0.0
        %821 = vmatpush1.msra.mxu0 0.0
        %822 = vmatprep.subr.mxu0 0.0
        %823 = vmatpush1.msra.mxu0 0.0
        %824 = vmatprep.subr.mxu0 0.0
        %825 = vmatpush1.msra.mxu0 0.0
        %826 = vmatprep.subr.mxu0 0.0
        %827 = vmatpush1.msra.mxu0 0.0
        %828 = vmatprep.subr.mxu0 0.0
        %829 = vmatpush1.msra.mxu0 0.0
        %830 = vmatprep.subr.mxu0 0.0
        %831 = vmatpush1.msra.mxu0 0.0
        %832 = vmatprep.subr.mxu0 0.0
        %833 = vmatpush1.msra.mxu0 0.0
        %834 = vmatprep.subr.mxu0 0.0
        %835 = vmatpush1.msra.mxu0 0.0
        %836 = vmatprep.subr.mxu0 0.0
        %837 = vmatpush1.msra.mxu0 0.0
        %838 = vmatprep.subr.mxu0 0.0
        %839 = vmatpush1.msra.mxu0 0.0
        %840 = vmatprep.subr.mxu0 0.0
        %841 = vmatpush1.msra.mxu0 0.0
        %842 = vmatprep.subr.mxu0 0.0
        %843 = vmatpush1.msra.mxu0 0.0
        %844 = vmatprep.subr.mxu0 0.0
        %845 = vmatpush1.msra.mxu0 0.0
        %846 = vmatprep.subr.mxu0 0.0
        %847 = vmatpush1.msra.mxu0 0.0
        %848 = vmatprep.subr.mxu0 0.0
        %849 = vmatpush1.msra.mxu0 0.0
        %850 = vmatprep.subr.mxu0 0.0
        %851 = vmatpush1.msra.mxu0 0.0
        %852 = vmatprep.subr.mxu0 0.0
        %853 = vmatpush1.msra.mxu0 0.0
        %854 = vmatprep.subr.mxu0 0.0
        %855 = vmatpush1.msra.mxu0 0.0
        %856 = vmatprep.subr.mxu0 0.0
        %857 = vmatpush1.msra.mxu0 0.0
        %858 = vmatprep.subr.mxu0 0.0
        %859 = vmatpush1.msra.mxu0 0.0
        %860 = vmatprep.subr.mxu0 0.0
        %861 = vmatpush1.msra.mxu0 0.0
        %862 = vmatprep.subr.mxu0 0.0
        %863 = vmatpush1.msra.mxu0 0.0
        %864 = vmatprep.subr.mxu0 0.0
        %865 = vmatpush1.msra.mxu0 0.0
        %866 = vmatprep.mubr.f32.mxu0 0.0
        %867 = vmatmul.mubr.f32.gmra.mrb[0].mxu0 %v800
        %v868 = vpop.f32.mrb[0].mxu0
        %v869 = vadd.f32 0.0, %v868
        %v870 = vpop.f32.mrb[0].mxu0
        %871 = vdwg.mxu0
        %872 = vrot.lane.b32.xlu0 %v533, 112
        %v873 = vpop.permute.xlu0 %872
        %874 = vrot.lane.b32.xlu0 %v533, 80
        %v875 = vpop.permute.xlu0 %874
        %v876 = vsel %vm545, %v873, 0
        %v878 = vsel %vm545, %v875, 0
        %880 = vmatprep.subr.mxu0 0.0
        %881 = vmatpush1.xpose.msra.mxu0 %v878
        %882 = vmatprep.subr.mxu0 0.0
        %883 = vmatpush1.xpose.msra.mxu0 0.0
        %884 = vmatprep.subr.mxu0 0.0
        %885 = vmatpush1.xpose.msra.mxu0 0.0
        %886 = vmatprep.subr.mxu0 0.0
        %887 = vmatpush1.xpose.msra.mxu0 0.0
        %888 = vmatprep.subr.mxu0 0.0
        %889 = vmatpush1.xpose.msra.mxu0 0.0
        %890 = vmatprep.subr.mxu0 0.0
        %891 = vmatpush1.xpose.msra.mxu0 0.0
        %892 = vmatprep.subr.mxu0 0.0
        %893 = vmatpush1.xpose.msra.mxu0 0.0
        %894 = vmatprep.subr.mxu0 0.0
        %895 = vmatpush1.xpose.msra.mxu0 0.0
        %896 = vmatprep.subr.mxu0 0.0
        %897 = vmatpush1.xpose.msra.mxu0 0.0
        %898 = vmatprep.subr.mxu0 0.0
        %899 = vmatpush1.xpose.msra.mxu0 0.0
        %900 = vmatprep.subr.mxu0 0.0
        %901 = vmatpush1.xpose.msra.mxu0 0.0
        %902 = vmatprep.subr.mxu0 0.0
        %903 = vmatpush1.xpose.msra.mxu0 0.0
        %904 = vmatprep.subr.mxu0 0.0
        %905 = vmatpush1.xpose.msra.mxu0 0.0
        %906 = vmatprep.subr.mxu0 0.0
        %907 = vmatpush1.xpose.msra.mxu0 0.0
        %908 = vmatprep.subr.mxu0 0.0
        %909 = vmatpush1.xpose.msra.mxu0 0.0
        %910 = vmatprep.subr.mxu0 0.0
        %911 = vmatpush1.xpose.msra.mxu0 0.0
        %912 = vmatprep.subr.mxu0 0.0
        %913 = vmatpush1.xpose.msra.mxu0 0.0
        %914 = vmatprep.subr.mxu0 0.0
        %915 = vmatpush1.xpose.msra.mxu0 0.0
        %916 = vmatprep.subr.mxu0 0.0
        %917 = vmatpush1.xpose.msra.mxu0 0.0
        %918 = vmatprep.subr.mxu0 0.0
        %919 = vmatpush1.xpose.msra.mxu0 0.0
        %920 = vmatprep.subr.mxu0 0.0
        %921 = vmatpush1.xpose.msra.mxu0 0.0
        %922 = vmatprep.subr.mxu0 0.0
        %923 = vmatpush1.xpose.msra.mxu0 0.0
        %924 = vmatprep.subr.mxu0 0.0
        %925 = vmatpush1.xpose.msra.mxu0 0.0
        %926 = vmatprep.subr.mxu0 0.0
        %927 = vmatpush1.xpose.msra.mxu0 0.0
        %928 = vmatprep.subr.mxu0 0.0
        %929 = vmatpush1.xpose.msra.mxu0 0.0
        %930 = vmatprep.subr.mxu0 0.0
        %931 = vmatpush1.xpose.msra.mxu0 0.0
        %932 = vmatprep.subr.mxu0 0.0
        %933 = vmatpush1.xpose.msra.mxu0 0.0
        %934 = vmatprep.subr.mxu0 0.0
        %935 = vmatpush1.xpose.msra.mxu0 0.0
        %936 = vmatprep.subr.mxu0 0.0
        %937 = vmatpush1.xpose.msra.mxu0 0.0
        %938 = vmatprep.subr.mxu0 0.0
        %939 = vmatpush1.xpose.msra.mxu0 0.0
        %940 = vmatprep.subr.mxu0 0.0
        %941 = vmatpush1.xpose.msra.mxu0 0.0
        %942 = vmatprep.subr.mxu0 0.0
        %943 = vmatpush1.xpose.msra.mxu0 0.0
        %944 = vmatprep.mubr.f32.mxu0 0.0
        %945 = vmatmul.mubr.f32.gmra.mrb[0].mxu0 %v876
        %v946 = vpop.f32.mrb[0].mxu0
        %v947 = vadd.f32 %v540, %v946
        %v948 = vpop.f32.mrb[0].mxu0
        %949 = vdwg.mxu0
        %v950 = vsel %vm545, %v947, -inf
        %951 = vmax.xlane.f32.xlu0 %v950
        %v952 = vpop.xlane.xlu0 %951
        %v953 = vsub.f32 %v947, %v952
        %v954 = vmul.f32 %v953, 1.442695
        %v955 = vpow.pop %v954
        %v956 = vsel %vm545, %v955, 0.0
        %957 = vadd.xlane.f32.xlu0 %v956
        %v958 = vpop.xlane.xlu0 %957
        %v959 = vrcp.pop %v958
        %v960 = vmul.f32 %v955, %v959
        %961 = vrot.lane.b32.xlu0 %v533, 48
        %v962 = vpop.permute.xlu0 %961
        %v965 = vsel %vm545, %v960, 0
        %967 = vmatprep.subr.mxu0 0.0
        %968 = vmatpush1.msra.mxu0 %v962
        %969 = vmatprep.subr.mxu0 0.0
        %970 = vmatpush1.msra.mxu0 0.0
        %971 = vmatprep.subr.mxu0 0.0
        %972 = vmatpush1.msra.mxu0 0.0
        %973 = vmatprep.subr.mxu0 0.0
        %974 = vmatpush1.msra.mxu0 0.0
        %975 = vmatprep.subr.mxu0 0.0
        %976 = vmatpush1.msra.mxu0 0.0
        %977 = vmatprep.subr.mxu0 0.0
        %978 = vmatpush1.msra.mxu0 0.0
        %979 = vmatprep.subr.mxu0 0.0
        %980 = vmatpush1.msra.mxu0 0.0
        %981 = vmatprep.subr.mxu0 0.0
        %982 = vmatpush1.msra.mxu0 0.0
        %983 = vmatprep.subr.mxu0 0.0
        %984 = vmatpush1.msra.mxu0 0.0
        %985 = vmatprep.subr.mxu0 0.0
        %986 = vmatpush1.msra.mxu0 0.0
        %987 = vmatprep.subr.mxu0 0.0
        %988 = vmatpush1.msra.mxu0 0.0
        %989 = vmatprep.subr.mxu0 0.0
        %990 = vmatpush1.msra.mxu0 0.0
        %991 = vmatprep.subr.mxu0 0.0
        %992 = vmatpush1.msra.mxu0 0.0
        %993 = vmatprep.subr.mxu0 0.0
        %994 = vmatpush1.msra.mxu0 0.0
        %995 = vmatprep.subr.mxu0 0.0
        %996 = vmatpush1.msra.mxu0 0.0
        %997 = vmatprep.subr.mxu0 0.0
        %998 = vmatpush1.msra.mxu0 0.0
        %999 = vmatprep.subr.mxu0 0.0
        %1000 = vmatpush1.msra.mxu0 0.0
        %1001 = vmatprep.subr.mxu0 0.0
        %1002 = vmatpush1.msra.mxu0 0.0
        %1003 = vmatprep.subr.mxu0 0.0
        %1004 = vmatpush1.msra.mxu0 0.0
        %1005 = vmatprep.subr.mxu0 0.0
        %1006 = vmatpush1.msra.mxu0 0.0
        %1007 = vmatprep.subr.mxu0 0.0
        %1008 = vmatpush1.msra.mxu0 0.0
        %1009 = vmatprep.subr.mxu0 0.0
        %1010 = vmatpush1.msra.mxu0 0.0
        %1011 = vmatprep.subr.mxu0 0.0
        %1012 = vmatpush1.msra.mxu0 0.0
        %1013 = vmatprep.subr.mxu0 0.0
        %1014 = vmatpush1.msra.mxu0 0.0
        %1015 = vmatprep.subr.mxu0 0.0
        %1016 = vmatpush1.msra.mxu0 0.0
        %1017 = vmatprep.subr.mxu0 0.0
        %1018 = vmatpush1.msra.mxu0 0.0
        %1019 = vmatprep.subr.mxu0 0.0
        %1020 = vmatpush1.msra.mxu0 0.0
        %1021 = vmatprep.subr.mxu0 0.0
        %1022 = vmatpush1.msra.mxu0 0.0
        %1023 = vmatprep.subr.mxu0 0.0
        %1024 = vmatpush1.msra.mxu0 0.0
        %1025 = vmatprep.subr.mxu0 0.0
        %1026 = vmatpush1.msra.mxu0 0.0
        %1027 = vmatprep.subr.mxu0 0.0
        %1028 = vmatpush1.msra.mxu0 0.0
        %1029 = vmatprep.subr.mxu0 0.0
        %1030 = vmatpush1.msra.mxu0 0.0
        %1031 = vmatprep.mubr.f32.mxu0 0.0
        %1032 = vmatmul.mubr.f32.gmra.mrb[0].mxu0 %v965
        %v1033 = vpop.f32.mrb[0].mxu0
        %v1034 = vadd.f32 0.0, %v1033
        %v1035 = vpop.f32.mrb[0].mxu0
        %1036 = vdwg.mxu0
        %1037 = vrot.lane.b32.xlu0 %v533, 104
        %v1038 = vpop.permute.xlu0 %1037
        %1039 = vrot.lane.b32.xlu0 %v533, 72
        %v1040 = vpop.permute.xlu0 %1039
        %v1041 = vsel %vm545, %v1038, 0
        %v1043 = vsel %vm545, %v1040, 0
        %1045 = vmatprep.subr.mxu0 0.0
        %1046 = vmatpush1.xpose.msra.mxu0 %v1043
        %1047 = vmatprep.subr.mxu0 0.0
        %1048 = vmatpush1.xpose.msra.mxu0 0.0
        %1049 = vmatprep.subr.mxu0 0.0
        %1050 = vmatpush1.xpose.msra.mxu0 0.0
        %1051 = vmatprep.subr.mxu0 0.0
        %1052 = vmatpush1.xpose.msra.mxu0 0.0
        %1053 = vmatprep.subr.mxu0 0.0
        %1054 = vmatpush1.xpose.msra.mxu0 0.0
        %1055 = vmatprep.subr.mxu0 0.0
        %1056 = vmatpush1.xpose.msra.mxu0 0.0
        %1057 = vmatprep.subr.mxu0 0.0
        %1058 = vmatpush1.xpose.msra.mxu0 0.0
        %1059 = vmatprep.subr.mxu0 0.0
        %1060 = vmatpush1.xpose.msra.mxu0 0.0
        %1061 = vmatprep.subr.mxu0 0.0
        %1062 = vmatpush1.xpose.msra.mxu0 0.0
        %1063 = vmatprep.subr.mxu0 0.0
        %1064 = vmatpush1.xpose.msra.mxu0 0.0
        %1065 = vmatprep.subr.mxu0 0.0
        %1066 = vmatpush1.xpose.msra.mxu0 0.0
        %1067 = vmatprep.subr.mxu0 0.0
        %1068 = vmatpush1.xpose.msra.mxu0 0.0
        %1069 = vmatprep.subr.mxu0 0.0
        %1070 = vmatpush1.xpose.msra.mxu0 0.0
        %1071 = vmatprep.subr.mxu0 0.0
        %1072 = vmatpush1.xpose.msra.mxu0 0.0
        %1073 = vmatprep.subr.mxu0 0.0
        %1074 = vmatpush1.xpose.msra.mxu0 0.0
        %1075 = vmatprep.subr.mxu0 0.0
        %1076 = vmatpush1.xpose.msra.mxu0 0.0
        %1077 = vmatprep.subr.mxu0 0.0
        %1078 = vmatpush1.xpose.msra.mxu0 0.0
        %1079 = vmatprep.subr.mxu0 0.0
        %1080 = vmatpush1.xpose.msra.mxu0 0.0
        %1081 = vmatprep.subr.mxu0 0.0
        %1082 = vmatpush1.xpose.msra.mxu0 0.0
        %1083 = vmatprep.subr.mxu0 0.0
        %1084 = vmatpush1.xpose.msra.mxu0 0.0
        %1085 = vmatprep.subr.mxu0 0.0
        %1086 = vmatpush1.xpose.msra.mxu0 0.0
        %1087 = vmatprep.subr.mxu0 0.0
        %1088 = vmatpush1.xpose.msra.mxu0 0.0
        %1089 = vmatprep.subr.mxu0 0.0
        %1090 = vmatpush1.xpose.msra.mxu0 0.0
        %1091 = vmatprep.subr.mxu0 0.0
        %1092 = vmatpush1.xpose.msra.mxu0 0.0
        %1093 = vmatprep.subr.mxu0 0.0
        %1094 = vmatpush1.xpose.msra.mxu0 0.0
        %1095 = vmatprep.subr.mxu0 0.0
        %1096 = vmatpush1.xpose.msra.mxu0 0.0
        %1097 = vmatprep.subr.mxu0 0.0
        %1098 = vmatpush1.xpose.msra.mxu0 0.0
        %1099 = vmatprep.subr.mxu0 0.0
        %1100 = vmatpush1.xpose.msra.mxu0 0.0
        %1101 = vmatprep.subr.mxu0 0.0
        %1102 = vmatpush1.xpose.msra.mxu0 0.0
        %1103 = vmatprep.subr.mxu0 0.0
        %1104 = vmatpush1.xpose.msra.mxu0 0.0
        %1105 = vmatprep.subr.mxu0 0.0
        %1106 = vmatpush1.xpose.msra.mxu0 0.0
        %1107 = vmatprep.subr.mxu0 0.0
        %1108 = vmatpush1.xpose.msra.mxu0 0.0
        %1109 = vmatprep.mubr.f32.mxu0 0.0
        %1110 = vmatmul.mubr.f32.gmra.mrb[0].mxu0 %v1041
        %v1111 = vpop.f32.mrb[0].mxu0
        %v1112 = vadd.f32 %v540, %v1111
        %v1113 = vpop.f32.mrb[0].mxu0
        %1114 = vdwg.mxu0
        %v1115 = vsel %vm545, %v1112, -inf
        %1116 = vmax.xlane.f32.xlu0 %v1115
        %v1117 = vpop.xlane.xlu0 %1116
        %v1118 = vsub.f32 %v1112, %v1117
        %v1119 = vmul.f32 %v1118, 1.442695
        %v1120 = vpow.pop %v1119
        %v1121 = vsel %vm545, %v1120, 0.0
        %1122 = vadd.xlane.f32.xlu0 %v1121
        %v1123 = vpop.xlane.xlu0 %1122
        %v1124 = vrcp.pop %v1123
        %v1125 = vmul.f32 %v1120, %v1124
        %1126 = vrot.lane.b32.xlu0 %v533, 40
        %v1127 = vpop.permute.xlu0 %1126
        %v1130 = vsel %vm545, %v1125, 0
        %1132 = vmatprep.subr.mxu0 0.0
        %1133 = vmatpush1.msra.mxu0 %v1127
        %1134 = vmatprep.subr.mxu0 0.0
        %1135 = vmatpush1.msra.mxu0 0.0
        %1136 = vmatprep.subr.mxu0 0.0
        %1137 = vmatpush1.msra.mxu0 0.0
        %1138 = vmatprep.subr.mxu0 0.0
        %1139 = vmatpush1.msra.mxu0 0.0
        %1140 = vmatprep.subr.mxu0 0.0
        %1141 = vmatpush1.msra.mxu0 0.0
        %1142 = vmatprep.subr.mxu0 0.0
        %1143 = vmatpush1.msra.mxu0 0.0
        %1144 = vmatprep.subr.mxu0 0.0
        %1145 = vmatpush1.msra.mxu0 0.0
        %1146 = vmatprep.subr.mxu0 0.0
        %1147 = vmatpush1.msra.mxu0 0.0
        %1148 = vmatprep.subr.mxu0 0.0
        %1149 = vmatpush1.msra.mxu0 0.0
        %1150 = vmatprep.subr.mxu0 0.0
        %1151 = vmatpush1.msra.mxu0 0.0
        %1152 = vmatprep.subr.mxu0 0.0
        %1153 = vmatpush1.msra.mxu0 0.0
        %1154 = vmatprep.subr.mxu0 0.0
        %1155 = vmatpush1.msra.mxu0 0.0
        %1156 = vmatprep.subr.mxu0 0.0
        %1157 = vmatpush1.msra.mxu0 0.0
        %1158 = vmatprep.subr.mxu0 0.0
        %1159 = vmatpush1.msra.mxu0 0.0
        %1160 = vmatprep.subr.mxu0 0.0
        %1161 = vmatpush1.msra.mxu0 0.0
        %1162 = vmatprep.subr.mxu0 0.0
        %1163 = vmatpush1.msra.mxu0 0.0
        %1164 = vmatprep.subr.mxu0 0.0
        %1165 = vmatpush1.msra.mxu0 0.0
        %1166 = vmatprep.subr.mxu0 0.0
        %1167 = vmatpush1.msra.mxu0 0.0
        %1168 = vmatprep.subr.mxu0 0.0
        %1169 = vmatpush1.msra.mxu0 0.0
        %1170 = vmatprep.subr.mxu0 0.0
        %1171 = vmatpush1.msra.mxu0 0.0
        %1172 = vmatprep.subr.mxu0 0.0
        %1173 = vmatpush1.msra.mxu0 0.0
        %1174 = vmatprep.subr.mxu0 0.0
        %1175 = vmatpush1.msra.mxu0 0.0
        %1176 = vmatprep.subr.mxu0 0.0
        %1177 = vmatpush1.msra.mxu0 0.0
        %1178 = vmatprep.subr.mxu0 0.0
        %1179 = vmatpush1.msra.mxu0 0.0
        %1180 = vmatprep.subr.mxu0 0.0
        %1181 = vmatpush1.msra.mxu0 0.0
        %1182 = vmatprep.subr.mxu0 0.0
        %1183 = vmatpush1.msra.mxu0 0.0
        %1184 = vmatprep.subr.mxu0 0.0
        %1185 = vmatpush1.msra.mxu0 0.0
        %1186 = vmatprep.subr.mxu0 0.0
        %1187 = vmatpush1.msra.mxu0 0.0
        %1188 = vmatprep.subr.mxu0 0.0
        %1189 = vmatpush1.msra.mxu0 0.0
        %1190 = vmatprep.subr.mxu0 0.0
        %1191 = vmatpush1.msra.mxu0 0.0
        %1192 = vmatprep.subr.mxu0 0.0
        %1193 = vmatpush1.msra.mxu0 0.0
        %1194 = vmatprep.subr.mxu0 0.0
        %1195 = vmatpush1.msra.mxu0 0.0
        %1196 = vmatprep.mubr.f32.mxu0 0.0
        %1197 = vmatmul.mubr.f32.gmra.mrb[0].mxu0 %v1130
        %v1198 = vpop.f32.mrb[0].mxu0
        %v1199 = vadd.f32 0.0, %v1198
        %v1200 = vpop.f32.mrb[0].mxu0
        %1201 = vdwg.mxu0
        %1203 = vrot.lane.b32.xlu0 %v869, 8
        %v1204 = vpop.permute.xlu0 %1203
        %1207 = vrot.lane.b32.xlu0 %v1034, 16
        %v1208 = vpop.permute.xlu0 %1207
        %1211 = vrot.lane.b32.xlu0 %v1199, 24
        %v1212 = vpop.permute.xlu0 %1211
        %v1214 = vsel %vm545, %v704, %v1204
        %vm1215 = vcmask 130048
        %v1216 = vsel %vm1215, %v1214, %v1208
        %vm1217 = vcmask 195584
        %v1218 = vsel %vm1217, %v1216, %v1212
        %1223 = vrot.lane.b32.xlu0 %v459, 32
        %v1224 = vpop.permute.xlu0 %1223
        %1225 = vrot.lane.b32.xlu0 %v460, 32
        %v1226 = vpop.permute.xlu0 %1225
        %1227 = vrot.lane.b32.xlu0 %v461, 32
        %v1228 = vpop.permute.xlu0 %1227
        %1229 = vrot.lane.b32.xlu0 %v462, 32
        %v1230 = vpop.permute.xlu0 %1229
        %v1236 = vsel %vm445, %v1218, 0
        %1238 = vmatprep.subr.mxu0 0.0
        %1239 = vmatpush1.msra.mxu0 %v1224
        %1240 = vmatprep.subr.mxu0 0.0
        %1241 = vmatpush1.msra.mxu0 %v1226
        %1242 = vmatprep.subr.mxu0 0.0
        %1243 = vmatpush1.msra.mxu0 %v1228
        %1244 = vmatprep.subr.mxu0 0.0
        %1245 = vmatpush1.msra.mxu0 %v1230
        %1246 = vmatprep.subr.mxu0 0.0
        %1247 = vmatpush1.msra.mxu0 0.0
        %1248 = vmatprep.subr.mxu0 0.0
        %1249 = vmatpush1.msra.mxu0 0.0
        %1250 = vmatprep.subr.mxu0 0.0
        %1251 = vmatpush1.msra.mxu0 0.0
        %1252 = vmatprep.subr.mxu0 0.0
        %1253 = vmatpush1.msra.mxu0 0.0
        %1254 = vmatprep.subr.mxu0 0.0
        %1255 = vmatpush1.msra.mxu0 0.0
        %1256 = vmatprep.subr.mxu0 0.0
        %1257 = vmatpush1.msra.mxu0 0.0
        %1258 = vmatprep.subr.mxu0 0.0
        %1259 = vmatpush1.msra.mxu0 0.0
        %1260 = vmatprep.subr.mxu0 0.0
        %1261 = vmatpush1.msra.mxu0 0.0
        %1262 = vmatprep.subr.mxu0 0.0
        %1263 = vmatpush1.msra.mxu0 0.0
        %1264 = vmatprep.subr.mxu0 0.0
        %1265 = vmatpush1.msra.mxu0 0.0
        %1266 = vmatprep.subr.mxu0 0.0
        %1267 = vmatpush1.msra.mxu0 0.0
        %1268 = vmatprep.subr.mxu0 0.0
        %1269 = vmatpush1.msra.mxu0 0.0
        %1270 = vmatprep.subr.mxu0 0.0
        %1271 = vmatpush1.msra.mxu0 0.0
        %1272 = vmatprep.subr.mxu0 0.0
        %1273 = vmatpush1.msra.mxu0 0.0
        %1274 = vmatprep.subr.mxu0 0.0
        %1275 = vmatpush1.msra.mxu0 0.0
        %1276 = vmatprep.subr.mxu0 0.0
        %1277 = vmatpush1.msra.mxu0 0.0
        %1278 = vmatprep.subr.mxu0 0.0
        %1279 = vmatpush1.msra.mxu0 0.0
        %1280 = vmatprep.subr.mxu0 0.0
        %1281 = vmatpush1.msra.mxu0 0.0
        %1282 = vmatprep.subr.mxu0 0.0
        %1283 = vmatpush1.msra.mxu0 0.0
        %1284 = vmatprep.subr.mxu0 0.0
        %1285 = vmatpush1.msra.mxu0 0.0
        %1286 = vmatprep.subr.mxu0 0.0
        %1287 = vmatpush1.msra.mxu0 0.0
        %1288 = vmatprep.subr.mxu0 0.0
        %1289 = vmatpush1.msra.mxu0 0.0
        %1290 = vmatprep.subr.mxu0 0.0
        %1291 = vmatpush1.msra.mxu0 0.0
        %1292 = vmatprep.subr.mxu0 0.0
        %1293 = vmatpush1.msra.mxu0 0.0
        %1294 = vmatprep.subr.mxu0 0.0
        %1295 = vmatpush1.msra.mxu0 0.0
        %1296 = vmatprep.subr.mxu0 0.0
        %1297 = vmatpush1.msra.mxu0 0.0
        %1298 = vmatprep.subr.mxu0 0.0
        %1299 = vmatpush1.msra.mxu0 0.0
        %1300 = vmatprep.subr.mxu0 0.0
        %1301 = vmatpush1.msra.mxu0 0.0
        %1302 = vmatprep.mubr.f32.mxu0 0.0
        %1303 = vmatmul.mubr.f32.gmra.mrb[0].mxu0 %v1236
        %v1304 = vpop.f32.mrb[0].mxu0
        %v1305 = vadd.f32 0.0, %v1304
        %v1306 = vpop.f32.mrb[0].mxu0
        %1307 = vdwg.mxu0
        %v1308 = vadd.f32 %v440, %v1305
        %v1309 = vld [vmem:[%s3 + $0x1] sm:$0x1]
        %v1310 = vmul.f32 %v1308, %v1308
        %v1311 = vsel %vm445, %v1310, 0.0
        %1312 = vadd.xlane.f32.xlu0 %v1311
        %v1313 = vpop.xlane.xlu0 %1312
        %v1314 = vmul.f32 %v1313, %v449
        %v1315 = vadd.f32 %v1314, 1e-06
        %v1316 = vrsqrt.pop %v1315
        %v1317 = vmul.f32 %v1308, %v1316
        %v1318 = vlaneseq
        %v1319 = vshrl.u32 %v1318, 7
        %v1320 = vsub.s32 0, %v1319
        %v1321 = vrot.slane %v1309, %v1320
        %v1322 = vmul.f32 %v1317, %v1321
        %v1323 = vld [vmem:[%s4 + $0x8] sm:$0xff]
        %v1324 = vld [vmem:[%s4 + $0x28] sm:$0xff]
        %v1325 = vld [vmem:[%s4 + $0x48] sm:$0xff]
        %v1326 = vld [vmem:[%s4 + $0x68] sm:$0xff]
        %v1328 = vsel %vm445, %v1322, 0
        %1330 = vmatprep.subr.mxu0 0.0
        %1331 = vmatpush1.msra.mxu0 %v1323
        %1332 = vmatprep.subr.mxu0 0.0
        %1333 = vmatpush1.msra.mxu0 %v1324
        %1334 = vmatprep.subr.mxu0 0.0
        %1335 = vmatpush1.msra.mxu0 %v1325
        %1336 = vmatprep.subr.mxu0 0.0
        %1337 = vmatpush1.msra.mxu0 %v1326
        %1338 = vmatprep.subr.mxu0 0.0
        %1339 = vmatpush1.msra.mxu0 0.0
        %1340 = vmatprep.subr.mxu0 0.0
        %1341 = vmatpush1.msra.mxu0 0.0
        %1342 = vmatprep.subr.mxu0 0.0
        %1343 = vmatpush1.msra.mxu0 0.0
        %1344 = vmatprep.subr.mxu0 0.0
        %1345 = vmatpush1.msra.mxu0 0.0
        %1346 = vmatprep.subr.mxu0 0.0
        %1347 = vmatpush1.msra.mxu0 0.0
        %1348 = vmatprep.subr.mxu0 0.0
        %1349 = vmatpush1.msra.mxu0 0.0
        %1350 = vmatprep.subr.mxu0 0.0
        %1351 = vmatpush1.msra.mxu0 0.0
        %1352 = vmatprep.subr.mxu0 0.0
        %1353 = vmatpush1.msra.mxu0 0.0
        %1354 = vmatprep.subr.mxu0 0.0
        %1355 = vmatpush1.msra.mxu0 0.0
        %1356 = vmatprep.subr.mxu0 0.0
        %1357 = vmatpush1.msra.mxu0 0.0
        %1358 = vmatprep.subr.mxu0 0.0
        %1359 = vmatpush1.msra.mxu0 0.0
        %1360 = vmatprep.subr.mxu0 0.0
        %1361 = vmatpush1.msra.mxu0 0.0
        %1362 = vmatprep.subr.mxu0 0.0
        %1363 = vmatpush1.msra.mxu0 0.0
        %1364 = vmatprep.subr.mxu0 0.0
        %1365 = vmatpush1.msra.mxu0 0.0
        %1366 = vmatprep.subr.mxu0 0.0
        %1367 = vmatpush1.msra.mxu0 0.0
        %1368 = vmatprep.subr.mxu0 0.0
        %1369 = vmatpush1.msra.mxu0 0.0
        %1370 = vmatprep.subr.mxu0 0.0
        %1371 = vmatpush1.msra.mxu0 0.0
        %1372 = vmatprep.subr.mxu0 0.0
        %1373 = vmatpush1.msra.mxu0 0.0
        %1374 = vmatprep.subr.mxu0 0.0
        %1375 = vmatpush1.msra.mxu0 0.0
        %1376 = vmatprep.subr.mxu0 0.0
        %1377 = vmatpush1.msra.mxu0 0.0
        %1378 = vmatprep.subr.mxu0 0.0
        %1379 = vmatpush1.msra.mxu0 0.0
        %1380 = vmatprep.subr.mxu0 0.0
        %1381 = vmatpush1.msra.mxu0 0.0
        %1382 = vmatprep.subr.mxu0 0.0
        %1383 = vmatpush1.msra.mxu0 0.0
        %1384 = vmatprep.subr.mxu0 0.0
        %1385 = vmatpush1.msra.mxu0 0.0
        %1386 = vmatprep.subr.mxu0 0.0
        %1387 = vmatpush1.msra.mxu0 0.0
        %1388 = vmatprep.subr.mxu0 0.0
        %1389 = vmatpush1.msra.mxu0 0.0
        %1390 = vmatprep.subr.mxu0 0.0
        %1391 = vmatpush1.msra.mxu0 0.0
        %1392 = vmatprep.subr.mxu0 0.0
        %1393 = vmatpush1.msra.mxu0 0.0
        %1394 = vmatprep.mubr.f32.mxu0 0.0
        %1395 = vmatmul.mubr.f32.gmra.mrb[0].mxu0 %v1328
        %v1396 = vpop.f32.mrb[0].mxu0
        %v1397 = vadd.f32 0.0, %v1396
        %v1398 = vpop.f32.mrb[0].mxu0
        %1399 = vdwg.mxu0
        %v1400 = vmax.f32 %v1397, 0.0
        %v1401 = vld [vmem:[%s5] sm:$0xff]
        %v1402 = vld [vmem:[%s5 + $0x8] sm:$0xff]
        %v1403 = vld [vmem:[%s5 + $0x10] sm:$0xff]
        %v1404 = vld [vmem:[%s5 + $0x18] sm:$0xff]
        %v1405 = vld [vmem:[%s5 + $0x20] sm:$0xff]
        %v1406 = vld [vmem:[%s5 + $0x28] sm:$0xff]
        %v1407 = vld [vmem:[%s5 + $0x30] sm:$0xff]
        %v1408 = vld [vmem:[%s5 + $0x38] sm:$0xff]
        %vm1409 = vcmask 523264
        %v1411 = vsel %vm1409, %v1400, 0
        %1413 = vmatprep.subr.mxu0 0.0
        %1414 = vmatpush1.msra.mxu0 %v1401
        %1415 = vmatprep.subr.mxu0 0.0
        %1416 = vmatpush1.msra.mxu0 %v1402
        %1417 = vmatprep.subr.mxu0 0.0
        %1418 = vmatpush1.msra.mxu0 %v1403
        %1419 = vmatprep.subr.mxu0 0.0
        %1420 = vmatpush1.msra.mxu0 %v1404
        %1421 = vmatprep.subr.mxu0 0.0
        %1422 = vmatpush1.msra.mxu0 %v1405
        %1423 = vmatprep.subr.mxu0 0.0
        %1424 = vmatpush1.msra.mxu0 %v1406
        %1425 = vmatprep.subr.mxu0 0.0
        %1426 = vmatpush1.msra.mxu0 %v1407
        %1427 = vmatprep.subr.mxu0 0.0
        %1428 = vmatpush1.msra.mxu0 %v1408
        %1429 = vmatprep.subr.mxu0 0.0
        %1430 = vmatpush1.msra.mxu0 0.0
        %1431 = vmatprep.subr.mxu0 0.0
        %1432 = vmatpush1.msra.mxu0 0.0
        %1433 = vmatprep.subr.mxu0 0.0
        %1434 = vmatpush1.msra.mxu0 0.0
        %1435 = vmatprep.subr.mxu0 0.0
        %1436 = vmatpush1.msra.mxu0 0.0
        %1437 = vmatprep.subr.mxu0 0.0
        %1438 = vmatpush1.msra.mxu0 0.0
        %1439 = vmatprep.subr.mxu0 0.0
        %1440 = vmatpush1.msra.mxu0 0.0
        %1441 = vmatprep.subr.mxu0 0.0
        %1442 = vmatpush1.msra.mxu0 0.0
        %1443 = vmatprep.subr.mxu0 0.0
        %1444 = vmatpush1.msra.mxu0 0.0
        %1445 = vmatprep.subr.mxu0 0.0
        %1446 = vmatpush1.msra.mxu0 0.0
        %1447 = vmatprep.subr.mxu0 0.0
        %1448 = vmatpush1.msra.mxu0 0.0
        %1449 = vmatprep.subr.mxu0 0.0
        %1450 = vmatpush1.msra.mxu0 0.0
        %1451 = vmatprep.subr.mxu0 0.0
        %1452 = vmatpush1.msra.mxu0 0.0
        %1453 = vmatprep.subr.mxu0 0.0
        %1454 = vmatpush1.msra.mxu0 0.0
        %1455 = vmatprep.subr.mxu0 0.0
        %1456 = vmatpush1.msra.mxu0 0.0
        %1457 = vmatprep.subr.mxu0 0.0
        %1458 = vmatpush1.msra.mxu0 0.0
        %1459 = vmatprep.subr.mxu0 0.0
        %1460 = vmatpush1.msra.mxu0 0.0
        %1461 = vmatprep.subr.mxu0 0.0
        %1462 = vmatpush1.msra.mxu0 0.0
        %1463 = vmatprep.subr.mxu0 0.0
        %1464 = vmatpush1.msra.mxu0 0.0
        %1465 = vmatprep.subr.mxu0 0.0
        %1466 = vmatpush1.msra.mxu0 0.0
        %1467 = vmatprep.subr.mxu0 0.0
        %1468 = vmatpush1.msra.mxu0 0.0
        %1469 = vmatprep.subr.mxu0 0.0
        %1470 = vmatpush1.msra.mxu0 0.0
        %1471 = vmatprep.subr.mxu0 0.0
        %1472 = vmatpush1.msra.mxu0 0.0
        %1473 = vmatprep.subr.mxu0 0.0
        %1474 = vmatpush1.msra.mxu0 0.0
        %1475 = vmatprep.subr.mxu0 0.0
        %1476 = vmatpush1.msra.mxu0 0.0
        %1477 = vmatprep.mubr.f32.mxu0 0.0
        %1478 = vmatmul.mubr.f32.gmra.mrb[0].mxu0 %v1411
        %v1479 = vpop.f32.mrb[0].mxu0
        %v1480 = vadd.f32 0.0, %v1479
        %v1481 = vpop.f32.mrb[0].mxu0
        %1482 = vdwg.mxu0
        %v1483 = vadd.f32 %v1308, %v1480
        %v1484 = vld [vmem:[%s3 + $0x2] sm:$0x1]
        %v1485 = vmul.f32 %v1483, %v1483
        %v1486 = vsel %vm445, %v1485, 0.0
        %1487 = vadd.xlane.f32.xlu0 %v1486
        %v1488 = vpop.xlane.xlu0 %1487
        %v1489 = vmul.f32 %v1488, %v449
        %v1490 = vadd.f32 %v1489, 1e-06
        %v1491 = vrsqrt.pop %v1490
        %v1492 = vmul.f32 %v1483, %v1491
        %v1493 = vlaneseq
        %v1494 = vshrl.u32 %v1493, 7
        %v1495 = vsub.s32 0, %v1494
        %v1496 = vrot.slane %v1484, %v1495
        %v1497 = vmul.f32 %v1492, %v1496
        %1498 = vset.pattern.permute.xlu0 0
        %1499 = vperm.xlu0 %1498, %v365
        %v1500 = vpop.permute.xlu0 %1499
        %vm1501 = vcmp.eq.s32.totalorder %v361, %v1500
        %v1502 = vsel %vm1501, 1, 0
        %v1503 = vcvt.s32.f32 %v1502
        %1504 = vmatprep.subr.mxu0 0.0
        %1505 = vmatpush1.msra.mxu0 %v339
        %1506 = vmatprep.subr.mxu0 0.0
        %1507 = vmatpush1.msra.mxu0 %v340
        %1508 = vmatprep.subr.mxu0 0.0
        %1509 = vmatpush1.msra.mxu0 %v341
        %1510 = vmatprep.subr.mxu0 0.0
        %1511 = vmatpush1.msra.mxu0 %v342
        %1512 = vmatprep.subr.mxu0 0.0
        %1513 = vmatpush1.msra.mxu0 %v343
        %1514 = vmatprep.subr.mxu0 0.0
        %1515 = vmatpush1.msra.mxu0 %v344
        %1516 = vmatprep.subr.mxu0 0.0
        %1517 = vmatpush1.msra.mxu0 %v345
        %1518 = vmatprep.subr.mxu0 0.0
        %1519 = vmatpush1.msra.mxu0 %v346
        %1520 = vmatprep.subr.mxu0 0.0
        %1521 = vmatpush1.msra.mxu0 %v347
        %1522 = vmatprep.subr.mxu0 0.0
        %1523 = vmatpush1.msra.mxu0 %v348
        %1524 = vmatprep.subr.mxu0 0.0
        %1525 = vmatpush1.msra.mxu0 %v349
        %1526 = vmatprep.subr.mxu0 0.0
        %1527 = vmatpush1.msra.mxu0 %v350
        %1528 = vmatprep.subr.mxu0 0.0
        %1529 = vmatpush1.msra.mxu0 %v351
        %1530 = vmatprep.subr.mxu0 0.0
        %1531 = vmatpush1.msra.mxu0 %v352
        %1532 = vmatprep.subr.mxu0 0.0
        %1533 = vmatpush1.msra.mxu0 %v353
        %1534 = vmatprep.subr.mxu0 0.0
        %1535 = vmatpush1.msra.mxu0 %v354
        %1536 = vmatprep.subr.mxu0 0.0
        %1537 = vmatpush1.msra.mxu0 0.0
        %1538 = vmatprep.subr.mxu0 0.0
        %1539 = vmatpush1.msra.mxu0 0.0
        %1540 = vmatprep.subr.mxu0 0.0
        %1541 = vmatpush1.msra.mxu0 0.0
        %1542 = vmatprep.subr.mxu0 0.0
        %1543 = vmatpush1.msra.mxu0 0.0
        %1544 = vmatprep.subr.mxu0 0.0
        %1545 = vmatpush1.msra.mxu0 0.0
        %1546 = vmatprep.subr.mxu0 0.0
        %1547 = vmatpush1.msra.mxu0 0.0
        %1548 = vmatprep.subr.mxu0 0.0
        %1549 = vmatpush1.msra.mxu0 0.0
        %1550 = vmatprep.subr.mxu0 0.0
        %1551 = vmatpush1.msra.mxu0 0.0
        %1552 = vmatprep.subr.mxu0 0.0
        %1553 = vmatpush1.msra.mxu0 0.0
        %1554 = vmatprep.subr.mxu0 0.0
        %1555 = vmatpush1.msra.mxu0 0.0
        %1556 = vmatprep.subr.mxu0 0.0
        %1557 = vmatpush1.msra.mxu0 0.0
        %1558 = vmatprep.subr.mxu0 0.0
        %1559 = vmatpush1.msra.mxu0 0.0
        %1560 = vmatprep.subr.mxu0 0.0
        %1561 = vmatpush1.msra.mxu0 0.0
        %1562 = vmatprep.subr.mxu0 0.0
        %1563 = vmatpush1.msra.mxu0 0.0
        %1564 = vmatprep.subr.mxu0 0.0
        %1565 = vmatpush1.msra.mxu0 0.0
        %1566 = vmatprep.subr.mxu0 0.0
        %1567 = vmatpush1.msra.mxu0 0.0
        %1568 = vmatprep.mubr.f32.mxu0 0.0
        %1569 = vmatmul.mubr.f32.gmra.mrb[0].mxu0 %v1503
        %v1570 = vpop.f32.mrb[0].mxu0
        %v1571 = vadd.f32 0.0, %v1570
        %v1572 = vpop.f32.mrb[0].mxu0
        %1573 = vdwg.mxu0
        %v1574 = vld [vmem:[%s3 + $0x3] sm:$0x1]
        %v1575 = vmul.f32 %v1571, %v1571
        %v1576 = vsel %vm445, %v1575, 0.0
        %1577 = vadd.xlane.f32.xlu0 %v1576
        %v1578 = vpop.xlane.xlu0 %1577
        %v1579 = vmul.f32 %v1578, %v449
        %v1580 = vadd.f32 %v1579, 1e-06
        %v1581 = vrsqrt.pop %v1580
        %v1582 = vmul.f32 %v1571, %v1581
        %v1583 = vlaneseq
        %v1584 = vshrl.u32 %v1583, 7
        %v1585 = vsub.s32 0, %v1584
        %v1586 = vrot.slane %v1574, %v1585
        %v1587 = vmul.f32 %v1582, %v1586
        %v1588 = vld [vmem:[%s4 + $0x8] sm:$0xff]
        %v1589 = vld [vmem:[%s4 + $0x10] sm:$0xff]
        %v1590 = vld [vmem:[%s4 + $0x28] sm:$0xff]
        %v1591 = vld [vmem:[%s4 + $0x30] sm:$0xff]
        %v1592 = vld [vmem:[%s4 + $0x48] sm:$0xff]
        %v1593 = vld [vmem:[%s4 + $0x50] sm:$0xff]
        %v1594 = vld [vmem:[%s4 + $0x68] sm:$0xff]
        %v1595 = vld [vmem:[%s4 + $0x70] sm:$0xff]
        %1604 = vrot.lane.b32.xlu0 %v1588, 64
        %v1605 = vpop.permute.xlu0 %1604
        %1606 = vrot.lane.b32.xlu0 %v1589, 64
        %v1607 = vpop.permute.xlu0 %1606
        %1608 = vrot.lane.b32.xlu0 %v1590, 64
        %v1609 = vpop.permute.xlu0 %1608
        %1610 = vrot.lane.b32.xlu0 %v1591, 64
        %v1611 = vpop.permute.xlu0 %1610
        %1612 = vrot.lane.b32.xlu0 %v1592, 64
        %v1613 = vpop.permute.xlu0 %1612
        %1614 = vrot.lane.b32.xlu0 %v1593, 64
        %v1615 = vpop.permute.xlu0 %1614
        %1616 = vrot.lane.b32.xlu0 %v1594, 64
        %v1617 = vpop.permute.xlu0 %1616
        %1618 = vrot.lane.b32.xlu0 %v1595, 64
        %v1619 = vpop.permute.xlu0 %1618
        %v1620 = vsel %vm1409, %v1605, %v1607
        %v1621 = vsel %vm1409, %v1609, %v1611
        %v1622 = vsel %vm1409, %v1613, %v1615
        %v1623 = vsel %vm1409, %v1617, %v1619
        %v1629 = vsel %vm445, %v1587, 0
        %1631 = vmatprep.subr.mxu0 0.0
        %1632 = vmatpush1.msra.mxu0 %v1620
        %1633 = vmatprep.subr.mxu0 0.0
        %1634 = vmatpush1.msra.mxu0 %v1621
        %1635 = vmatprep.subr.mxu0 0.0
        %1636 = vmatpush1.msra.mxu0 %v1622
        %1637 = vmatprep.subr.mxu0 0.0
        %1638 = vmatpush1.msra.mxu0 %v1623
        %1639 = vmatprep.subr.mxu0 0.0
        %1640 = vmatpush1.msra.mxu0 0.0
        %1641 = vmatprep.subr.mxu0 0.0
        %1642 = vmatpush1.msra.mxu0 0.0
        %1643 = vmatprep.subr.mxu0 0.0
        %1644 = vmatpush1.msra.mxu0 0.0
        %1645 = vmatprep.subr.mxu0 0.0
        %1646 = vmatpush1.msra.mxu0 0.0
        %1647 = vmatprep.subr.mxu0 0.0
        %1648 = vmatpush1.msra.mxu0 0.0
        %1649 = vmatprep.subr.mxu0 0.0
        %1650 = vmatpush1.msra.mxu0 0.0
        %1651 = vmatprep.subr.mxu0 0.0
        %1652 = vmatpush1.msra.mxu0 0.0
        %1653 = vmatprep.subr.mxu0 0.0
        %1654 = vmatpush1.msra.mxu0 0.0
        %1655 = vmatprep.subr.mxu0 0.0
        %1656 = vmatpush1.msra.mxu0 0.0
        %1657 = vmatprep.subr.mxu0 0.0
        %1658 = vmatpush1.msra.mxu0 0.0
        %1659 = vmatprep.subr.mxu0 0.0
        %1660 = vmatpush1.msra.mxu0 0.0
        %1661 = vmatprep.subr.mxu0 0.0
        %1662 = vmatpush1.msra.mxu0 0.0
        %1663 = vmatprep.subr.mxu0 0.0
        %1664 = vmatpush1.msra.mxu0 0.0
        %1665 = vmatprep.subr.mxu0 0.0
        %1666 = vmatpush1.msra.mxu0 0.0
        %1667 = vmatprep.subr.mxu0 0.0
        %1668 = vmatpush1.msra.mxu0 0.0
        %1669 = vmatprep.subr.mxu0 0.0
        %1670 = vmatpush1.msra.mxu0 0.0
        %1671 = vmatprep.subr.mxu0 0.0
        %1672 = vmatpush1.msra.mxu0 0.0
        %1673 = vmatprep.subr.mxu0 0.0
        %1674 = vmatpush1.msra.mxu0 0.0
        %1675 = vmatprep.subr.mxu0 0.0
        %1676 = vmatpush1.msra.mxu0 0.0
        %1677 = vmatprep.subr.mxu0 0.0
        %1678 = vmatpush1.msra.mxu0 0.0
        %1679 = vmatprep.subr.mxu0 0.0
        %1680 = vmatpush1.msra.mxu0 0.0
        %1681 = vmatprep.subr.mxu0 0.0
        %1682 = vmatpush1.msra.mxu0 0.0
        %1683 = vmatprep.subr.mxu0 0.0
        %1684 = vmatpush1.msra.mxu0 0.0
        %1685 = vmatprep.subr.mxu0 0.0
        %1686 = vmatpush1.msra.mxu0 0.0
        %1687 = vmatprep.subr.mxu0 0.0
        %1688 = vmatpush1.msra.mxu0 0.0
        %1689 = vmatprep.subr.mxu0 0.0
        %1690 = vmatpush1.msra.mxu0 0.0
        %1691 = vmatprep.subr.mxu0 0.0
        %1692 = vmatpush1.msra.mxu0 0.0
        %1693 = vmatprep.subr.mxu0 0.0
        %1694 = vmatpush1.msra.mxu0 0.0
        %1695 = vmatprep.mubr.f32.mxu0 0.0
        %1696 = vmatmul.mubr.f32.gmra.mrb[0].mxu0 %v1629
        %v1697 = vpop.f32.mrb[0].mxu0
        %v1698 = vadd.f32 0.0, %v1697
        %v1699 = vpop.f32.mrb[0].mxu0
        %1700 = vdwg.mxu0
        %1702 = vrot.lane.b32.xlu0 %v1698, 96
        %v1703 = vpop.permute.xlu0 %1702
        %v1704 = vsel %vm545, %v1698, 0
        %v1706 = vsel %vm545, %v1703, 0
        %1708 = vmatprep.subr.mxu0 0.0
        %1709 = vmatpush1.xpose.msra.mxu0 %v1706
        %1710 = vmatprep.subr.mxu0 0.0
        %1711 = vmatpush1.xpose.msra.mxu0 0.0
        %1712 = vmatprep.subr.mxu0 0.0
        %1713 = vmatpush1.xpose.msra.mxu0 0.0
        %1714 = vmatprep.subr.mxu0 0.0
        %1715 = vmatpush1.xpose.msra.mxu0 0.0
        %1716 = vmatprep.subr.mxu0 0.0
        %1717 = vmatpush1.xpose.msra.mxu0 0.0
        %1718 = vmatprep.subr.mxu0 0.0
        %1719 = vmatpush1.xpose.msra.mxu0 0.0
        %1720 = vmatprep.subr.mxu0 0.0
        %1721 = vmatpush1.xpose.msra.mxu0 0.0
        %1722 = vmatprep.subr.mxu0 0.0
        %1723 = vmatpush1.xpose.msra.mxu0 0.0
        %1724 = vmatprep.subr.mxu0 0.0
        %1725 = vmatpush1.xpose.msra.mxu0 0.0
        %1726 = vmatprep.subr.mxu0 0.0
        %1727 = vmatpush1.xpose.msra.mxu0 0.0
        %1728 = vmatprep.subr.mxu0 0.0
        %1729 = vmatpush1.xpose.msra.mxu0 0.0
        %1730 = vmatprep.subr.mxu0 0.0
        %1731 = vmatpush1.xpose.msra.mxu0 0.0
        %1732 = vmatprep.subr.mxu0 0.0
        %1733 = vmatpush1.xpose.msra.mxu0 0.0
        %1734 = vmatprep.subr.mxu0 0.0
        %1735 = vmatpush1.xpose.msra.mxu0 0.0
        %1736 = vmatprep.subr.mxu0 0.0
        %1737 = vmatpush1.xpose.msra.mxu0 0.0
        %1738 = vmatprep.subr.mxu0 0.0
        %1739 = vmatpush1.xpose.msra.mxu0 0.0
        %1740 = vmatprep.subr.mxu0 0.0
        %1741 = vmatpush1.xpose.msra.mxu0 0.0
        %1742 = vmatprep.subr.mxu0 0.0
        %1743 = vmatpush1.xpose.msra.mxu0 0.0
        %1744 = vmatprep.subr.mxu0 0.0
        %1745 = vmatpush1.xpose.msra.mxu0 0.0
        %1746 = vmatprep.subr.mxu0 0.0
        %1747 = vmatpush1.xpose.msra.mxu0 0.0
        %1748 = vmatprep.subr.mxu0 0.0
        %1749 = vmatpush1.xpose.msra.mxu0 0.0
        %1750 = vmatprep.subr.mxu0 0.0
        %1751 = vmatpush1.xpose.msra.mxu0 0.0
        %1752 = vmatprep.subr.mxu0 0.0
        %1753 = vmatpush1.xpose.msra.mxu0 0.0
        %1754 = vmatprep.subr.mxu0 0.0
        %1755 = vmatpush1.xpose.msra.mxu0 0.0
        %1756 = vmatprep.subr.mxu0 0.0
        %1757 = vmatpush1.xpose.msra.mxu0 0.0
        %1758 = vmatprep.subr.mxu0 0.0
        %1759 = vmatpush1.xpose.msra.mxu0 0.0
        %1760 = vmatprep.subr.mxu0 0.0
        %1761 = vmatpush1.xpose.msra.mxu0 0.0
        %1762 = vmatprep.subr.mxu0 0.0
        %1763 = vmatpush1.xpose.msra.mxu0 0.0
        %1764 = vmatprep.subr.mxu0 0.0
        %1765 = vmatpush1.xpose.msra.mxu0 0.0
        %1766 = vmatprep.subr.mxu0 0.0
        %1767 = vmatpush1.xpose.msra.mxu0 0.0
        %1768 = vmatprep.subr.mxu0 0.0
        %1769 = vmatpush1.xpose.msra.mxu0 0.0
        %1770 = vmatprep.subr.mxu0 0.0
        %1771 = vmatpush1.xpose.msra.mxu0 0.0
        %1772 = vmatprep.mubr.f32.mxu0 0.0
        %1773 = vmatmul.mubr.f32.gmra.mrb[0].mxu0 %v1704
        %v1774 = vpop.f32.mrb[0].mxu0
        %v1775 = vadd.f32 %v363, %v1774
        %v1776 = vpop.f32.mrb[0].mxu0
        %1777 = vdwg.mxu0
        %v1778 = vsel %vm545, %v1775, -inf
        %1779 = vmax.xlane.f32.xlu0 %v1778
        %v1780 = vpop.xlane.xlu0 %1779
        %v1781 = vsub.f32 %v1775, %v1780
        %v1782 = vmul.f32 %v1781, 1.442695
        %v1783 = vpow.pop %v1782
        %v1784 = vsel %vm545, %v1783, 0.0
        %1785 = vadd.xlane.f32.xlu0 %v1784
        %v1786 = vpop.xlane.xlu0 %1785
        %v1787 = vrcp.pop %v1786
        %v1788 = vmul.f32 %v1783, %v1787
        %1789 = vrot.lane.b32.xlu0 %v1698, 64
        %v1790 = vpop.permute.xlu0 %1789
        %v1793 = vsel %vm545, %v1788, 0
        %1795 = vmatprep.subr.mxu0 0.0
        %1796 = vmatpush1.msra.mxu0 %v1790
        %1797 = vmatprep.subr.mxu0 0.0
        %1798 = vmatpush1.msra.mxu0 0.0
        %1799 = vmatprep.subr.mxu0 0.0
        %1800 = vmatpush1.msra.mxu0 0.0
        %1801 = vmatprep.subr.mxu0 0.0
        %1802 = vmatpush1.msra.mxu0 0.0
        %1803 = vmatprep.subr.mxu0 0.0
        %1804 = vmatpush1.msra.mxu0 0.0
        %1805 = vmatprep.subr.mxu0 0.0
        %1806 = vmatpush1.msra.mxu0 0.0
        %1807 = vmatprep.subr.mxu0 0.0
        %1808 = vmatpush1.msra.mxu0 0.0
        %1809 = vmatprep.subr.mxu0 0.0
        %1810 = vmatpush1.msra.mxu0 0.0
        %1811 = vmatprep.subr.mxu0 0.0
        %1812 = vmatpush1.msra.mxu0 0.0
        %1813 = vmatprep.subr.mxu0 0.0
        %1814 = vmatpush1.msra.mxu0 0.0
        %1815 = vmatprep.subr.mxu0 0.0
        %1816 = vmatpush1.msra.mxu0 0.0
        %1817 = vmatprep.subr.mxu0 0.0
        %1818 = vmatpush1.msra.mxu0 0.0
        %1819 = vmatprep.subr.mxu0 0.0
        %1820 = vmatpush1.msra.mxu0 0.0
        %1821 = vmatprep.subr.mxu0 0.0
        %1822 = vmatpush1.msra.mxu0 0.0
        %1823 = vmatprep.subr.mxu0 0.0
        %1824 = vmatpush1.msra.mxu0 0.0
        %1825 = vmatprep.subr.mxu0 0.0
        %1826 = vmatpush1.msra.mxu0 0.0
        %1827 = vmatprep.subr.mxu0 0.0
        %1828 = vmatpush1.msra.mxu0 0.0
        %1829 = vmatprep.subr.mxu0 0.0
        %1830 = vmatpush1.msra.mxu0 0.0
        %1831 = vmatprep.subr.mxu0 0.0
        %1832 = vmatpush1.msra.mxu0 0.0
        %1833 = vmatprep.subr.mxu0 0.0
        %1834 = vmatpush1.msra.mxu0 0.0
        %1835 = vmatprep.subr.mxu0 0.0
        %1836 = vmatpush1.msra.mxu0 0.0
        %1837 = vmatprep.subr.mxu0 0.0
        %1838 = vmatpush1.msra.mxu0 0.0
        %1839 = vmatprep.subr.mxu0 0.0
        %1840 = vmatpush1.msra.mxu0 0.0
        %1841 = vmatprep.subr.mxu0 0.0
        %1842 = vmatpush1.msra.mxu0 0.0
        %1843 = vmatprep.subr.mxu0 0.0
        %1844 = vmatpush1.msra.mxu0 0.0
        %1845 = vmatprep.subr.mxu0 0.0
        %1846 = vmatpush1.msra.mxu0 0.0
        %1847 = vmatprep.subr.mxu0 0.0
        %1848 = vmatpush1.msra.mxu0 0.0
        %1849 = vmatprep.subr.mxu0 0.0
        %1850 = vmatpush1.msra.mxu0 0.0
        %1851 = vmatprep.subr.mxu0 0.0
        %1852 = vmatpush1.msra.mxu0 0.0
        %1853 = vmatprep.subr.mxu0 0.0
        %1854 = vmatpush1.msra.mxu0 0.0
        %1855 = vmatprep.subr.mxu0 0.0
        %1856 = vmatpush1.msra.mxu0 0.0
        %1857 = vmatprep.subr.mxu0 0.0
        %1858 = vmatpush1.msra.mxu0 0.0
        %1859 = vmatprep.mubr.f32.mxu0 0.0
        %1860 = vmatmul.mubr.f32.gmra.mrb[0].mxu0 %v1793
        %v1861 = vpop.f32.mrb[0].mxu0
        %v1862 = vadd.f32 0.0, %v1861
        %v1863 = vpop.f32.mrb[0].mxu0
        %1864 = vdwg.mxu0
        %1865 = vrot.lane.b32.xlu0 %v1698, 120
        %v1866 = vpop.permute.xlu0 %1865
        %1867 = vrot.lane.b32.xlu0 %v1698, 88
        %v1868 = vpop.permute.xlu0 %1867
        %v1869 = vsel %vm545, %v1866, 0
        %v1871 = vsel %vm545, %v1868, 0
        %1873 = vmatprep.subr.mxu0 0.0
        %1874 = vmatpush1.xpose.msra.mxu0 %v1871
        %1875 = vmatprep.subr.mxu0 0.0
        %1876 = vmatpush1.xpose.msra.mxu0 0.0
        %1877 = vmatprep.subr.mxu0 0.0
        %1878 = vmatpush1.xpose.msra.mxu0 0.0
        %1879 = vmatprep.subr.mxu0 0.0
        %1880 = vmatpush1.xpose.msra.mxu0 0.0
        %1881 = vmatprep.subr.mxu0 0.0
        %1882 = vmatpush1.xpose.msra.mxu0 0.0
        %1883 = vmatprep.subr.mxu0 0.0
        %1884 = vmatpush1.xpose.msra.mxu0 0.0
        %1885 = vmatprep.subr.mxu0 0.0
        %1886 = vmatpush1.xpose.msra.mxu0 0.0
        %1887 = vmatprep.subr.mxu0 0.0
        %1888 = vmatpush1.xpose.msra.mxu0 0.0
        %1889 = vmatprep.subr.mxu0 0.0
        %1890 = vmatpush1.xpose.msra.mxu0 0.0
        %1891 = vmatprep.subr.mxu0 0.0
        %1892 = vmatpush1.xpose.msra.mxu0 0.0
        %1893 = vmatprep.subr.mxu0 0.0
        %1894 = vmatpush1.xpose.msra.mxu0 0.0
        %1895 = vmatprep.subr.mxu0 0.0
        %1896 = vmatpush1.xpose.msra.mxu0 0.0
        %1897 = vmatprep.subr.mxu0 0.0
        %1898 = vmatpush1.xpose.msra.mxu0 0.0
        %1899 = vmatprep.subr.mxu0 0.0
        %1900 = vmatpush1.xpose.msra.mxu0 0.0
        %1901 = vmatprep.subr.mxu0 0.0
        %1902 = vmatpush1.xpose.msra.mxu0 0.0
        %1903 = vmatprep.subr.mxu0 0.0
        %1904 = vmatpush1.xpose.msra.mxu0 0.0
        %1905 = vmatprep.subr.mxu0 0.0
        %1906 = vmatpush1.xpose.msra.mxu0 0.0
        %1907 = vmatprep.subr.mxu0 0.0
        %1908 = vmatpush1.xpose.msra.mxu0 0.0
        %1909 = vmatprep.subr.mxu0 0.0
        %1910 = vmatpush1.xpose.msra.mxu0 0.0
        %1911 = vmatprep.subr.mxu0 0.0
        %1912 = vmatpush1.xpose.msra.mxu0 0.0
        %1913 = vmatprep.subr.mxu0 0.0
        %1914 = vmatpush1.xpose.msra.mxu0 0.0
        %1915 = vmatprep.subr.mxu0 0.0
        %1916 = vmatpush1.xpose.msra.mxu0 0.0
        %1917 = vmatprep.subr.mxu0 0.0
        %1918 = vmatpush1.xpose.msra.mxu0 0.0
        %1919 = vmatprep.subr.mxu0 0.0
        %1920 = vmatpush1.xpose.msra.mxu0 0.0
        %1921 = vmatprep.subr.mxu0 0.0
        %1922 = vmatpush1.xpose.msra.mxu0 0.0
        %1923 = vmatprep.subr.mxu0 0.0
        %1924 = vmatpush1.xpose.msra.mxu0 0.0
        %1925 = vmatprep.subr.mxu0 0.0
        %1926 = vmatpush1.xpose.msra.mxu0 0.0
        %1927 = vmatprep.subr.mxu0 0.0
        %1928 = vmatpush1.xpose.msra.mxu0 0.0
        %1929 = vmatprep.subr.mxu0 0.0
        %1930 = vmatpush1.xpose.msra.mxu0 0.0
        %1931 = vmatprep.subr.mxu0 0.0
        %1932 = vmatpush1.xpose.msra.mxu0 0.0
        %1933 = vmatprep.subr.mxu0 0.0
        %1934 = vmatpush1.xpose.msra.mxu0 0.0
        %1935 = vmatprep.subr.mxu0 0.0
        %1936 = vmatpush1.xpose.msra.mxu0 0.0
        %1937 = vmatprep.mubr.f32.mxu0 0.0
        %1938 = vmatmul.mubr.f32.gmra.mrb[0].mxu0 %v1869
        %v1939 = vpop.f32.mrb[0].mxu0
        %v1940 = vadd.f32 %v363, %v1939
        %v1941 = vpop.f32.mrb[0].mxu0
        %1942 = vdwg.mxu0
        %v1943 = vsel %vm545, %v1940, -inf
        %1944 = vmax.xlane.f32.xlu0 %v1943
        %v1945 = vpop.xlane.xlu0 %1944
        %v1946 = vsub.f32 %v1940, %v1945
        %v1947 = vmul.f32 %v1946, 1.442695
        %v1948 = vpow.pop %v1947
        %v1949 = vsel %vm545, %v1948, 0.0
        %1950 = vadd.xlane.f32.xlu0 %v1949
        %v1951 = vpop.xlane.xlu0 %1950
        %v1952 = vrcp.pop %v1951
        %v1953 = vmul.f32 %v1948, %v1952
        %1954 = vrot.lane.b32.xlu0 %v1698, 56
        %v1955 = vpop.permute.xlu0 %1954
        %v1958 = vsel %vm545, %v1953, 0
        %1960 = vmatprep.subr.mxu0 0.0
        %1961 = vmatpush1.msra.mxu0 %v1955
        %1962 = vmatprep.subr.mxu0 0.0
        %1963 = vmatpush1.msra.mxu0 0.0
        %1964 = vmatprep.subr.mxu0 0.0
        %1965 = vmatpush1.msra.mxu0 0.0
        %1966 = vmatprep.subr.mxu0 0.0
        %1967 = vmatpush1.msra.mxu0 0.0
        %1968 = vmatprep.subr.mxu0 0.0
        %1969 = vmatpush1.msra.mxu0 0.0
        %1970 = vmatprep.subr.mxu0 0.0
        %1971 = vmatpush1.msra.mxu0 0.0
        %1972 = vmatprep.subr.mxu0 0.0
        %1973 = vmatpush1.msra.mxu0 0.0
        %1974 = vmatprep.subr.mxu0 0.0
        %1975 = vmatpush1.msra.mxu0 0.0
        %1976 = vmatprep.subr.mxu0 0.0
        %1977 = vmatpush1.msra.mxu0 0.0
        %1978 = vmatprep.subr.mxu0 0.0
        %1979 = vmatpush1.msra.mxu0 0.0
        %1980 = vmatprep.subr.mxu0 0.0
        %1981 = vmatpush1.msra.mxu0 0.0
        %1982 = vmatprep.subr.mxu0 0.0
        %1983 = vmatpush1.msra.mxu0 0.0
        %1984 = vmatprep.subr.mxu0 0.0
        %1985 = vmatpush1.msra.mxu0 0.0
        %1986 = vmatprep.subr.mxu0 0.0
        %1987 = vmatpush1.msra.mxu0 0.0
        %1988 = vmatprep.subr.mxu0 0.0
        %1989 = vmatpush1.msra.mxu0 0.0
        %1990 = vmatprep.subr.mxu0 0.0
        %1991 = vmatpush1.msra.mxu0 0.0
        %1992 = vmatprep.subr.mxu0 0.0
        %1993 = vmatpush1.msra.mxu0 0.0
        %1994 = vmatprep.subr.mxu0 0.0
        %1995 = vmatpush1.msra.mxu0 0.0
        %1996 = vmatprep.subr.mxu0 0.0
        %1997 = vmatpush1.msra.mxu0 0.0
        %1998 = vmatprep.subr.mxu0 0.0
        %1999 = vmatpush1.msra.mxu0 0.0
        %2000 = vmatprep.subr.mxu0 0.0
        %2001 = vmatpush1.msra.mxu0 0.0
        %2002 = vmatprep.subr.mxu0 0.0
        %2003 = vmatpush1.msra.mxu0 0.0
        %2004 = vmatprep.subr.mxu0 0.0
        %2005 = vmatpush1.msra.mxu0 0.0
        %2006 = vmatprep.subr.mxu0 0.0
        %2007 = vmatpush1.msra.mxu0 0.0
        %2008 = vmatprep.subr.mxu0 0.0
        %2009 = vmatpush1.msra.mxu0 0.0
        %2010 = vmatprep.subr.mxu0 0.0
        %2011 = vmatpush1.msra.mxu0 0.0
        %2012 = vmatprep.subr.mxu0 0.0
        %2013 = vmatpush1.msra.mxu0 0.0
        %2014 = vmatprep.subr.mxu0 0.0
        %2015 = vmatpush1.msra.mxu0 0.0
        %2016 = vmatprep.subr.mxu0 0.0
        %2017 = vmatpush1.msra.mxu0 0.0
        %2018 = vmatprep.subr.mxu0 0.0
        %2019 = vmatpush1.msra.mxu0 0.0
        %2020 = vmatprep.subr.mxu0 0.0
        %2021 = vmatpush1.msra.mxu0 0.0
        %2022 = vmatprep.subr.mxu0 0.0
        %2023 = vmatpush1.msra.mxu0 0.0
        %2024 = vmatprep.mubr.f32.mxu0 0.0
        %2025 = vmatmul.mubr.f32.gmra.mrb[0].mxu0 %v1958
        %v2026 = vpop.f32.mrb[0].mxu0
        %v2027 = vadd.f32 0.0, %v2026
        %v2028 = vpop.f32.mrb[0].mxu0
        %2029 = vdwg.mxu0
        %2030 = vrot.lane.b32.xlu0 %v1698, 112
        %v2031 = vpop.permute.xlu0 %2030
        %2032 = vrot.lane.b32.xlu0 %v1698, 80
        %v2033 = vpop.permute.xlu0 %2032
        %v2034 = vsel %vm545, %v2031, 0
        %v2036 = vsel %vm545, %v2033, 0
        %2038 = vmatprep.subr.mxu0 0.0
        %2039 = vmatpush1.xpose.msra.mxu0 %v2036
        %2040 = vmatprep.subr.mxu0 0.0
        %2041 = vmatpush1.xpose.msra.mxu0 0.0
        %2042 = vmatprep.subr.mxu0 0.0
        %2043 = vmatpush1.xpose.msra.mxu0 0.0
        %2044 = vmatprep.subr.mxu0 0.0
        %2045 = vmatpush1.xpose.msra.mxu0 0.0
        %2046 = vmatprep.subr.mxu0 0.0
        %2047 = vmatpush1.xpose.msra.mxu0 0.0
        %2048 = vmatprep.subr.mxu0 0.0
        %2049 = vmatpush1.xpose.msra.mxu0 0.0
        %2050 = vmatprep.subr.mxu0 0.0
        %2051 = vmatpush1.xpose.msra.mxu0 0.0
        %2052 = vmatprep.subr.mxu0 0.0
        %2053 = vmatpush1.xpose.msra.mxu0 0.0
        %2054 = vmatprep.subr.mxu0 0.0
        %2055 = vmatpush1.xpose.msra.mxu0 0.0
        %2056 = vmatprep.subr.mxu0 0.0
        %2057 = vmatpush1.xpose.msra.mxu0 0.0
        %2058 = vmatprep.subr.mxu0 0.0
        %2059 = vmatpush1.xpose.msra.mxu0 0.0
        %2060 = vmatprep.subr.mxu0 0.0
        %2061 = vmatpush1.xpose.msra.mxu0 0.0
        %2062 = vmatprep.subr.mxu0 0.0
        %2063 = vmatpush1.xpose.msra.mxu0 0.0
        %2064 = vmatprep.subr.mxu0 0.0
        %2065 = vmatpush1.xpose.msra.mxu0 0.0
        %2066 = vmatprep.subr.mxu0 0.0
        %2067 = vmatpush1.xpose.msra.mxu0 0.0
        %2068 = vmatprep.subr.mxu0 0.0
        %2069 = vmatpush1.xpose.msra.mxu0 0.0
        %2070 = vmatprep.subr.mxu0 0.0
        %2071 = vmatpush1.xpose.msra.mxu0 0.0
        %2072 = vmatprep.subr.mxu0 0.0
        %2073 = vmatpush1.xpose.msra.mxu0 0.0
        %2074 = vmatprep.subr.mxu0 0.0
        %2075 = vmatpush1.xpose.msra.mxu0 0.0
        %2076 = vmatprep.subr.mxu0 0.0
        %2077 = vmatpush1.xpose.msra.mxu0 0.0
        %2078 = vmatprep.subr.mxu0 0.0
        %2079 = vmatpush1.xpose.msra.mxu0 0.0
        %2080 = vmatprep.subr.mxu0 0.0
        %2081 = vmatpush1.xpose.msra.mxu0 0.0
        %2082 = vmatprep.subr.mxu0 0.0
        %2083 = vmatpush1.xpose.msra.mxu0 0.0
        %2084 = vmatprep.subr.mxu0 0.0
        %2085 = vmatpush1.xpose.msra.mxu0 0.0
        %2086 = vmatprep.subr.mxu0 0.0
        %2087 = vmatpush1.xpose.msra.mxu0 0.0
        %2088 = vmatprep.subr.mxu0 0.0
        %2089 = vmatpush1.xpose.msra.mxu0 0.0
        %2090 = vmatprep.subr.mxu0 0.0
        %2091 = vmatpush1.xpose.msra.mxu0 0.0
        %2092 = vmatprep.subr.mxu0 0.0
        %2093 = vmatpush1.xpose.msra.mxu0 0.0
        %2094 = vmatprep.subr.mxu0 0.0
        %2095 = vmatpush1.xpose.msra.mxu0 0.0
        %2096 = vmatprep.subr.mxu0 0.0
        %2097 = vmatpush1.xpose.msra.mxu0 0.0
        %2098 = vmatprep.subr.mxu0 0.0
        %2099 = vmatpush1.xpose.msra.mxu0 0.0
        %2100 = vmatprep.subr.mxu0 0.0
        %2101 = vmatpush1.xpose.msra.mxu0 0.0
        %2102 = vmatprep.mubr.f32.mxu0 0.0
        %2103 = vmatmul.mubr.f32.gmra.mrb[0].mxu0 %v2034
        %v2104 = vpop.f32.mrb[0].mxu0
        %v2105 = vadd.f32 %v363, %v2104
        %v2106 = vpop.f32.mrb[0].mxu0
        %2107 = vdwg.mxu0
        %v2108 = vsel %vm545, %v2105, -inf
        %2109 = vmax.xlane.f32.xlu0 %v2108
        %v2110 = vpop.xlane.xlu0 %2109
        %v2111 = vsub.f32 %v2105, %v2110
        %v2112 = vmul.f32 %v2111, 1.442695
        %v2113 = vpow.pop %v2112
        %v2114 = vsel %vm545, %v2113, 0.0
        %2115 = vadd.xlane.f32.xlu0 %v2114
        %v2116 = vpop.xlane.xlu0 %2115
        %v2117 = vrcp.pop %v2116
        %v2118 = vmul.f32 %v2113, %v2117
        %2119 = vrot.lane.b32.xlu0 %v1698, 48
        %v2120 = vpop.permute.xlu0 %2119
        %v2123 = vsel %vm545, %v2118, 0
        %2125 = vmatprep.subr.mxu0 0.0
        %2126 = vmatpush1.msra.mxu0 %v2120
        %2127 = vmatprep.subr.mxu0 0.0
        %2128 = vmatpush1.msra.mxu0 0.0
        %2129 = vmatprep.subr.mxu0 0.0
        %2130 = vmatpush1.msra.mxu0 0.0
        %2131 = vmatprep.subr.mxu0 0.0
        %2132 = vmatpush1.msra.mxu0 0.0
        %2133 = vmatprep.subr.mxu0 0.0
        %2134 = vmatpush1.msra.mxu0 0.0
        %2135 = vmatprep.subr.mxu0 0.0
        %2136 = vmatpush1.msra.mxu0 0.0
        %2137 = vmatprep.subr.mxu0 0.0
        %2138 = vmatpush1.msra.mxu0 0.0
        %2139 = vmatprep.subr.mxu0 0.0
        %2140 = vmatpush1.msra.mxu0 0.0
        %2141 = vmatprep.subr.mxu0 0.0
        %2142 = vmatpush1.msra.mxu0 0.0
        %2143 = vmatprep.subr.mxu0 0.0
        %2144 = vmatpush1.msra.mxu0 0.0
        %2145 = vmatprep.subr.mxu0 0.0
        %2146 = vmatpush1.msra.mxu0 0.0
        %2147 = vmatprep.subr.mxu0 0.0
        %2148 = vmatpush1.msra.mxu0 0.0
        %2149 = vmatprep.subr.mxu0 0.0
        %2150 = vmatpush1.msra.mxu0 0.0
        %2151 = vmatprep.subr.mxu0 0.0
        %2152 = vmatpush1.msra.mxu0 0.0
        %2153 = vmatprep.subr.mxu0 0.0
        %2154 = vmatpush1.msra.mxu0 0.0
        %2155 = vmatprep.subr.mxu0 0.0
        %2156 = vmatpush1.msra.mxu0 0.0
        %2157 = vmatprep.subr.mxu0 0.0
        %2158 = vmatpush1.msra.mxu0 0.0
        %2159 = vmatprep.subr.mxu0 0.0
        %2160 = vmatpush1.msra.mxu0 0.0
        %2161 = vmatprep.subr.mxu0 0.0
        %2162 = vmatpush1.msra.mxu0 0.0
        %2163 = vmatprep.subr.mxu0 0.0
        %2164 = vmatpush1.msra.mxu0 0.0
        %2165 = vmatprep.subr.mxu0 0.0
        %2166 = vmatpush1.msra.mxu0 0.0
        %2167 = vmatprep.subr.mxu0 0.0
        %2168 = vmatpush1.msra.mxu0 0.0
        %2169 = vmatprep.subr.mxu0 0.0
        %2170 = vmatpush1.msra.mxu0 0.0
        %2171 = vmatprep.subr.mxu0 0.0
        %2172 = vmatpush1.msra.mxu0 0.0
        %2173 = vmatprep.subr.mxu0 0.0
        %2174 = vmatpush1.msra.mxu0 0.0
        %2175 = vmatprep.subr.mxu0 0.0
        %2176 = vmatpush1.msra.mxu0 0.0
        %2177 = vmatprep.subr.mxu0 0.0
        %2178 = vmatpush1.msra.mxu0 0.0
        %2179 = vmatprep.subr.mxu0 0.0
        %2180 = vmatpush1.msra.mxu0 0.0
        %2181 = vmatprep.subr.mxu0 0.0
        %2182 = vmatpush1.msra.mxu0 0.0
        %2183 = vmatprep.subr.mxu0 0.0
        %2184 = vmatpush1.msra.mxu0 0.0
        %2185 = vmatprep.subr.mxu0 0.0
        %2186 = vmatpush1.msra.mxu0 0.0
        %2187 = vmatprep.subr.mxu0 0.0
        %2188 = vmatpush1.msra.mxu0 0.0
        %2189 = vmatprep.mubr.f32.mxu0 0.0
        %2190 = vmatmul.mubr.f32.gmra.mrb[0].mxu0 %v2123
        %v2191 = vpop.f32.mrb[0].mxu0
        %v2192 = vadd.f32 0.0, %v2191
        %v2193 = vpop.f32.mrb[0].mxu0
        %2194 = vdwg.mxu0
        %2195 = vrot.lane.b32.xlu0 %v1698, 104
        %v2196 = vpop.permute.xlu0 %2195
        %2197 = vrot.lane.b32.xlu0 %v1698, 72
        %v2198 = vpop.permute.xlu0 %2197
        %v2199 = vsel %vm545, %v2196, 0
        %v2201 = vsel %vm545, %v2198, 0
        %2203 = vmatprep.subr.mxu0 0.0
        %2204 = vmatpush1.xpose.msra.mxu0 %v2201
        %2205 = vmatprep.subr.mxu0 0.0
        %2206 = vmatpush1.xpose.msra.mxu0 0.0
        %2207 = vmatprep.subr.mxu0 0.0
        %2208 = vmatpush1.xpose.msra.mxu0 0.0
        %2209 = vmatprep.subr.mxu0 0.0
        %2210 = vmatpush1.xpose.msra.mxu0 0.0
        %2211 = vmatprep.subr.mxu0 0.0
        %2212 = vmatpush1.xpose.msra.mxu0 0.0
        %2213 = vmatprep.subr.mxu0 0.0
        %2214 = vmatpush1.xpose.msra.mxu0 0.0
        %2215 = vmatprep.subr.mxu0 0.0
        %2216 = vmatpush1.xpose.msra.mxu0 0.0
        %2217 = vmatprep.subr.mxu0 0.0
        %2218 = vmatpush1.xpose.msra.mxu0 0.0
        %2219 = vmatprep.subr.mxu0 0.0
        %2220 = vmatpush1.xpose.msra.mxu0 0.0
        %2221 = vmatprep.subr.mxu0 0.0
        %2222 = vmatpush1.xpose.msra.mxu0 0.0
        %2223 = vmatprep.subr.mxu0 0.0
        %2224 = vmatpush1.xpose.msra.mxu0 0.0
        %2225 = vmatprep.subr.mxu0 0.0
        %2226 = vmatpush1.xpose.msra.mxu0 0.0
        %2227 = vmatprep.subr.mxu0 0.0
        %2228 = vmatpush1.xpose.msra.mxu0 0.0
        %2229 = vmatprep.subr.mxu0 0.0
        %2230 = vmatpush1.xpose.msra.mxu0 0.0
        %2231 = vmatprep.subr.mxu0 0.0
        %2232 = vmatpush1.xpose.msra.mxu0 0.0
        %2233 = vmatprep.subr.mxu0 0.0
        %2234 = vmatpush1.xpose.msra.mxu0 0.0
        %2235 = vmatprep.subr.mxu0 0.0
        %2236 = vmatpush1.xpose.msra.mxu0 0.0
        %2237 = vmatprep.subr.mxu0 0.0
        %2238 = vmatpush1.xpose.msra.mxu0 0.0
        %2239 = vmatprep.subr.mxu0 0.0
        %2240 = vmatpush1.xpose.msra.mxu0 0.0
        %2241 = vmatprep.subr.mxu0 0.0
        %2242 = vmatpush1.xpose.msra.mxu0 0.0
        %2243 = vmatprep.subr.mxu0 0.0
        %2244 = vmatpush1.xpose.msra.mxu0 0.0
        %2245 = vmatprep.subr.mxu0 0.0
        %2246 = vmatpush1.xpose.msra.mxu0 0.0
        %2247 = vmatprep.subr.mxu0 0.0
        %2248 = vmatpush1.xpose.msra.mxu0 0.0
        %2249 = vmatprep.subr.mxu0 0.0
        %2250 = vmatpush1.xpose.msra.mxu0 0.0
        %2251 = vmatprep.subr.mxu0 0.0
        %2252 = vmatpush1.xpose.msra.mxu0 0.0
        %2253 = vmatprep.subr.mxu0 0.0
        %2254 = vmatpush1.xpose.msra.mxu0 0.0
        %2255 = vmatprep.subr.mxu0 0.0
        %2256 = vmatpush1.xpose.msra.mxu0 0.0
        %2257 = vmatprep.subr.mxu0 0.0
        %2258 = vmatpush1.xpose.msra.mxu0 0.0
        %2259 = vmatprep.subr.mxu0 0.0
        %2260 = vmatpush1.xpose.msra.mxu0 0.0
        %2261 = vmatprep.subr.mxu0 0.0
        %2262 = vmatpush1.xpose.msra.mxu0 0.0
        %2263 = vmatprep.subr.mxu0 0.0
        %2264 = vmatpush1.xpose.msra.mxu0 0.0
        %2265 = vmatprep.subr.mxu0 0.0
        %2266 = vmatpush1.xpose.msra.mxu0 0.0
        %2267 = vmatprep.mubr.f32.mxu0 0.0
        %2268 = vmatmul.mubr.f32.gmra.mrb[0].mxu0 %v2199
        %v2269 = vpop.f32.mrb[0].mxu0
        %v2270 = vadd.f32 %v363, %v2269
        %v2271 = vpop.f32.mrb[0].mxu0
        %2272 = vdwg.mxu0
        %v2273 = vsel %vm545, %v2270, -inf
        %2274 = vmax.xlane.f32.xlu0 %v2273
        %v2275 = vpop.xlane.xlu0 %2274
        %v2276 = vsub.f32 %v2270, %v2275
        %v2277 = vmul.f32 %v2276, 1.442695
        %v2278 = vpow.pop %v2277
        %v2279 = vsel %vm545, %v2278, 0.0
        %2280 = vadd.xlane.f32.xlu0 %v2279
        %v2281 = vpop.xlane.xlu0 %2280
        %v2282 = vrcp.pop %v2281
        %v2283 = vmul.f32 %v2278, %v2282
        %2284 = vrot.lane.b32.xlu0 %v1698, 40
        %v2285 = vpop.permute.xlu0 %2284
        %v2288 = vsel %vm545, %v2283, 0
        %2290 = vmatprep.subr.mxu0 0.0
        %2291 = vmatpush1.msra.mxu0 %v2285
        %2292 = vmatprep.subr.mxu0 0.0
        %2293 = vmatpush1.msra.mxu0 0.0
        %2294 = vmatprep.subr.mxu0 0.0
        %2295 = vmatpush1.msra.mxu0 0.0
        %2296 = vmatprep.subr.mxu0 0.0
        %2297 = vmatpush1.msra.mxu0 0.0
        %2298 = vmatprep.subr.mxu0 0.0
        %2299 = vmatpush1.msra.mxu0 0.0
        %2300 = vmatprep.subr.mxu0 0.0
        %2301 = vmatpush1.msra.mxu0 0.0
        %2302 = vmatprep.subr.mxu0 0.0
        %2303 = vmatpush1.msra.mxu0 0.0
        %2304 = vmatprep.subr.mxu0 0.0
        %2305 = vmatpush1.msra.mxu0 0.0
        %2306 = vmatprep.subr.mxu0 0.0
        %2307 = vmatpush1.msra.mxu0 0.0
        %2308 = vmatprep.subr.mxu0 0.0
        %2309 = vmatpush1.msra.mxu0 0.0
        %2310 = vmatprep.subr.mxu0 0.0
        %2311 = vmatpush1.msra.mxu0 0.0
        %2312 = vmatprep.subr.mxu0 0.0
        %2313 = vmatpush1.msra.mxu0 0.0
        %2314 = vmatprep.subr.mxu0 0.0
        %2315 = vmatpush1.msra.mxu0 0.0
        %2316 = vmatprep.subr.mxu0 0.0
        %2317 = vmatpush1.msra.mxu0 0.0
        %2318 = vmatprep.subr.mxu0 0.0
        %2319 = vmatpush1.msra.mxu0 0.0
        %2320 = vmatprep.subr.mxu0 0.0
        %2321 = vmatpush1.msra.mxu0 0.0
        %2322 = vmatprep.subr.mxu0 0.0
        %2323 = vmatpush1.msra.mxu0 0.0
        %2324 = vmatprep.subr.mxu0 0.0
        %2325 = vmatpush1.msra.mxu0 0.0
        %2326 = vmatprep.subr.mxu0 0.0
        %2327 = vmatpush1.msra.mxu0 0.0
        %2328 = vmatprep.subr.mxu0 0.0
        %2329 = vmatpush1.msra.mxu0 0.0
        %2330 = vmatprep.subr.mxu0 0.0
        %2331 = vmatpush1.msra.mxu0 0.0
        %2332 = vmatprep.subr.mxu0 0.0
        %2333 = vmatpush1.msra.mxu0 0.0
        %2334 = vmatprep.subr.mxu0 0.0
        %2335 = vmatpush1.msra.mxu0 0.0
        %2336 = vmatprep.subr.mxu0 0.0
        %2337 = vmatpush1.msra.mxu0 0.0
        %2338 = vmatprep.subr.mxu0 0.0
        %2339 = vmatpush1.msra.mxu0 0.0
        %2340 = vmatprep.subr.mxu0 0.0
        %2341 = vmatpush1.msra.mxu0 0.0
        %2342 = vmatprep.subr.mxu0 0.0
        %2343 = vmatpush1.msra.mxu0 0.0
        %2344 = vmatprep.subr.mxu0 0.0
        %2345 = vmatpush1.msra.mxu0 0.0
        %2346 = vmatprep.subr.mxu0 0.0
        %2347 = vmatpush1.msra.mxu0 0.0
        %2348 = vmatprep.subr.mxu0 0.0
        %2349 = vmatpush1.msra.mxu0 0.0
        %2350 = vmatprep.subr.mxu0 0.0
        %2351 = vmatpush1.msra.mxu0 0.0
        %2352 = vmatprep.subr.mxu0 0.0
        %2353 = vmatpush1.msra.mxu0 0.0
        %2354 = vmatprep.mubr.f32.mxu0 0.0
        %2355 = vmatmul.mubr.f32.gmra.mrb[0].mxu0 %v2288
        %v2356 = vpop.f32.mrb[0].mxu0
        %v2357 = vadd.f32 0.0, %v2356
        %v2358 = vpop.f32.mrb[0].mxu0
        %2359 = vdwg.mxu0
        %2361 = vrot.lane.b32.xlu0 %v2027, 8
        %v2362 = vpop.permute.xlu0 %2361
        %2365 = vrot.lane.b32.xlu0 %v2192, 16
        %v2366 = vpop.permute.xlu0 %2365
        %2369 = vrot.lane.b32.xlu0 %v2357, 24
        %v2370 = vpop.permute.xlu0 %2369
        %v2372 = vsel %vm545, %v1862, %v2362
        %v2373 = vsel %vm1215, %v2372, %v2366
        %v2374 = vsel %vm1217, %v2373, %v2370
        %2375 = vrot.lane.b32.xlu0 %v1589, 96
        %v2376 = vpop.permute.xlu0 %2375
        %2377 = vrot.lane.b32.xlu0 %v1591, 96
        %v2378 = vpop.permute.xlu0 %2377
        %2379 = vrot.lane.b32.xlu0 %v1593, 96
        %v2380 = vpop.permute.xlu0 %2379
        %2381 = vrot.lane.b32.xlu0 %v1595, 96
        %v2382 = vpop.permute.xlu0 %2381
        %v2388 = vsel %vm445, %v2374, 0
        %2390 = vmatprep.subr.mxu0 0.0
        %2391 = vmatpush1.msra.mxu0 %v2376
        %2392 = vmatprep.subr.mxu0 0.0
        %2393 = vmatpush1.msra.mxu0 %v2378
        %2394 = vmatprep.subr.mxu0 0.0
        %2395 = vmatpush1.msra.mxu0 %v2380
        %2396 = vmatprep.subr.mxu0 0.0
        %2397 = vmatpush1.msra.mxu0 %v2382
        %2398 = vmatprep.subr.mxu0 0.0
        %2399 = vmatpush1.msra.mxu0 0.0
        %2400 = vmatprep.subr.mxu0 0.0
        %2401 = vmatpush1.msra.mxu0 0.0
        %2402 = vmatprep.subr.mxu0 0.0
        %2403 = vmatpush1.msra.mxu0 0.0
        %2404 = vmatprep.subr.mxu0 0.0
        %2405 = vmatpush1.msra.mxu0 0.0
        %2406 = vmatprep.subr.mxu0 0.0
        %2407 = vmatpush1.msra.mxu0 0.0
        %2408 = vmatprep.subr.mxu0 0.0
        %2409 = vmatpush1.msra.mxu0 0.0
        %2410 = vmatprep.subr.mxu0 0.0
        %2411 = vmatpush1.msra.mxu0 0.0
        %2412 = vmatprep.subr.mxu0 0.0
        %2413 = vmatpush1.msra.mxu0 0.0
        %2414 = vmatprep.subr.mxu0 0.0
        %2415 = vmatpush1.msra.mxu0 0.0
        %2416 = vmatprep.subr.mxu0 0.0
        %2417 = vmatpush1.msra.mxu0 0.0
        %2418 = vmatprep.subr.mxu0 0.0
        %2419 = vmatpush1.msra.mxu0 0.0
        %2420 = vmatprep.subr.mxu0 0.0
        %2421 = vmatpush1.msra.mxu0 0.0
        %2422 = vmatprep.subr.mxu0 0.0
        %2423 = vmatpush1.msra.mxu0 0.0
        %2424 = vmatprep.subr.mxu0 0.0
        %2425 = vmatpush1.msra.mxu0 0.0
        %2426 = vmatprep.subr.mxu0 0.0
        %2427 = vmatpush1.msra.mxu0 0.0
        %2428 = vmatprep.subr.mxu0 0.0
        %2429 = vmatpush1.msra.mxu0 0.0
        %2430 = vmatprep.subr.mxu0 0.0
        %2431 = vmatpush1.msra.mxu0 0.0
        %2432 = vmatprep.subr.mxu0 0.0
        %2433 = vmatpush1.msra.mxu0 0.0
        %2434 = vmatprep.subr.mxu0 0.0
        %2435 = vmatpush1.msra.mxu0 0.0
        %2436 = vmatprep.subr.mxu0 0.0
        %2437 = vmatpush1.msra.mxu0 0.0
        %2438 = vmatprep.subr.mxu0 0.0
        %2439 = vmatpush1.msra.mxu0 0.0
        %2440 = vmatprep.subr.mxu0 0.0
        %2441 = vmatpush1.msra.mxu0 0.0
        %2442 = vmatprep.subr.mxu0 0.0
        %2443 = vmatpush1.msra.mxu0 0.0
        %2444 = vmatprep.subr.mxu0 0.0
        %2445 = vmatpush1.msra.mxu0 0.0
        %2446 = vmatprep.subr.mxu0 0.0
        %2447 = vmatpush1.msra.mxu0 0.0
        %2448 = vmatprep.subr.mxu0 0.0
        %2449 = vmatpush1.msra.mxu0 0.0
        %2450 = vmatprep.subr.mxu0 0.0
        %2451 = vmatpush1.msra.mxu0 0.0
        %2452 = vmatprep.subr.mxu0 0.0
        %2453 = vmatpush1.msra.mxu0 0.0
        %2454 = vmatprep.mubr.f32.mxu0 0.0
        %2455 = vmatmul.mubr.f32.gmra.mrb[0].mxu0 %v2388
        %v2456 = vpop.f32.mrb[0].mxu0
        %v2457 = vadd.f32 0.0, %v2456
        %v2458 = vpop.f32.mrb[0].mxu0
        %2459 = vdwg.mxu0
        %v2460 = vadd.f32 %v1571, %v2457
        %v2461 = vld [vmem:[%s3 + $0x4] sm:$0x1]
        %v2462 = vmul.f32 %v2460, %v2460
        %v2463 = vsel %vm445, %v2462, 0.0
        %2464 = vadd.xlane.f32.xlu0 %v2463
        %v2465 = vpop.xlane.xlu0 %2464
        %v2466 = vmul.f32 %v2465, %v449
        %v2467 = vadd.f32 %v2466, 1e-06
        %v2468 = vrsqrt.pop %v2467
        %v2469 = vmul.f32 %v2460, %v2468
        %v2470 = vlaneseq
        %v2471 = vshrl.u32 %v2470, 7
        %v2472 = vsub.s32 0, %v2471
        %v2473 = vrot.slane %v2461, %v2472
        %v2474 = vmul.f32 %v2469, %v2473
        %v2480 = vsel %vm445, %v2474, 0
        %2482 = vmatprep.subr.mxu0 0.0
        %2483 = vmatpush1.msra.mxu0 %v1607
        %2484 = vmatprep.subr.mxu0 0.0
        %2485 = vmatpush1.msra.mxu0 %v1611
        %2486 = vmatprep.subr.mxu0 0.0
        %2487 = vmatpush1.msra.mxu0 %v1615
        %2488 = vmatprep.subr.mxu0 0.0
        %2489 = vmatpush1.msra.mxu0 %v1619
        %2490 = vmatprep.subr.mxu0 0.0
        %2491 = vmatpush1.msra.mxu0 0.0
        %2492 = vmatprep.subr.mxu0 0.0
        %2493 = vmatpush1.msra.mxu0 0.0
        %2494 = vmatprep.subr.mxu0 0.0
        %2495 = vmatpush1.msra.mxu0 0.0
        %2496 = vmatprep.subr.mxu0 0.0
        %2497 = vmatpush1.msra.mxu0 0.0
        %2498 = vmatprep.subr.mxu0 0.0
        %2499 = vmatpush1.msra.mxu0 0.0
        %2500 = vmatprep.subr.mxu0 0.0
        %2501 = vmatpush1.msra.mxu0 0.0
        %2502 = vmatprep.subr.mxu0 0.0
        %2503 = vmatpush1.msra.mxu0 0.0
        %2504 = vmatprep.subr.mxu0 0.0
        %2505 = vmatpush1.msra.mxu0 0.0
        %2506 = vmatprep.subr.mxu0 0.0
        %2507 = vmatpush1.msra.mxu0 0.0
        %2508 = vmatprep.subr.mxu0 0.0
        %2509 = vmatpush1.msra.mxu0 0.0
        %2510 = vmatprep.subr.mxu0 0.0
        %2511 = vmatpush1.msra.mxu0 0.0
        %2512 = vmatprep.subr.mxu0 0.0
        %2513 = vmatpush1.msra.mxu0 0.0
        %2514 = vmatprep.subr.mxu0 0.0
        %2515 = vmatpush1.msra.mxu0 0.0
        %2516 = vmatprep.subr.mxu0 0.0
        %2517 = vmatpush1.msra.mxu0 0.0
        %2518 = vmatprep.subr.mxu0 0.0
        %2519 = vmatpush1.msra.mxu0 0.0
        %2520 = vmatprep.subr.mxu0 0.0
        %2521 = vmatpush1.msra.mxu0 0.0
        %2522 = vmatprep.subr.mxu0 0.0
        %2523 = vmatpush1.msra.mxu0 0.0
        %2524 = vmatprep.subr.mxu0 0.0
        %2525 = vmatpush1.msra.mxu0 0.0
        %2526 = vmatprep.subr.mxu0 0.0
        %2527 = vmatpush1.msra.mxu0 0.0
        %2528 = vmatprep.subr.mxu0 0.0
        %2529 = vmatpush1.msra.mxu0 0.0
        %2530 = vmatprep.subr.mxu0 0.0
        %2531 = vmatpush1.msra.mxu0 0.0
        %2532 = vmatprep.subr.mxu0 0.0
        %2533 = vmatpush1.msra.mxu0 0.0
        %2534 = vmatprep.subr.mxu0 0.0
        %2535 = vmatpush1.msra.mxu0 0.0
        %2536 = vmatprep.subr.mxu0 0.0
        %2537 = vmatpush1.msra.mxu0 0.0
        %2538 = vmatprep.subr.mxu0 0.0
        %2539 = vmatpush1.msra.mxu0 0.0
        %2540 = vmatprep.subr.mxu0 0.0
        %2541 = vmatpush1.msra.mxu0 0.0
        %2542 = vmatprep.subr.mxu0 0.0
        %2543 = vmatpush1.msra.mxu0 0.0
        %2544 = vmatprep.subr.mxu0 0.0
        %2545 = vmatpush1.msra.mxu0 0.0
        %2546 = vmatprep.mubr.f32.mxu0 0.0
        %2547 = vmatmul.mubr.f32.gmra.mrb[0].mxu0 %v2480
        %v2548 = vpop.f32.mrb[0].mxu0
        %v2549 = vadd.f32 0.0, %v2548
        %v2550 = vpop.f32.mrb[0].mxu0
        %2551 = vdwg.mxu0
        %v2552 = vld [vmem:[%s4 + $0x10] sm:$0xff]
        %v2553 = vld [vmem:[%s4 + $0x18] sm:$0xff]
        %v2554 = vld [vmem:[%s4 + $0x30] sm:$0xff]
        %v2555 = vld [vmem:[%s4 + $0x38] sm:$0xff]
        %v2556 = vld [vmem:[%s4 + $0x50] sm:$0xff]
        %v2557 = vld [vmem:[%s4 + $0x58] sm:$0xff]
        %v2558 = vld [vmem:[%s4 + $0x70] sm:$0xff]
        %v2559 = vld [vmem:[%s4 + $0x78] sm:$0xff]
        %2568 = vrot.lane.b32.xlu0 %v2552, 32
        %v2569 = vpop.permute.xlu0 %2568
        %2570 = vrot.lane.b32.xlu0 %v2553, 32
        %v2571 = vpop.permute.xlu0 %2570
        %2572 = vrot.lane.b32.xlu0 %v2554, 32
        %v2573 = vpop.permute.xlu0 %2572
        %2574 = vrot.lane.b32.xlu0 %v2555, 32
        %v2575 = vpop.permute.xlu0 %2574
        %2576 = vrot.lane.b32.xlu0 %v2556, 32
        %v2577 = vpop.permute.xlu0 %2576
        %2578 = vrot.lane.b32.xlu0 %v2557, 32
        %v2579 = vpop.permute.xlu0 %2578
        %2580 = vrot.lane.b32.xlu0 %v2558, 32
        %v2581 = vpop.permute.xlu0 %2580
        %2582 = vrot.lane.b32.xlu0 %v2559, 32
        %v2583 = vpop.permute.xlu0 %2582
        %v2584 = vsel %vm445, %v2569, %v2571
        %v2585 = vsel %vm445, %v2573, %v2575
        %v2586 = vsel %vm445, %v2577, %v2579
        %v2587 = vsel %vm445, %v2581, %v2583
        %v2593 = vsel %vm445, %v1497, 0
        %2595 = vmatprep.subr.mxu0 0.0
        %2596 = vmatpush1.msra.mxu0 %v2584
        %2597 = vmatprep.subr.mxu0 0.0
        %2598 = vmatpush1.msra.mxu0 %v2585
        %2599 = vmatprep.subr.mxu0 0.0
        %2600 = vmatpush1.msra.mxu0 %v2586
        %2601 = vmatprep.subr.mxu0 0.0
        %2602 = vmatpush1.msra.mxu0 %v2587
        %2603 = vmatprep.subr.mxu0 0.0
        %2604 = vmatpush1.msra.mxu0 0.0
        %2605 = vmatprep.subr.mxu0 0.0
        %2606 = vmatpush1.msra.mxu0 0.0
        %2607 = vmatprep.subr.mxu0 0.0
        %2608 = vmatpush1.msra.mxu0 0.0
        %2609 = vmatprep.subr.mxu0 0.0
        %2610 = vmatpush1.msra.mxu0 0.0
        %2611 = vmatprep.subr.mxu0 0.0
        %2612 = vmatpush1.msra.mxu0 0.0
        %2613 = vmatprep.subr.mxu0 0.0
        %2614 = vmatpush1.msra.mxu0 0.0
        %2615 = vmatprep.subr.mxu0 0.0
        %2616 = vmatpush1.msra.mxu0 0.0
        %2617 = vmatprep.subr.mxu0 0.0
        %2618 = vmatpush1.msra.mxu0 0.0
        %2619 = vmatprep.subr.mxu0 0.0
        %2620 = vmatpush1.msra.mxu0 0.0
        %2621 = vmatprep.subr.mxu0 0.0
        %2622 = vmatpush1.msra.mxu0 0.0
        %2623 = vmatprep.subr.mxu0 0.0
        %2624 = vmatpush1.msra.mxu0 0.0
        %2625 = vmatprep.subr.mxu0 0.0
        %2626 = vmatpush1.msra.mxu0 0.0
        %2627 = vmatprep.subr.mxu0 0.0
        %2628 = vmatpush1.msra.mxu0 0.0
        %2629 = vmatprep.subr.mxu0 0.0
        %2630 = vmatpush1.msra.mxu0 0.0
        %2631 = vmatprep.subr.mxu0 0.0
        %2632 = vmatpush1.msra.mxu0 0.0
        %2633 = vmatprep.subr.mxu0 0.0
        %2634 = vmatpush1.msra.mxu0 0.0
        %2635 = vmatprep.subr.mxu0 0.0
        %2636 = vmatpush1.msra.mxu0 0.0
        %2637 = vmatprep.subr.mxu0 0.0
        %2638 = vmatpush1.msra.mxu0 0.0
        %2639 = vmatprep.subr.mxu0 0.0
        %2640 = vmatpush1.msra.mxu0 0.0
        %2641 = vmatprep.subr.mxu0 0.0
        %2642 = vmatpush1.msra.mxu0 0.0
        %2643 = vmatprep.subr.mxu0 0.0
        %2644 = vmatpush1.msra.mxu0 0.0
        %2645 = vmatprep.subr.mxu0 0.0
        %2646 = vmatpush1.msra.mxu0 0.0
        %2647 = vmatprep.subr.mxu0 0.0
        %2648 = vmatpush1.msra.mxu0 0.0
        %2649 = vmatprep.subr.mxu0 0.0
        %2650 = vmatpush1.msra.mxu0 0.0
        %2651 = vmatprep.subr.mxu0 0.0
        %2652 = vmatpush1.msra.mxu0 0.0
        %2653 = vmatprep.subr.mxu0 0.0
        %2654 = vmatpush1.msra.mxu0 0.0
        %2655 = vmatprep.subr.mxu0 0.0
        %2656 = vmatpush1.msra.mxu0 0.0
        %2657 = vmatprep.subr.mxu0 0.0
        %2658 = vmatpush1.msra.mxu0 0.0
        %2659 = vmatprep.mubr.f32.mxu0 0.0
        %2660 = vmatmul.mubr.f32.gmra.mrb[0].mxu0 %v2593
        %v2661 = vpop.f32.mrb[0].mxu0
        %v2662 = vadd.f32 0.0, %v2661
        %v2663 = vpop.f32.mrb[0].mxu0
        %2664 = vdwg.mxu0
        %v2666 = vsel %vm545, %v2549, 0
        %v2669 = vsel %vm545, %v2662, 0
        %2671 = vmatprep.subr.mxu0 0.0
        %2672 = vmatpush1.xpose.msra.mxu0 %v2669
        %2673 = vmatprep.subr.mxu0 0.0
        %2674 = vmatpush1.xpose.msra.mxu0 0.0
        %2675 = vmatprep.subr.mxu0 0.0
        %2676 = vmatpush1.xpose.msra.mxu0 0.0
        %2677 = vmatprep.subr.mxu0 0.0
        %2678 = vmatpush1.xpose.msra.mxu0 0.0
        %2679 = vmatprep.subr.mxu0 0.0
        %2680 = vmatpush1.xpose.msra.mxu0 0.0
        %2681 = vmatprep.subr.mxu0 0.0
        %2682 = vmatpush1.xpose.msra.mxu0 0.0
        %2683 = vmatprep.subr.mxu0 0.0
        %2684 = vmatpush1.xpose.msra.mxu0 0.0
        %2685 = vmatprep.subr.mxu0 0.0
        %2686 = vmatpush1.xpose.msra.mxu0 0.0
        %2687 = vmatprep.subr.mxu0 0.0
        %2688 = vmatpush1.xpose.msra.mxu0 0.0
        %2689 = vmatprep.subr.mxu0 0.0
        %2690 = vmatpush1.xpose.msra.mxu0 0.0
        %2691 = vmatprep.subr.mxu0 0.0
        %2692 = vmatpush1.xpose.msra.mxu0 0.0
        %2693 = vmatprep.subr.mxu0 0.0
        %2694 = vmatpush1.xpose.msra.mxu0 0.0
        %2695 = vmatprep.subr.mxu0 0.0
        %2696 = vmatpush1.xpose.msra.mxu0 0.0
        %2697 = vmatprep.subr.mxu0 0.0
        %2698 = vmatpush1.xpose.msra.mxu0 0.0
        %2699 = vmatprep.subr.mxu0 0.0
        %2700 = vmatpush1.xpose.msra.mxu0 0.0
        %2701 = vmatprep.subr.mxu0 0.0
        %2702 = vmatpush1.xpose.msra.mxu0 0.0
        %2703 = vmatprep.subr.mxu0 0.0
        %2704 = vmatpush1.xpose.msra.mxu0 0.0
        %2705 = vmatprep.subr.mxu0 0.0
        %2706 = vmatpush1.xpose.msra.mxu0 0.0
        %2707 = vmatprep.subr.mxu0 0.0
        %2708 = vmatpush1.xpose.msra.mxu0 0.0
        %2709 = vmatprep.subr.mxu0 0.0
        %2710 = vmatpush1.xpose.msra.mxu0 0.0
        %2711 = vmatprep.subr.mxu0 0.0
        %2712 = vmatpush1.xpose.msra.mxu0 0.0
        %2713 = vmatprep.subr.mxu0 0.0
        %2714 = vmatpush1.xpose.msra.mxu0 0.0
        %2715 = vmatprep.subr.mxu0 0.0
        %2716 = vmatpush1.xpose.msra.mxu0 0.0
        %2717 = vmatprep.subr.mxu0 0.0
        %2718 = vmatpush1.xpose.msra.mxu0 0.0
        %2719 = vmatprep.subr.mxu0 0.0
        %2720 = vmatpush1.xpose.msra.mxu0 0.0
        %2721 = vmatprep.subr.mxu0 0.0
        %2722 = vmatpush1.xpose.msra.mxu0 0.0
        %2723 = vmatprep.subr.mxu0 0.0
        %2724 = vmatpush1.xpose.msra.mxu0 0.0
        %2725 = vmatprep.subr.mxu0 0.0
        %2726 = vmatpush1.xpose.msra.mxu0 0.0
        %2727 = vmatprep.subr.mxu0 0.0
        %2728 = vmatpush1.xpose.msra.mxu0 0.0
        %2729 = vmatprep.subr.mxu0 0.0
        %2730 = vmatpush1.xpose.msra.mxu0 0.0
        %2731 = vmatprep.subr.mxu0 0.0
        %2732 = vmatpush1.xpose.msra.mxu0 0.0
        %2733 = vmatprep.subr.mxu0 0.0
        %2734 = vmatpush1.xpose.msra.mxu0 0.0
        %2735 = vmatprep.mubr.f32.mxu0 0.0
        %2736 = vmatmul.mubr.f32.gmra.mrb[0].mxu0 %v2666
        %v2737 = vpop.f32.mrb[0].mxu0
        %v2738 = vadd.f32 %v540, %v2737
        %v2739 = vpop.f32.mrb[0].mxu0
        %2740 = vdwg.mxu0
        %v2741 = vsel %vm545, %v2738, -inf
        %2742 = vmax.xlane.f32.xlu0 %v2741
        %v2743 = vpop.xlane.xlu0 %2742
        %v2744 = vsub.f32 %v2738, %v2743
        %v2745 = vmul.f32 %v2744, 1.442695
        %v2746 = vpow.pop %v2745
        %v2747 = vsel %vm545, %v2746, 0.0
        %2748 = vadd.xlane.f32.xlu0 %v2747
        %v2749 = vpop.xlane.xlu0 %2748
        %v2750 = vrcp.pop %v2749
        %v2751 = vmul.f32 %v2746, %v2750
        %2752 = vrot.lane.b32.xlu0 %v2662, 96
        %v2753 = vpop.permute.xlu0 %2752
        %v2756 = vsel %vm545, %v2751, 0
        %2758 = vmatprep.subr.mxu0 0.0
        %2759 = vmatpush1.msra.mxu0 %v2753
        %2760 = vmatprep.subr.mxu0 0.0
        %2761 = vmatpush1.msra.mxu0 0.0
        %2762 = vmatprep.subr.mxu0 0.0
        %2763 = vmatpush1.msra.mxu0 0.0
        %2764 = vmatprep.subr.mxu0 0.0
        %2765 = vmatpush1.msra.mxu0 0.0
        %2766 = vmatprep.subr.mxu0 0.0
        %2767 = vmatpush1.msra.mxu0 0.0
        %2768 = vmatprep.subr.mxu0 0.0
        %2769 = vmatpush1.msra.mxu0 0.0
        %2770 = vmatprep.subr.mxu0 0.0
        %2771 = vmatpush1.msra.mxu0 0.0
        %2772 = vmatprep.subr.mxu0 0.0
        %2773 = vmatpush1.msra.mxu0 0.0
        %2774 = vmatprep.subr.mxu0 0.0
        %2775 = vmatpush1.msra.mxu0 0.0
        %2776 = vmatprep.subr.mxu0 0.0
        %2777 = vmatpush1.msra.mxu0 0.0
        %2778 = vmatprep.subr.mxu0 0.0
        %2779 = vmatpush1.msra.mxu0 0.0
        %2780 = vmatprep.subr.mxu0 0.0
        %2781 = vmatpush1.msra.mxu0 0.0
        %2782 = vmatprep.subr.mxu0 0.0
        %2783 = vmatpush1.msra.mxu0 0.0
        %2784 = vmatprep.subr.mxu0 0.0
        %2785 = vmatpush1.msra.mxu0 0.0
        %2786 = vmatprep.subr.mxu0 0.0
        %2787 = vmatpush1.msra.mxu0 0.0
        %2788 = vmatprep.subr.mxu0 0.0
        %2789 = vmatpush1.msra.mxu0 0.0
        %2790 = vmatprep.subr.mxu0 0.0
        %2791 = vmatpush1.msra.mxu0 0.0
        %2792 = vmatprep.subr.mxu0 0.0
        %2793 = vmatpush1.msra.mxu0 0.0
        %2794 = vmatprep.subr.mxu0 0.0
        %2795 = vmatpush1.msra.mxu0 0.0
        %2796 = vmatprep.subr.mxu0 0.0
        %2797 = vmatpush1.msra.mxu0 0.0
        %2798 = vmatprep.subr.mxu0 0.0
        %2799 = vmatpush1.msra.mxu0 0.0
        %2800 = vmatprep.subr.mxu0 0.0
        %2801 = vmatpush1.msra.mxu0 0.0
        %2802 = vmatprep.subr.mxu0 0.0
        %2803 = vmatpush1.msra.mxu0 0.0
        %2804 = vmatprep.subr.mxu0 0.0
        %2805 = vmatpush1.msra.mxu0 0.0
        %2806 = vmatprep.subr.mxu0 0.0
        %2807 = vmatpush1.msra.mxu0 0.0
        %2808 = vmatprep.subr.mxu0 0.0
        %2809 = vmatpush1.msra.mxu0 0.0
        %2810 = vmatprep.subr.mxu0 0.0
        %2811 = vmatpush1.msra.mxu0 0.0
        %2812 = vmatprep.subr.mxu0 0.0
        %2813 = vmatpush1.msra.mxu0 0.0
        %2814 = vmatprep.subr.mxu0 0.0
        %2815 = vmatpush1.msra.mxu0 0.0
        %2816 = vmatprep.subr.mxu0 0.0
        %2817 = vmatpush1.msra.mxu0 0.0
        %2818 = vmatprep.subr.mxu0 0.0
        %2819 = vmatpush1.msra.mxu0 0.0
        %2820 = vmatprep.subr.mxu0 0.0
        %2821 = vmatpush1.msra.mxu0 0.0
        %2822 = vmatprep.mubr.f32.mxu0 0.0
        %2823 = vmatmul.mubr.f32.gmra.mrb[0].mxu0 %v2756
        %v2824 = vpop.f32.mrb[0].mxu0
        %v2825 = vadd.f32 0.0, %v2824
        %v2826 = vpop.f32.mrb[0].mxu0
        %2827 = vdwg.mxu0
        %2828 = vrot.lane.b32.xlu0 %v2549, 120
        %v2829 = vpop.permute.xlu0 %2828
        %2830 = vrot.lane.b32.xlu0 %v2662, 120
        %v2831 = vpop.permute.xlu0 %2830
        %v2832 = vsel %vm545, %v2829, 0
        %v2834 = vsel %vm545, %v2831, 0
        %2836 = vmatprep.subr.mxu0 0.0
        %2837 = vmatpush1.xpose.msra.mxu0 %v2834
        %2838 = vmatprep.subr.mxu0 0.0
        %2839 = vmatpush1.xpose.msra.mxu0 0.0
        %2840 = vmatprep.subr.mxu0 0.0
        %2841 = vmatpush1.xpose.msra.mxu0 0.0
        %2842 = vmatprep.subr.mxu0 0.0
        %2843 = vmatpush1.xpose.msra.mxu0 0.0
        %2844 = vmatprep.subr.mxu0 0.0
        %2845 = vmatpush1.xpose.msra.mxu0 0.0
        %2846 = vmatprep.subr.mxu0 0.0
        %2847 = vmatpush1.xpose.msra.mxu0 0.0
        %2848 = vmatprep.subr.mxu0 0.0
        %2849 = vmatpush1.xpose.msra.mxu0 0.0
        %2850 = vmatprep.subr.mxu0 0.0
        %2851 = vmatpush1.xpose.msra.mxu0 0.0
        %2852 = vmatprep.subr.mxu0 0.0
        %2853 = vmatpush1.xpose.msra.mxu0 0.0
        %2854 = vmatprep.subr.mxu0 0.0
        %2855 = vmatpush1.xpose.msra.mxu0 0.0
        %2856 = vmatprep.subr.mxu0 0.0
        %2857 = vmatpush1.xpose.msra.mxu0 0.0
        %2858 = vmatprep.subr.mxu0 0.0
        %2859 = vmatpush1.xpose.msra.mxu0 0.0
        %2860 = vmatprep.subr.mxu0 0.0
        %2861 = vmatpush1.xpose.msra.mxu0 0.0
        %2862 = vmatprep.subr.mxu0 0.0
        %2863 = vmatpush1.xpose.msra.mxu0 0.0
        %2864 = vmatprep.subr.mxu0 0.0
        %2865 = vmatpush1.xpose.msra.mxu0 0.0
        %2866 = vmatprep.subr.mxu0 0.0
        %2867 = vmatpush1.xpose.msra.mxu0 0.0
        %2868 = vmatprep.subr.mxu0 0.0
        %2869 = vmatpush1.xpose.msra.mxu0 0.0
        %2870 = vmatprep.subr.mxu0 0.0
        %2871 = vmatpush1.xpose.msra.mxu0 0.0
        %2872 = vmatprep.subr.mxu0 0.0
        %2873 = vmatpush1.xpose.msra.mxu0 0.0
        %2874 = vmatprep.subr.mxu0 0.0
        %2875 = vmatpush1.xpose.msra.mxu0 0.0
        %2876 = vmatprep.subr.mxu0 0.0
        %2877 = vmatpush1.xpose.msra.mxu0 0.0
        %2878 = vmatprep.subr.mxu0 0.0
        %2879 = vmatpush1.xpose.msra.mxu0 0.0
        %2880 = vmatprep.subr.mxu0 0.0
        %2881 = vmatpush1.xpose.msra.mxu0 0.0
        %2882 = vmatprep.subr.mxu0 0.0
        %2883 = vmatpush1.xpose.msra.mxu0 0.0
        %2884 = vmatprep.subr.mxu0 0.0
        %2885 = vmatpush1.xpose.msra.mxu0 0.0
        %2886 = vmatprep.subr.mxu0 0.0
        %2887 = vmatpush1.xpose.msra.mxu0 0.0
        %2888 = vmatprep.subr.mxu0 0.0
        %2889 = vmatpush1.xpose.msra.mxu0 0.0
        %2890 = vmatprep.subr.mxu0 0.0
        %2891 = vmatpush1.xpose.msra.mxu0 0.0
        %2892 = vmatprep.subr.mxu0 0.0
        %2893 = vmatpush1.xpose.msra.mxu0 0.0
        %2894 = vmatprep.subr.mxu0 0.0
        %2895 = vmatpush1.xpose.msra.mxu0 0.0
        %2896 = vmatprep.subr.mxu0 0.0
        %2897 = vmatpush1.xpose.msra.mxu0 0.0
        %2898 = vmatprep.subr.mxu0 0.0
        %2899 = vmatpush1.xpose.msra.mxu0 0.0
        %2900 = vmatprep.mubr.f32.mxu0 0.0
        %2901 = vmatmul.mubr.f32.gmra.mrb[0].mxu0 %v2832
        %v2902 = vpop.f32.mrb[0].mxu0
        %v2903 = vadd.f32 %v540, %v2902
        %v2904 = vpop.f32.mrb[0].mxu0
        %2905 = vdwg.mxu0
        %v2906 = vsel %vm545, %v2903, -inf
        %2907 = vmax.xlane.f32.xlu0 %v2906
        %v2908 = vpop.xlane.xlu0 %2907
        %v2909 = vsub.f32 %v2903, %v2908
        %v2910 = vmul.f32 %v2909, 1.442695
        %v2911 = vpow.pop %v2910
        %v2912 = vsel %vm545, %v2911, 0.0
        %2913 = vadd.xlane.f32.xlu0 %v2912
        %v2914 = vpop.xlane.xlu0 %2913
        %v2915 = vrcp.pop %v2914
        %v2916 = vmul.f32 %v2911, %v2915
        %2917 = vrot.lane.b32.xlu0 %v2662, 88
        %v2918 = vpop.permute.xlu0 %2917
        %v2921 = vsel %vm545, %v2916, 0
        %2923 = vmatprep.subr.mxu0 0.0
        %2924 = vmatpush1.msra.mxu0 %v2918
        %2925 = vmatprep.subr.mxu0 0.0
        %2926 = vmatpush1.msra.mxu0 0.0
        %2927 = vmatprep.subr.mxu0 0.0
        %2928 = vmatpush1.msra.mxu0 0.0
        %2929 = vmatprep.subr.mxu0 0.0
        %2930 = vmatpush1.msra.mxu0 0.0
        %2931 = vmatprep.subr.mxu0 0.0
        %2932 = vmatpush1.msra.mxu0 0.0
        %2933 = vmatprep.subr.mxu0 0.0
        %2934 = vmatpush1.msra.mxu0 0.0
        %2935 = vmatprep.subr.mxu0 0.0
        %2936 = vmatpush1.msra.mxu0 0.0
        %2937 = vmatprep.subr.mxu0 0.0
        %2938 = vmatpush1.msra.mxu0 0.0
        %2939 = vmatprep.subr.mxu0 0.0
        %2940 = vmatpush1.msra.mxu0 0.0
        %2941 = vmatprep.subr.mxu0 0.0
        %2942 = vmatpush1.msra.mxu0 0.0
        %2943 = vmatprep.subr.mxu0 0.0
        %2944 = vmatpush1.msra.mxu0 0.0
        %2945 = vmatprep.subr.mxu0 0.0
        %2946 = vmatpush1.msra.mxu0 0.0
        %2947 = vmatprep.subr.mxu0 0.0
        %2948 = vmatpush1.msra.mxu0 0.0
        %2949 = vmatprep.subr.mxu0 0.0
        %2950 = vmatpush1.msra.mxu0 0.0
        %2951 = vmatprep.subr.mxu0 0.0
        %2952 = vmatpush1.msra.mxu0 0.0
        %2953 = vmatprep.subr.mxu0 0.0
        %2954 = vmatpush1.msra.mxu0 0.0
        %2955 = vmatprep.subr.mxu0 0.0
        %2956 = vmatpush1.msra.mxu0 0.0
        %2957 = vmatprep.subr.mxu0 0.0
        %2958 = vmatpush1.msra.mxu0 0.0
        %2959 = vmatprep.subr.mxu0 0.0
        %2960 = vmatpush1.msra.mxu0 0.0
        %2961 = vmatprep.subr.mxu0 0.0
        %2962 = vmatpush1.msra.mxu0 0.0
        %2963 = vmatprep.subr.mxu0 0.0
        %2964 = vmatpush1.msra.mxu0 0.0
        %2965 = vmatprep.subr.mxu0 0.0
        %2966 = vmatpush1.msra.mxu0 0.0
        %2967 = vmatprep.subr.mxu0 0.0
        %2968 = vmatpush1.msra.mxu0 0.0
        %2969 = vmatprep.subr.mxu0 0.0
        %2970 = vmatpush1.msra.mxu0 0.0
        %2971 = vmatprep.subr.mxu0 0.0
        %2972 = vmatpush1.msra.mxu0 0.0
        %2973 = vmatprep.subr.mxu0 0.0
        %2974 = vmatpush1.msra.mxu0 0.0
        %2975 = vmatprep.subr.mxu0 0.0
        %2976 = vmatpush1.msra.mxu0 0.0
        %2977 = vmatprep.subr.mxu0 0.0
        %2978 = vmatpush1.msra.mxu0 0.0
        %2979 = vmatprep.subr.mxu0 0.0
        %2980 = vmatpush1.msra.mxu0 0.0
        %2981 = vmatprep.subr.mxu0 0.0
        %2982 = vmatpush1.msra.mxu0 0.0
        %2983 = vmatprep.subr.mxu0 0.0
        %2984 = vmatpush1.msra.mxu0 0.0
        %2985 = vmatprep.subr.mxu0 0.0
        %2986 = vmatpush1.msra.mxu0 0.0
        %2987 = vmatprep.mubr.f32.mxu0 0.0
        %2988 = vmatmul.mubr.f32.gmra.mrb[0].mxu0 %v2921
        %v2989 = vpop.f32.mrb[0].mxu0
        %v2990 = vadd.f32 0.0, %v2989
        %v2991 = vpop.f32.mrb[0].mxu0
        %2992 = vdwg.mxu0
        %2993 = vrot.lane.b32.xlu0 %v2549, 112
        %v2994 = vpop.permute.xlu0 %2993
        %2995 = vrot.lane.b32.xlu0 %v2662, 112
        %v2996 = vpop.permute.xlu0 %2995
        %v2997 = vsel %vm545, %v2994, 0
        %v2999 = vsel %vm545, %v2996, 0
        %3001 = vmatprep.subr.mxu0 0.0
        %3002 = vmatpush1.xpose.msra.mxu0 %v2999
        %3003 = vmatprep.subr.mxu0 0.0
        %3004 = vmatpush1.xpose.msra.mxu0 0.0
        %3005 = vmatprep.subr.mxu0 0.0
        %3006 = vmatpush1.xpose.msra.mxu0 0.0
        %3007 = vmatprep.subr.mxu0 0.0
        %3008 = vmatpush1.xpose.msra.mxu0 0.0
        %3009 = vmatprep.subr.mxu0 0.0
        %3010 = vmatpush1.xpose.msra.mxu0 0.0
        %3011 = vmatprep.subr.mxu0 0.0
        %3012 = vmatpush1.xpose.msra.mxu0 0.0
        %3013 = vmatprep.subr.mxu0 0.0
        %3014 = vmatpush1.xpose.msra.mxu0 0.0
        %3015 = vmatprep.subr.mxu0 0.0
        %3016 = vmatpush1.xpose.msra.mxu0 0.0
        %3017 = vmatprep.subr.mxu0 0.0
        %3018 = vmatpush1.xpose.msra.mxu0 0.0
        %3019 = vmatprep.subr.mxu0 0.0
        %3020 = vmatpush1.xpose.msra.mxu0 0.0
        %3021 = vmatprep.subr.mxu0 0.0
        %3022 = vmatpush1.xpose.msra.mxu0 0.0
        %3023 = vmatprep.subr.mxu0 0.0
        %3024 = vmatpush1.xpose.msra.mxu0 0.0
        %3025 = vmatprep.subr.mxu0 0.0
        %3026 = vmatpush1.xpose.msra.mxu0 0.0
        %3027 = vmatprep.subr.mxu0 0.0
        %3028 = vmatpush1.xpose.msra.mxu0 0.0
        %3029 = vmatprep.subr.mxu0 0.0
        %3030 = vmatpush1.xpose.msra.mxu0 0.0
        %3031 = vmatprep.subr.mxu0 0.0
        %3032 = vmatpush1.xpose.msra.mxu0 0.0
        %3033 = vmatprep.subr.mxu0 0.0
        %3034 = vmatpush1.xpose.msra.mxu0 0.0
        %3035 = vmatprep.subr.mxu0 0.0
        %3036 = vmatpush1.xpose.msra.mxu0 0.0
        %3037 = vmatprep.subr.mxu0 0.0
        %3038 = vmatpush1.xpose.msra.mxu0 0.0
        %3039 = vmatprep.subr.mxu0 0.0
        %3040 = vmatpush1.xpose.msra.mxu0 0.0
        %3041 = vmatprep.subr.mxu0 0.0
        %3042 = vmatpush1.xpose.msra.mxu0 0.0
        %3043 = vmatprep.subr.mxu0 0.0
        %3044 = vmatpush1.xpose.msra.mxu0 0.0
        %3045 = vmatprep.subr.mxu0 0.0
        %3046 = vmatpush1.xpose.msra.mxu0 0.0
        %3047 = vmatprep.subr.mxu0 0.0
        %3048 = vmatpush1.xpose.msra.mxu0 0.0
        %3049 = vmatprep.subr.mxu0 0.0
        %3050 = vmatpush1.xpose.msra.mxu0 0.0
        %3051 = vmatprep.subr.mxu0 0.0
        %3052 = vmatpush1.xpose.msra.mxu0 0.0
        %3053 = vmatprep.subr.mxu0 0.0
        %3054 = vmatpush1.xpose.msra.mxu0 0.0
        %3055 = vmatprep.subr.mxu0 0.0
        %3056 = vmatpush1.xpose.msra.mxu0 0.0
        %3057 = vmatprep.subr.mxu0 0.0
        %3058 = vmatpush1.xpose.msra.mxu0 0.0
        %3059 = vmatprep.subr.mxu0 0.0
        %3060 = vmatpush1.xpose.msra.mxu0 0.0
        %3061 = vmatprep.subr.mxu0 0.0
        %3062 = vmatpush1.xpose.msra.mxu0 0.0
        %3063 = vmatprep.subr.mxu0 0.0
        %3064 = vmatpush1.xpose.msra.mxu0 0.0
        %3065 = vmatprep.mubr.f32.mxu0 0.0
        %3066 = vmatmul.mubr.f32.gmra.mrb[0].mxu0 %v2997
        %v3067 = vpop.f32.mrb[0].mxu0
        %v3068 = vadd.f32 %v540, %v3067
        %v3069 = vpop.f32.mrb[0].mxu0
        %3070 = vdwg.mxu0
        %v3071 = vsel %vm545, %v3068, -inf
        %3072 = vmax.xlane.f32.xlu0 %v3071
        %v3073 = vpop.xlane.xlu0 %3072
        %v3074 = vsub.f32 %v3068, %v3073
        %v3075 = vmul.f32 %v3074, 1.442695
        %v3076 = vpow.pop %v3075
        %v3077 = vsel %vm545, %v3076, 0.0
        %3078 = vadd.xlane.f32.xlu0 %v3077
        %v3079 = vpop.xlane.xlu0 %3078
        %v3080 = vrcp.pop %v3079
        %v3081 = vmul.f32 %v3076, %v3080
        %3082 = vrot.lane.b32.xlu0 %v2662, 80
        %v3083 = vpop.permute.xlu0 %3082
        %v3086 = vsel %vm545, %v3081, 0
        %3088 = vmatprep.subr.mxu0 0.0
        %3089 = vmatpush1.msra.mxu0 %v3083
        %3090 = vmatprep.subr.mxu0 0.0
        %3091 = vmatpush1.msra.mxu0 0.0
        %3092 = vmatprep.subr.mxu0 0.0
        %3093 = vmatpush1.msra.mxu0 0.0
        %3094 = vmatprep.subr.mxu0 0.0
        %3095 = vmatpush1.msra.mxu0 0.0
        %3096 = vmatprep.subr.mxu0 0.0
        %3097 = vmatpush1.msra.mxu0 0.0
        %3098 = vmatprep.subr.mxu0 0.0
        %3099 = vmatpush1.msra.mxu0 0.0
        %3100 = vmatprep.subr.mxu0 0.0
        %3101 = vmatpush1.msra.mxu0 0.0
        %3102 = vmatprep.subr.mxu0 0.0
        %3103 = vmatpush1.msra.mxu0 0.0
        %3104 = vmatprep.subr.mxu0 0.0
        %3105 = vmatpush1.msra.mxu0 0.0
        %3106 = vmatprep.subr.mxu0 0.0
        %3107 = vmatpush1.msra.mxu0 0.0
        %3108 = vmatprep.subr.mxu0 0.0
        %3109 = vmatpush1.msra.mxu0 0.0
        %3110 = vmatprep.subr.mxu0 0.0
        %3111 = vmatpush1.msra.mxu0 0.0
        %3112 = vmatprep.subr.mxu0 0.0
        %3113 = vmatpush1.msra.mxu0 0.0
        %3114 = vmatprep.subr.mxu0 0.0
        %3115 = vmatpush1.msra.mxu0 0.0
        %3116 = vmatprep.subr.mxu0 0.0
        %3117 = vmatpush1.msra.mxu0 0.0
        %3118 = vmatprep.subr.mxu0 0.0
        %3119 = vmatpush1.msra.mxu0 0.0
        %3120 = vmatprep.subr.mxu0 0.0
        %3121 = vmatpush1.msra.mxu0 0.0
        %3122 = vmatprep.subr.mxu0 0.0
        %3123 = vmatpush1.msra.mxu0 0.0
        %3124 = vmatprep.subr.mxu0 0.0
        %3125 = vmatpush1.msra.mxu0 0.0
        %3126 = vmatprep.subr.mxu0 0.0
        %3127 = vmatpush1.msra.mxu0 0.0
        %3128 = vmatprep.subr.mxu0 0.0
        %3129 = vmatpush1.msra.mxu0 0.0
        %3130 = vmatprep.subr.mxu0 0.0
        %3131 = vmatpush1.msra.mxu0 0.0
        %3132 = vmatprep.subr.mxu0 0.0
        %3133 = vmatpush1.msra.mxu0 0.0
        %3134 = vmatprep.subr.mxu0 0.0
        %3135 = vmatpush1.msra.mxu0 0.0
        %3136 = vmatprep.subr.mxu0 0.0
        %3137 = vmatpush1.msra.mxu0 0.0
        %3138 = vmatprep.subr.mxu0 0.0
        %3139 = vmatpush1.msra.mxu0 0.0
        %3140 = vmatprep.subr.mxu0 0.0
        %3141 = vmatpush1.msra.mxu0 0.0
        %3142 = vmatprep.subr.mxu0 0.0
        %3143 = vmatpush1.msra.mxu0 0.0
        %3144 = vmatprep.subr.mxu0 0.0
        %3145 = vmatpush1.msra.mxu0 0.0
        %3146 = vmatprep.subr.mxu0 0.0
        %3147 = vmatpush1.msra.mxu0 0.0
        %3148 = vmatprep.subr.mxu0 0.0
        %3149 = vmatpush1.msra.mxu0 0.0
        %3150 = vmatprep.subr.mxu0 0.0
        %3151 = vmatpush1.msra.mxu0 0.0
        %3152 = vmatprep.mubr.f32.mxu0 0.0
        %3153 = vmatmul.mubr.f32.gmra.mrb[0].mxu0 %v3086
        %v3154 = vpop.f32.mrb[0].mxu0
        %v3155 = vadd.f32 0.0, %v3154
        %v3156 = vpop.f32.mrb[0].mxu0
        %3157 = vdwg.mxu0
        %3158 = vrot.lane.b32.xlu0 %v2549, 104
        %v3159 = vpop.permute.xlu0 %3158
        %3160 = vrot.lane.b32.xlu0 %v2662, 104
        %v3161 = vpop.permute.xlu0 %3160
        %v3162 = vsel %vm545, %v3159, 0
        %v3164 = vsel %vm545, %v3161, 0
        %3166 = vmatprep.subr.mxu0 0.0
        %3167 = vmatpush1.xpose.msra.mxu0 %v3164
        %3168 = vmatprep.subr.mxu0 0.0
        %3169 = vmatpush1.xpose.msra.mxu0 0.0
        %3170 = vmatprep.subr.mxu0 0.0
        %3171 = vmatpush1.xpose.msra.mxu0 0.0
        %3172 = vmatprep.subr.mxu0 0.0
        %3173 = vmatpush1.xpose.msra.mxu0 0.0
        %3174 = vmatprep.subr.mxu0 0.0
        %3175 = vmatpush1.xpose.msra.mxu0 0.0
        %3176 = vmatprep.subr.mxu0 0.0
        %3177 = vmatpush1.xpose.msra.mxu0 0.0
        %3178 = vmatprep.subr.mxu0 0.0
        %3179 = vmatpush1.xpose.msra.mxu0 0.0
        %3180 = vmatprep.subr.mxu0 0.0
        %3181 = vmatpush1.xpose.msra.mxu0 0.0
        %3182 = vmatprep.subr.mxu0 0.0
        %3183 = vmatpush1.xpose.msra.mxu0 0.0
        %3184 = vmatprep.subr.mxu0 0.0
        %3185 = vmatpush1.xpose.msra.mxu0 0.0
        %3186 = vmatprep.subr.mxu0 0.0
        %3187 = vmatpush1.xpose.msra.mxu0 0.0
        %3188 = vmatprep.subr.mxu0 0.0
        %3189 = vmatpush1.xpose.msra.mxu0 0.0
        %3190 = vmatprep.subr.mxu0 0.0
        %3191 = vmatpush1.xpose.msra.mxu0 0.0
        %3192 = vmatprep.subr.mxu0 0.0
        %3193 = vmatpush1.xpose.msra.mxu0 0.0
        %3194 = vmatprep.subr.mxu0 0.0
        %3195 = vmatpush1.xpose.msra.mxu0 0.0
        %3196 = vmatprep.subr.mxu0 0.0
        %3197 = vmatpush1.xpose.msra.mxu0 0.0
        %3198 = vmatprep.subr.mxu0 0.0
        %3199 = vmatpush1.xpose.msra.mxu0 0.0
        %3200 = vmatprep.subr.mxu0 0.0
        %3201 = vmatpush1.xpose.msra.mxu0 0.0
        %3202 = vmatprep.subr.mxu0 0.0
        %3203 = vmatpush1.xpose.msra.mxu0 0.0
        %3204 = vmatprep.subr.mxu0 0.0
        %3205 = vmatpush1.xpose.msra.mxu0 0.0
        %3206 = vmatprep.subr.mxu0 0.0
        %3207 = vmatpush1.xpose.msra.mxu0 0.0
        %3208 = vmatprep.subr.mxu0 0.0
        %3209 = vmatpush1.xpose.msra.mxu0 0.0
        %3210 = vmatprep.subr.mxu0 0.0
        %3211 = vmatpush1.xpose.msra.mxu0 0.0
        %3212 = vmatprep.subr.mxu0 0.0
        %3213 = vmatpush1.xpose.msra.mxu0 0.0
        %3214 = vmatprep.subr.mxu0 0.0
        %3215 = vmatpush1.xpose.msra.mxu0 0.0
        %3216 = vmatprep.subr.mxu0 0.0
        %3217 = vmatpush1.xpose.msra.mxu0 0.0
        %3218 = vmatprep.subr.mxu0 0.0
        %3219 = vmatpush1.xpose.msra.mxu0 0.0
        %3220 = vmatprep.subr.mxu0 0.0
        %3221 = vmatpush1.xpose.msra.mxu0 0.0
        %3222 = vmatprep.subr.mxu0 0.0
        %3223 = vmatpush1.xpose.msra.mxu0 0.0
        %3224 = vmatprep.subr.mxu0 0.0
        %3225 = vmatpush1.xpose.msra.mxu0 0.0
        %3226 = vmatprep.subr.mxu0 0.0
        %3227 = vmatpush1.xpose.msra.mxu0 0.0
        %3228 = vmatprep.subr.mxu0 0.0
        %3229 = vmatpush1.xpose.msra.mxu0 0.0
        %3230 = vmatprep.mubr.f32.mxu0 0.0
        %3231 = vmatmul.mubr.f32.gmra.mrb[0].mxu0 %v3162
        %v3232 = vpop.f32.mrb[0].mxu0
        %v3233 = vadd.f32 %v540, %v3232
        %v3234 = vpop.f32.mrb[0].mxu0
        %3235 = vdwg.mxu0
        %v3236 = vsel %vm545, %v3233, -inf
        %3237 = vmax.xlane.f32.xlu0 %v3236
        %v3238 = vpop.xlane.xlu0 %3237
        %v3239 = vsub.f32 %v3233, %v3238
        %v3240 = vmul.f32 %v3239, 1.442695
        %v3241 = vpow.pop %v3240
        %v3242 = vsel %vm545, %v3241, 0.0
        %3243 = vadd.xlane.f32.xlu0 %v3242
        %v3244 = vpop.xlane.xlu0 %3243
        %v3245 = vrcp.pop %v3244
        %v3246 = vmul.f32 %v3241, %v3245
        %3247 = vrot.lane.b32.xlu0 %v2662, 72
        %v3248 = vpop.permute.xlu0 %3247
        %v3251 = vsel %vm545, %v3246, 0
        %3253 = vmatprep.subr.mxu0 0.0
        %3254 = vmatpush1.msra.mxu0 %v3248
        %3255 = vmatprep.subr.mxu0 0.0
        %3256 = vmatpush1.msra.mxu0 0.0
        %3257 = vmatprep.subr.mxu0 0.0
        %3258 = vmatpush1.msra.mxu0 0.0
        %3259 = vmatprep.subr.mxu0 0.0
        %3260 = vmatpush1.msra.mxu0 0.0
        %3261 = vmatprep.subr.mxu0 0.0
        %3262 = vmatpush1.msra.mxu0 0.0
        %3263 = vmatprep.subr.mxu0 0.0
        %3264 = vmatpush1.msra.mxu0 0.0
        %3265 = vmatprep.subr.mxu0 0.0
        %3266 = vmatpush1.msra.mxu0 0.0
        %3267 = vmatprep.subr.mxu0 0.0
        %3268 = vmatpush1.msra.mxu0 0.0
        %3269 = vmatprep.subr.mxu0 0.0
        %3270 = vmatpush1.msra.mxu0 0.0
        %3271 = vmatprep.subr.mxu0 0.0
        %3272 = vmatpush1.msra.mxu0 0.0
        %3273 = vmatprep.subr.mxu0 0.0
        %3274 = vmatpush1.msra.mxu0 0.0
        %3275 = vmatprep.subr.mxu0 0.0
        %3276 = vmatpush1.msra.mxu0 0.0
        %3277 = vmatprep.subr.mxu0 0.0
        %3278 = vmatpush1.msra.mxu0 0.0
        %3279 = vmatprep.subr.mxu0 0.0
        %3280 = vmatpush1.msra.mxu0 0.0
        %3281 = vmatprep.subr.mxu0 0.0
        %3282 = vmatpush1.msra.mxu0 0.0
        %3283 = vmatprep.subr.mxu0 0.0
        %3284 = vmatpush1.msra.mxu0 0.0
        %3285 = vmatprep.subr.mxu0 0.0
        %3286 = vmatpush1.msra.mxu0 0.0
        %3287 = vmatprep.subr.mxu0 0.0
        %3288 = vmatpush1.msra.mxu0 0.0
        %3289 = vmatprep.subr.mxu0 0.0
        %3290 = vmatpush1.msra.mxu0 0.0
        %3291 = vmatprep.subr.mxu0 0.0
        %3292 = vmatpush1.msra.mxu0 0.0
        %3293 = vmatprep.subr.mxu0 0.0
        %3294 = vmatpush1.msra.mxu0 0.0
        %3295 = vmatprep.subr.mxu0 0.0
        %3296 = vmatpush1.msra.mxu0 0.0
        %3297 = vmatprep.subr.mxu0 0.0
        %3298 = vmatpush1.msra.mxu0 0.0
        %3299 = vmatprep.subr.mxu0 0.0
        %3300 = vmatpush1.msra.mxu0 0.0
        %3301 = vmatprep.subr.mxu0 0.0
        %3302 = vmatpush1.msra.mxu0 0.0
        %3303 = vmatprep.subr.mxu0 0.0
        %3304 = vmatpush1.msra.mxu0 0.0
        %3305 = vmatprep.subr.mxu0 0.0
        %3306 = vmatpush1.msra.mxu0 0.0
        %3307 = vmatprep.subr.mxu0 0.0
        %3308 = vmatpush1.msra.mxu0 0.0
        %3309 = vmatprep.subr.mxu0 0.0
        %3310 = vmatpush1.msra.mxu0 0.0
        %3311 = vmatprep.subr.mxu0 0.0
        %3312 = vmatpush1.msra.mxu0 0.0
        %3313 = vmatprep.subr.mxu0 0.0
        %3314 = vmatpush1.msra.mxu0 0.0
        %3315 = vmatprep.subr.mxu0 0.0
        %3316 = vmatpush1.msra.mxu0 0.0
        %3317 = vmatprep.mubr.f32.mxu0 0.0
        %3318 = vmatmul.mubr.f32.gmra.mrb[0].mxu0 %v3251
        %v3319 = vpop.f32.mrb[0].mxu0
        %v3320 = vadd.f32 0.0, %v3319
        %v3321 = vpop.f32.mrb[0].mxu0
        %3322 = vdwg.mxu0
        %3324 = vrot.lane.b32.xlu0 %v2990, 8
        %v3325 = vpop.permute.xlu0 %3324
        %3328 = vrot.lane.b32.xlu0 %v3155, 16
        %v3329 = vpop.permute.xlu0 %3328
        %3332 = vrot.lane.b32.xlu0 %v3320, 24
        %v3333 = vpop.permute.xlu0 %3332
        %v3335 = vsel %vm545, %v2825, %v3325
        %v3336 = vsel %vm1215, %v3335, %v3329
        %v3337 = vsel %vm1217, %v3336, %v3333
        %3338 = vrot.lane.b32.xlu0 %v2553, 96
        %v3339 = vpop.permute.xlu0 %3338
        %3340 = vrot.lane.b32.xlu0 %v2555, 96
        %v3341 = vpop.permute.xlu0 %3340
        %3342 = vrot.lane.b32.xlu0 %v2557, 96
        %v3343 = vpop.permute.xlu0 %3342
        %3344 = vrot.lane.b32.xlu0 %v2559, 96
        %v3345 = vpop.permute.xlu0 %3344
        %v3351 = vsel %vm445, %v3337, 0
        %3353 = vmatprep.subr.mxu0 0.0
        %3354 = vmatpush1.msra.mxu0 %v3339
        %3355 = vmatprep.subr.mxu0 0.0
        %3356 = vmatpush1.msra.mxu0 %v3341
        %3357 = vmatprep.subr.mxu0 0.0
        %3358 = vmatpush1.msra.mxu0 %v3343
        %3359 = vmatprep.subr.mxu0 0.0
        %3360 = vmatpush1.msra.mxu0 %v3345
        %3361 = vmatprep.subr.mxu0 0.0
        %3362 = vmatpush1.msra.mxu0 0.0
        %3363 = vmatprep.subr.mxu0 0.0
        %3364 = vmatpush1.msra.mxu0 0.0
        %3365 = vmatprep.subr.mxu0 0.0
        %3366 = vmatpush1.msra.mxu0 0.0
        %3367 = vmatprep.subr.mxu0 0.0
        %3368 = vmatpush1.msra.mxu0 0.0
        %3369 = vmatprep.subr.mxu0 0.0
        %3370 = vmatpush1.msra.mxu0 0.0
        %3371 = vmatprep.subr.mxu0 0.0
        %3372 = vmatpush1.msra.mxu0 0.0
        %3373 = vmatprep.subr.mxu0 0.0
        %3374 = vmatpush1.msra.mxu0 0.0
        %3375 = vmatprep.subr.mxu0 0.0
        %3376 = vmatpush1.msra.mxu0 0.0
        %3377 = vmatprep.subr.mxu0 0.0
        %3378 = vmatpush1.msra.mxu0 0.0
        %3379 = vmatprep.subr.mxu0 0.0
        %3380 = vmatpush1.msra.mxu0 0.0
        %3381 = vmatprep.subr.mxu0 0.0
        %3382 = vmatpush1.msra.mxu0 0.0
        %3383 = vmatprep.subr.mxu0 0.0
        %3384 = vmatpush1.msra.mxu0 0.0
        %3385 = vmatprep.subr.mxu0 0.0
        %3386 = vmatpush1.msra.mxu0 0.0
        %3387 = vmatprep.subr.mxu0 0.0
        %3388 = vmatpush1.msra.mxu0 0.0
        %3389 = vmatprep.subr.mxu0 0.0
        %3390 = vmatpush1.msra.mxu0 0.0
        %3391 = vmatprep.subr.mxu0 0.0
        %3392 = vmatpush1.msra.mxu0 0.0
        %3393 = vmatprep.subr.mxu0 0.0
        %3394 = vmatpush1.msra.mxu0 0.0
        %3395 = vmatprep.subr.mxu0 0.0
        %3396 = vmatpush1.msra.mxu0 0.0
        %3397 = vmatprep.subr.mxu0 0.0
        %3398 = vmatpush1.msra.mxu0 0.0
        %3399 = vmatprep.subr.mxu0 0.0
        %3400 = vmatpush1.msra.mxu0 0.0
        %3401 = vmatprep.subr.mxu0 0.0
        %3402 = vmatpush1.msra.mxu0 0.0
        %3403 = vmatprep.subr.mxu0 0.0
        %3404 = vmatpush1.msra.mxu0 0.0
        %3405 = vmatprep.subr.mxu0 0.0
        %3406 = vmatpush1.msra.mxu0 0.0
        %3407 = vmatprep.subr.mxu0 0.0
        %3408 = vmatpush1.msra.mxu0 0.0
        %3409 = vmatprep.subr.mxu0 0.0
        %3410 = vmatpush1.msra.mxu0 0.0
        %3411 = vmatprep.subr.mxu0 0.0
        %3412 = vmatpush1.msra.mxu0 0.0
        %3413 = vmatprep.subr.mxu0 0.0
        %3414 = vmatpush1.msra.mxu0 0.0
        %3415 = vmatprep.subr.mxu0 0.0
        %3416 = vmatpush1.msra.mxu0 0.0
        %3417 = vmatprep.mubr.f32.mxu0 0.0
        %3418 = vmatmul.mubr.f32.gmra.mrb[0].mxu0 %v3351
        %v3419 = vpop.f32.mrb[0].mxu0
        %v3420 = vadd.f32 0.0, %v3419
        %v3421 = vpop.f32.mrb[0].mxu0
        %3422 = vdwg.mxu0
        %v3423 = vadd.f32 %v2460, %v3420
        %v3424 = vld [vmem:[%s3 + $0x5] sm:$0x1]
        %v3425 = vmul.f32 %v3423, %v3423
        %v3426 = vsel %vm445, %v3425, 0.0
        %3427 = vadd.xlane.f32.xlu0 %v3426
        %v3428 = vpop.xlane.xlu0 %3427
        %v3429 = vmul.f32 %v3428, %v449
        %v3430 = vadd.f32 %v3429, 1e-06
        %v3431 = vrsqrt.pop %v3430
        %v3432 = vmul.f32 %v3423, %v3431
        %v3433 = vlaneseq
        %v3434 = vshrl.u32 %v3433, 7
        %v3435 = vsub.s32 0, %v3434
        %v3436 = vrot.slane %v3424, %v3435
        %v3437 = vmul.f32 %v3432, %v3436
        %3438 = vrot.lane.b32.xlu0 %v2553, 64
        %v3439 = vpop.permute.xlu0 %3438
        %3440 = vrot.lane.b32.xlu0 %v2555, 64
        %v3441 = vpop.permute.xlu0 %3440
        %3442 = vrot.lane.b32.xlu0 %v2557, 64
        %v3443 = vpop.permute.xlu0 %3442
        %3444 = vrot.lane.b32.xlu0 %v2559, 64
        %v3445 = vpop.permute.xlu0 %3444
        %v3451 = vsel %vm445, %v3437, 0
        %3453 = vmatprep.subr.mxu0 0.0
        %3454 = vmatpush1.msra.mxu0 %v3439
        %3455 = vmatprep.subr.mxu0 0.0
        %3456 = vmatpush1.msra.mxu0 %v3441
        %3457 = vmatprep.subr.mxu0 0.0
        %3458 = vmatpush1.msra.mxu0 %v3443
        %3459 = vmatprep.subr.mxu0 0.0
        %3460 = vmatpush1.msra.mxu0 %v3445
        %3461 = vmatprep.subr.mxu0 0.0
        %3462 = vmatpush1.msra.mxu0 0.0
        %3463 = vmatprep.subr.mxu0 0.0
        %3464 = vmatpush1.msra.mxu0 0.0
        %3465 = vmatprep.subr.mxu0 0.0
        %3466 = vmatpush1.msra.mxu0 0.0
        %3467 = vmatprep.subr.mxu0 0.0
        %3468 = vmatpush1.msra.mxu0 0.0
        %3469 = vmatprep.subr.mxu0 0.0
        %3470 = vmatpush1.msra.mxu0 0.0
        %3471 = vmatprep.subr.mxu0 0.0
        %3472 = vmatpush1.msra.mxu0 0.0
        %3473 = vmatprep.subr.mxu0 0.0
        %3474 = vmatpush1.msra.mxu0 0.0
        %3475 = vmatprep.subr.mxu0 0.0
        %3476 = vmatpush1.msra.mxu0 0.0
        %3477 = vmatprep.subr.mxu0 0.0
        %3478 = vmatpush1.msra.mxu0 0.0
        %3479 = vmatprep.subr.mxu0 0.0
        %3480 = vmatpush1.msra.mxu0 0.0
        %3481 = vmatprep.subr.mxu0 0.0
        %3482 = vmatpush1.msra.mxu0 0.0
        %3483 = vmatprep.subr.mxu0 0.0
        %3484 = vmatpush1.msra.mxu0 0.0
        %3485 = vmatprep.subr.mxu0 0.0
        %3486 = vmatpush1.msra.mxu0 0.0
        %3487 = vmatprep.subr.mxu0 0.0
        %3488 = vmatpush1.msra.mxu0 0.0
        %3489 = vmatprep.subr.mxu0 0.0
        %3490 = vmatpush1.msra.mxu0 0.0
        %3491 = vmatprep.subr.mxu0 0.0
        %3492 = vmatpush1.msra.mxu0 0.0
        %3493 = vmatprep.subr.mxu0 0.0
        %3494 = vmatpush1.msra.mxu0 0.0
        %3495 = vmatprep.subr.mxu0 0.0
        %3496 = vmatpush1.msra.mxu0 0.0
        %3497 = vmatprep.subr.mxu0 0.0
        %3498 = vmatpush1.msra.mxu0 0.0
        %3499 = vmatprep.subr.mxu0 0.0
        %3500 = vmatpush1.msra.mxu0 0.0
        %3501 = vmatprep.subr.mxu0 0.0
        %3502 = vmatpush1.msra.mxu0 0.0
        %3503 = vmatprep.subr.mxu0 0.0
        %3504 = vmatpush1.msra.mxu0 0.0
        %3505 = vmatprep.subr.mxu0 0.0
        %3506 = vmatpush1.msra.mxu0 0.0
        %3507 = vmatprep.subr.mxu0 0.0
        %3508 = vmatpush1.msra.mxu0 0.0
        %3509 = vmatprep.subr.mxu0 0.0
        %3510 = vmatpush1.msra.mxu0 0.0
        %3511 = vmatprep.subr.mxu0 0.0
        %3512 = vmatpush1.msra.mxu0 0.0
        %3513 = vmatprep.subr.mxu0 0.0
        %3514 = vmatpush1.msra.mxu0 0.0
        %3515 = vmatprep.subr.mxu0 0.0
        %3516 = vmatpush1.msra.mxu0 0.0
        %3517 = vmatprep.mubr.f32.mxu0 0.0
        %3518 = vmatmul.mubr.f32.gmra.mrb[0].mxu0 %v3451
        %v3519 = vpop.f32.mrb[0].mxu0
        %v3520 = vadd.f32 0.0, %v3519
        %v3521 = vpop.f32.mrb[0].mxu0
        %3522 = vdwg.mxu0
        %v3523 = vmax.f32 %v3520, 0.0
        %3532 = vrot.lane.b32.xlu0 %v1401, 96
        %v3533 = vpop.permute.xlu0 %3532
        %3534 = vrot.lane.b32.xlu0 %v1402, 96
        %v3535 = vpop.permute.xlu0 %3534
        %3536 = vrot.lane.b32.xlu0 %v1403, 96
        %v3537 = vpop.permute.xlu0 %3536
        %3538 = vrot.lane.b32.xlu0 %v1404, 96
        %v3539 = vpop.permute.xlu0 %3538
        %3540 = vrot.lane.b32.xlu0 %v1405, 96
        %v3541 = vpop.permute.xlu0 %3540
        %3542 = vrot.lane.b32.xlu0 %v1406, 96
        %v3543 = vpop.permute.xlu0 %3542
        %3544 = vrot.lane.b32.xlu0 %v1407, 96
        %v3545 = vpop.permute.xlu0 %3544
        %3546 = vrot.lane.b32.xlu0 %v1408, 96
        %v3547 = vpop.permute.xlu0 %3546
        %v3557 = vsel %vm1409, %v3523, 0
        %3559 = vmatprep.subr.mxu0 0.0
        %3560 = vmatpush1.msra.mxu0 %v3533
        %3561 = vmatprep.subr.mxu0 0.0
        %3562 = vmatpush1.msra.mxu0 %v3535
        %3563 = vmatprep.subr.mxu0 0.0
        %3564 = vmatpush1.msra.mxu0 %v3537
        %3565 = vmatprep.subr.mxu0 0.0
        %3566 = vmatpush1.msra.mxu0 %v3539
        %3567 = vmatprep.subr.mxu0 0.0
        %3568 = vmatpush1.msra.mxu0 %v3541
        %3569 = vmatprep.subr.mxu0 0.0
        %3570 = vmatpush1.msra.mxu0 %v3543
        %3571 = vmatprep.subr.mxu0 0.0
        %3572 = vmatpush1.msra.mxu0 %v3545
        %3573 = vmatprep.subr.mxu0 0.0
        %3574 = vmatpush1.msra.mxu0 %v3547
        %3575 = vmatprep.subr.mxu0 0.0
        %3576 = vmatpush1.msra.mxu0 0.0
        %3577 = vmatprep.subr.mxu0 0.0
        %3578 = vmatpush1.msra.mxu0 0.0
        %3579 = vmatprep.subr.mxu0 0.0
        %3580 = vmatpush1.msra.mxu0 0.0
        %3581 = vmatprep.subr.mxu0 0.0
        %3582 = vmatpush1.msra.mxu0 0.0
        %3583 = vmatprep.subr.mxu0 0.0
        %3584 = vmatpush1.msra.mxu0 0.0
        %3585 = vmatprep.subr.mxu0 0.0
        %3586 = vmatpush1.msra.mxu0 0.0
        %3587 = vmatprep.subr.mxu0 0.0
        %3588 = vmatpush1.msra.mxu0 0.0
        %3589 = vmatprep.subr.mxu0 0.0
        %3590 = vmatpush1.msra.mxu0 0.0
        %3591 = vmatprep.subr.mxu0 0.0
        %3592 = vmatpush1.msra.mxu0 0.0
        %3593 = vmatprep.subr.mxu0 0.0
        %3594 = vmatpush1.msra.mxu0 0.0
        %3595 = vmatprep.subr.mxu0 0.0
        %3596 = vmatpush1.msra.mxu0 0.0
        %3597 = vmatprep.subr.mxu0 0.0
        %3598 = vmatpush1.msra.mxu0 0.0
        %3599 = vmatprep.subr.mxu0 0.0
        %3600 = vmatpush1.msra.mxu0 0.0
        %3601 = vmatprep.subr.mxu0 0.0
        %3602 = vmatpush1.msra.mxu0 0.0
        %3603 = vmatprep.subr.mxu0 0.0
        %3604 = vmatpush1.msra.mxu0 0.0
        %3605 = vmatprep.subr.mxu0 0.0
        %3606 = vmatpush1.msra.mxu0 0.0
        %3607 = vmatprep.subr.mxu0 0.0
        %3608 = vmatpush1.msra.mxu0 0.0
        %3609 = vmatprep.subr.mxu0 0.0
        %3610 = vmatpush1.msra.mxu0 0.0
        %3611 = vmatprep.subr.mxu0 0.0
        %3612 = vmatpush1.msra.mxu0 0.0
        %3613 = vmatprep.subr.mxu0 0.0
        %3614 = vmatpush1.msra.mxu0 0.0
        %3615 = vmatprep.subr.mxu0 0.0
        %3616 = vmatpush1.msra.mxu0 0.0
        %3617 = vmatprep.subr.mxu0 0.0
        %3618 = vmatpush1.msra.mxu0 0.0
        %3619 = vmatprep.subr.mxu0 0.0
        %3620 = vmatpush1.msra.mxu0 0.0
        %3621 = vmatprep.subr.mxu0 0.0
        %3622 = vmatpush1.msra.mxu0 0.0
        %3623 = vmatprep.mubr.f32.mxu0 0.0
        %3624 = vmatmul.mubr.f32.gmra.mrb[0].mxu0 %v3557
        %v3625 = vpop.f32.mrb[0].mxu0
        %v3626 = vadd.f32 0.0, %v3625
        %v3627 = vpop.f32.mrb[0].mxu0
        %3628 = vdwg.mxu0
        %v3629 = vadd.f32 %v3423, %v3626
        %v3630 = vld [vmem:[%s3 + $0x6] sm:$0x1]
        %v3631 = vmul.f32 %v3629, %v3629
        %v3632 = vsel %vm445, %v3631, 0.0
        %3633 = vadd.xlane.f32.xlu0 %v3632
        %v3634 = vpop.xlane.xlu0 %3633
        %v3635 = vmul.f32 %v3634, %v449
        %v3636 = vadd.f32 %v3635, 1e-06
        %v3637 = vrsqrt.pop %v3636
        %v3638 = vmul.f32 %v3629, %v3637
        %v3639 = vlaneseq
        %v3640 = vshrl.u32 %v3639, 7
        %v3641 = vsub.s32 0, %v3640
        %v3642 = vrot.slane %v3630, %v3641
        %v3643 = vmul.f32 %v3638, %v3642
        %v3644 = vmul.f32 %v3643, 0.17677669
        %v3646 = vsel %vm445, %v3644, 0
        %v3649 = vsel %vm445, %v339, 0
        %v3652 = vsel %vm445, %v340, 0
        %v3655 = vsel %vm445, %v341, 0
        %v3658 = vsel %vm445, %v342, 0
        %v3661 = vsel %vm445, %v343, 0
        %v3664 = vsel %vm445, %v344, 0
        %v3667 = vsel %vm445, %v345, 0
        %v3670 = vsel %vm445, %v346, 0
        %v3673 = vsel %vm445, %v347, 0
        %v3676 = vsel %vm445, %v348, 0
        %v3679 = vsel %vm445, %v349, 0
        %v3682 = vsel %vm445, %v350, 0
        %v3685 = vsel %vm445, %v351, 0
        %v3688 = vsel %vm445, %v352, 0
        %v3691 = vsel %vm445, %v353, 0
        %v3694 = vsel %vm445, %v354, 0
        %3696 = vmatprep.subr.mxu0 0.0
        %3697 = vmatpush1.xpose.msra.mxu0 %v3649
        %3698 = vmatprep.subr.mxu0 0.0
        %3699 = vmatpush1.xpose.msra.mxu0 %v3652
        %3700 = vmatprep.subr.mxu0 0.0
        %3701 = vmatpush1.xpose.msra.mxu0 %v3655
        %3702 = vmatprep.subr.mxu0 0.0
        %3703 = vmatpush1.xpose.msra.mxu0 %v3658
        %3704 = vmatprep.subr.mxu0 0.0
        %3705 = vmatpush1.xpose.msra.mxu0 %v3661
        %3706 = vmatprep.subr.mxu0 0.0
        %3707 = vmatpush1.xpose.msra.mxu0 %v3664
        %3708 = vmatprep.subr.mxu0 0.0
        %3709 = vmatpush1.xpose.msra.mxu0 %v3667
        %3710 = vmatprep.subr.mxu0 0.0
        %3711 = vmatpush1.xpose.msra.mxu0 %v3670
        %3712 = vmatprep.subr.mxu0 0.0
        %3713 = vmatpush1.xpose.msra.mxu0 %v3673
        %3714 = vmatprep.subr.mxu0 0.0
        %3715 = vmatpush1.xpose.msra.mxu0 %v3676
        %3716 = vmatprep.subr.mxu0 0.0
        %3717 = vmatpush1.xpose.msra.mxu0 %v3679
        %3718 = vmatprep.subr.mxu0 0.0
        %3719 = vmatpush1.xpose.msra.mxu0 %v3682
        %3720 = vmatprep.subr.mxu0 0.0
        %3721 = vmatpush1.xpose.msra.mxu0 %v3685
        %3722 = vmatprep.subr.mxu0 0.0
        %3723 = vmatpush1.xpose.msra.mxu0 %v3688
        %3724 = vmatprep.subr.mxu0 0.0
        %3725 = vmatpush1.xpose.msra.mxu0 %v3691
        %3726 = vmatprep.subr.mxu0 0.0
        %3727 = vmatpush1.xpose.msra.mxu0 %v3694
        %3728 = vmatprep.subr.mxu0 0.0
        %3729 = vmatpush1.xpose.msra.mxu0 0.0
        %3730 = vmatprep.subr.mxu0 0.0
        %3731 = vmatpush1.xpose.msra.mxu0 0.0
        %3732 = vmatprep.subr.mxu0 0.0
        %3733 = vmatpush1.xpose.msra.mxu0 0.0
        %3734 = vmatprep.subr.mxu0 0.0
        %3735 = vmatpush1.xpose.msra.mxu0 0.0
        %3736 = vmatprep.subr.mxu0 0.0
        %3737 = vmatpush1.xpose.msra.mxu0 0.0
        %3738 = vmatprep.subr.mxu0 0.0
        %3739 = vmatpush1.xpose.msra.mxu0 0.0
        %3740 = vmatprep.subr.mxu0 0.0
        %3741 = vmatpush1.xpose.msra.mxu0 0.0
        %3742 = vmatprep.subr.mxu0 0.0
        %3743 = vmatpush1.xpose.msra.mxu0 0.0
        %3744 = vmatprep.subr.mxu0 0.0
        %3745 = vmatpush1.xpose.msra.mxu0 0.0
        %3746 = vmatprep.subr.mxu0 0.0
        %3747 = vmatpush1.xpose.msra.mxu0 0.0
        %3748 = vmatprep.subr.mxu0 0.0
        %3749 = vmatpush1.xpose.msra.mxu0 0.0
        %3750 = vmatprep.subr.mxu0 0.0
        %3751 = vmatpush1.xpose.msra.mxu0 0.0
        %3752 = vmatprep.subr.mxu0 0.0
        %3753 = vmatpush1.xpose.msra.mxu0 0.0
        %3754 = vmatprep.subr.mxu0 0.0
        %3755 = vmatpush1.xpose.msra.mxu0 0.0
        %3756 = vmatprep.subr.mxu0 0.0
        %3757 = vmatpush1.xpose.msra.mxu0 0.0
        %3758 = vmatprep.subr.mxu0 0.0
        %3759 = vmatpush1.xpose.msra.mxu0 0.0
        %3760 = vmatprep.mubr.f32.mxu0 0.0
        %3761 = vmatmul.mubr.f32.gmra.mrb[0].mxu0 %v3646
        %v3762 = vpop.f32.mrb[0].mxu0
        %v3763 = vadd.f32 0.0, %v3762
        %v3764 = vpop.f32.mrb[0].mxu0
        %3765 = vdwg.mxu0
        %vm3766 = vcmp.lt.s32.totalorder %v361, 32
        %v3767 = vsel %vm3766, %v3763, -1e+09
        %3768 = vst [vmem:[%s310] sm:$0xff] %v3767
        %3769 = vmax.xlane.f32.xlu0 %v3767
        %v3770 = vpop.xlane.xlu0 %3769
        %v3771 = vsub.f32 %v3767, %v3770
        %v3772 = vmul.f32 %v3771, 1.442695
        %v3773 = vpow.pop %v3772
        %3774 = vadd.xlane.f32.xlu0 %v3773
        %v3775 = vpop.xlane.xlu0 %3774
        %v3776 = vlog2.pop %v3775
        %v3777 = vmul.f32 %v3776, 0.6931472
        %v3778 = vadd.f32 %v3777, %v3770
        %3779 = vset.pattern.permute.xlu0 0
        %3780 = vperm.xlu0 %3779, %v366
        %v3781 = vpop.permute.xlu0 %3780
        %vm3782 = vcmp.eq.s32.totalorder %v361, %v3781
        %v3783 = vsel %vm3782, %v3767, 0.0
        %3784 = vadd.xlane.f32.xlu0 %v3783
        %v3785 = vpop.xlane.xlu0 %3784
        %v3786 = vsub.f32 %v3778, %v3785
        %vm3787 = vcmask 7168
        %3788 = vst.msk [vmem:[%s334] sm:$0xff] %vm3787, %v3786
        %vm3789 = vcmp.eq.f32.partialorder %v3767, %v3770
        %v3790 = vsel %vm3789, %v361, 128
        %v3791 = vand.u32 %v3790, 65535
        %v3792 = vshra.s32 %v3790, 16
        %v3793 = vcvt.s32.f32 %v3791
        %v3794 = vcvt.s32.f32 %v3792
        %3795 = vmin.xlane.f32.xlu0 %v3794
        %v3796 = vpop.xlane.xlu0 %3795
        %vm3797 = vcmp.eq.f32.partialorder %v3794, %v3796
        %v3798 = vsel %vm3797, %v3793, inf
        %3799 = vmin.xlane.f32.xlu0 %v3798
        %v3800 = vpop.xlane.xlu0 %3799
        %v3801 = vcvt.f32.s32 %v3800
        %v3802 = vcvt.f32.s32 %v3796
        %v3803 = vshll.u32 %v3802, 16
        %v3804 = vadd.s32 %v3803, %v3801
        %3805 = vst.msk [vmem:[%s338] sm:$0xff] %vm3787, %v3804
        %s3806 = sand.u32 %s167, 1
        %s3807 = scalar_lea.sflag [#allocation3], %s3806
        %s3808 = sand.u32 %s167, 1
        %s3809 = smul.addr %s3808, 8
        %s3810 = scalar_lea.vmem [#allocation2], %s3809
        %p3811 = scmp.lt.s32.totalorder %s23, 1
        %s3812 = scalar_select %p3811, %s23, 1
        %s3813 = smul.addr %s3812, 8
        %s3814 = scalar_lea.vmem %s7, %s3813
        %p3815 = scmp.lt.s32.totalorder %s23, 1
        %s3816 = scalar_select %p3815, %s23, 1
        %s3817 = smul.addr %s3816, 8
        %s3818 = scalar_lea.vmem %s8, %s3817
        // Predicated region
        $region45: #{transformer_forward.1} parent=43 // pred_check
          %p3819 = pneg %p177
        $region46: #{transformer_forward.1} parent=43 // pred_check_branch
          %3821 = sbr.rel (%p3819) target = $region48
        $region47: #{transformer_forward.1} parent=43 // pred_region
          %s3823 = ssub.s32 128, 128
          %3824 = vsyncadd %s3807, %s3823
          %s3825 = smul.addr %s23, 128
          %s3826 = scalar_lea.hbm %s6, %s3825
          %s3828 = sshll.u32 %s3810, 4
          %s3829 = int_to_ptr.vmem [resolvable:$true] %s3828
          %3831 = dma.vmem_to_hbm [thread:$0]  %s3829, 128, %s3826, %s3807
        $region48: #{transformer_forward.1} parent=43 // pred_fallthru
          _
        // Predicated region
        $region49: #{transformer_forward.1} parent=43 // pred_check
          %p3832 = pneg %p203
        $region50: #{transformer_forward.1} parent=43 // pred_check_branch
          %3834 = sbr.rel (%p3832) target = $region52
        $region51: #{transformer_forward.1} parent=43 // pred_region
          _
        $region52: #{transformer_forward.1} parent=43 // pred_fallthru
          _
        // Predicated region
        $region53: #{transformer_forward.1} parent=43 // pred_check
          %p3835 = pneg %p229
        $region54: #{transformer_forward.1} parent=43 // pred_check_branch
          %3837 = sbr.rel (%p3835) target = $region56
        $region55: #{transformer_forward.1} parent=43 // pred_region
          _
        $region56: #{transformer_forward.1} parent=43 // pred_fallthru
          _
      $region44: #{transformer_forward.1} parent=5 // pred_fallthru
        _
      %p3838 = scmp.le.s32.totalorder 2, %s18
      // Predicated region
      $region57: #{transformer_forward.1} parent=5 // pred_check
        %p3839 = pneg %p3838
      $region58: #{transformer_forward.1} parent=5 // pred_check_branch
        %3841 = sbr.rel (%p3839) target = $region60
      $region59: #{transformer_forward.1} parent=5 // pred_region
        %s3842 = ssub.s32 %s18, 2
        // Predicated region
        $region61: #{transformer_forward.1} parent=59 // pred_check
          %p3843 = pneg %p183
        $region62: #{transformer_forward.1} parent=59 // pred_check_branch
          %3845 = sbr.rel (%p3843) target = $region64
        $region63: #{transformer_forward.1} parent=59 // pred_region
          %s3846 = sand.u32 %s168, 1
          %s3847 = scalar_lea.sflag [#allocation3], %s3846
          %s3848 = sand.u32 %s168, 1
          %s3849 = smul.addr %s3848, 8
          %s3850 = scalar_lea.vmem [#allocation2], %s3849
          %3851 = dma.done %s3847, 128
        $region64: #{transformer_forward.1} parent=59 // pred_fallthru
          _
        // Predicated region
        $region65: #{transformer_forward.1} parent=59 // pred_check
          %p3852 = pneg %p209
        $region66: #{transformer_forward.1} parent=59 // pred_check_branch
          %3854 = sbr.rel (%p3852) target = $region68
        $region67: #{transformer_forward.1} parent=59 // pred_region
          %p3855 = scmp.lt.s32.totalorder %s24, 1
          %s3856 = scalar_select %p3855, %s24, 1
          %s3857 = smul.addr %s3856, 8
          %s3858 = scalar_lea.vmem %s7, %s3857
        $region68: #{transformer_forward.1} parent=59 // pred_fallthru
          _
        // Predicated region
        $region69: #{transformer_forward.1} parent=59 // pred_check
          %p3859 = pneg %p235
        $region70: #{transformer_forward.1} parent=59 // pred_check_branch
          %3861 = sbr.rel (%p3859) target = $region72
        $region71: #{transformer_forward.1} parent=59 // pred_region
          %p3862 = scmp.lt.s32.totalorder %s24, 1
          %s3863 = scalar_select %p3862, %s24, 1
          %s3864 = smul.addr %s3863, 8
          %s3865 = scalar_lea.vmem %s8, %s3864
        $region72: #{transformer_forward.1} parent=59 // pred_fallthru
          _
      $region60: #{transformer_forward.1} parent=5 // pred_fallthru
        _
    $region6: #{transformer_forward.1} parent=1 // loop_footer
      %s22 = sadd.s32 1, %s18
    $region7: #{transformer_forward.1} parent=1 // loop_footer_branch
      %17 = sbr.rel target = $region3
    $region8: #{transformer_forward.1} parent=1 // loop_exit
      _
    %3866 = vsyncpa [#allocation3], 1
    %s3867 = scalar_lea.sflag [#allocation3], 1
    %3868 = vsyncpa %s3867, 1

</llo_original>
